<compile_context>
chip_gen: v7x
topology: tpu7x:2x2x1
jax: 0.10.0
libtpu: 0.0.40
codegen_flags: <defaults>
</compile_context>

<pallas_src>
import functools

import jax
import jax.numpy as jnp
from jax.experimental import pallas as pl
from jax.experimental.pallas import tpu as pltpu

DEPTH = 4
DILMAX = 2 ** (DEPTH - 1)   # largest dilation -> number of causal guard frames
EPS = 1e-5


def _dense_block_kernel(x_ref, w0_ref, w1_ref, w2_ref, w3_ref,
                        b_ref, g_ref, bt_ref, a_ref,
                        o_ref, skip_ref, *, T, F, C):
    # x_ref/o_ref: (1, C, T*FP)  (FP = F + 2, per-frame freq guards)
    # w_i: (6, C, (i+1)*C) with tap index k = kt*3 + kf
    # b/g/bt/a: (DEPTH, C, 1)
    # skip_ref: (4*C, (DILMAX + T + 1) * FP) f32 scratch slab:
    #   frames: [DILMAX causal guard frames][T data frames][1 trailing guard]
    #   each data frame: [guard, F values, guard]
    FP = F + 2
    TF = T * FP
    DM = DILMAX
    w_refs = (w0_ref, w1_ref, w2_ref, w3_ref)

    # Zero only the guard regions (small), unconditionally every grid step so
    # correctness does not depend on program_id==0 (batch axis is "parallel").
    skip_ref[:, :DM * FP + 1] = jnp.zeros((DEPTH * C, DM * FP + 1), jnp.float32)
    skip_ref[:, (DM + T) * FP:] = jnp.zeros((DEPTH * C, FP), jnp.float32)

    # Place the (already freq-guard-padded, flattened) input x in the last
    # channel slot: one contiguous lane-dense store.
    skip_ref[(DEPTH - 1) * C:, DM * FP:DM * FP + TF] = x_ref[0].astype(jnp.float32)

    # Validity mask over the *compute* layout (value (t,f) sits at lane
    # t*FP + f; lanes with f >= F are junk / guard positions).
    lane = jax.lax.broadcasted_iota(jnp.int32, (1, TF), 1)
    mask = ((lane % FP) < F).astype(jnp.float32)          # (1, TF)
    inv_n = 1.0 / float(T * F)

    for i in range(DEPTH):
        dil = 2 ** i
        cin = (i + 1) * C
        base = (DEPTH - 1 - i) * C        # block i reads slab channels [base : 4C]
        w = w_refs[i]

        # ---- dilated causal conv: 6 lane-dense matmuls (one per tap) ----
        # For output (t, f), tap (kt, kf) reads slab lane
        #   (DM + t + (kt-1)*dil) * FP + (f + kf)      (guards give the zeros)
        # which is a contiguous window of width T*FP starting at s below.
        acc = jnp.zeros((C, TF), jnp.float32)
        for kt in range(2):
            row0 = DM + (kt - 1) * dil     # >= 0 thanks to the DM guard frames
            for kf in range(3):
                s = row0 * FP + kf
                acc = acc + jnp.dot(
                    w[kt * 3 + kf],
                    skip_ref[base:base + cin, s:s + TF],
                    preferred_element_type=jnp.float32)

        # ---- bias + InstanceNorm2d(affine) + PReLU (stats over valid lanes) ----
        acc = acc + b_ref[i]                                    # (C,TF) + (C,1)
        mean = jnp.sum(acc * mask, axis=1, keepdims=True) * inv_n
        cen = acc - mean
        var = jnp.sum(jnp.square(cen) * mask, axis=1, keepdims=True) * inv_n
        y = g_ref[i] * (cen * jax.lax.rsqrt(var + EPS)) + bt_ref[i]
        y = jnp.where(y > 0, y, a_ref[i] * y)                   # PReLU

        if i < DEPTH - 1:
            # Dense skip: newest output goes in front of the slab.  Masking
            # zeroes the junk lanes, which land exactly on the frame guard
            # columns, keeping them zero for the next block's conv.
            skip_ref[base - C:base, DM * FP + 1:DM * FP + 1 + TF] = y * mask
        else:
            o_ref[0] = y.astype(o_ref.dtype)


@jax.jit
def dense_block_v2(x_nchw, w6_0, w6_1, w6_2, w6_3, b_all, g_all, bt_all, a_all):
    B, C, T, F = x_nchw.shape
    FP = F + 2
    TF = T * FP
    L = (DILMAX + T + 1) * FP

    # Add per-frame frequency guard columns host-side and flatten (T, FP) into
    # one lane-dense axis for the kernel input.
    x_flat = jnp.pad(x_nchw, ((0, 0), (0, 0), (0, 0), (1, 1))).reshape(B, C, TF)

    kernel = functools.partial(_dense_block_kernel, T=T, F=F, C=C)

    out_flat = pl.pallas_call(
        kernel,
        out_shape=jax.ShapeDtypeStruct((B, C, TF), x_nchw.dtype),
        grid_spec=pltpu.PrefetchScalarGridSpec(
            num_scalar_prefetch=0,
            grid=(B,),
            in_specs=[
                pl.BlockSpec((1, C, TF), lambda b: (b, 0, 0)),
                pl.BlockSpec((6, C, 1 * C), lambda b: (0, 0, 0)),
                pl.BlockSpec((6, C, 2 * C), lambda b: (0, 0, 0)),
                pl.BlockSpec((6, C, 3 * C), lambda b: (0, 0, 0)),
                pl.BlockSpec((6, C, 4 * C), lambda b: (0, 0, 0)),
                pl.BlockSpec((DEPTH, C, 1), lambda b: (0, 0, 0)),
                pl.BlockSpec((DEPTH, C, 1), lambda b: (0, 0, 0)),
                pl.BlockSpec((DEPTH, C, 1), lambda b: (0, 0, 0)),
                pl.BlockSpec((DEPTH, C, 1), lambda b: (0, 0, 0)),
            ],
            out_specs=pl.BlockSpec((1, C, TF), lambda b: (b, 0, 0)),
            scratch_shapes=[
                pltpu.VMEM((DEPTH * C, L), jnp.float32),    # dense skip slab
            ],
        ),
        compiler_params=pltpu.CompilerParams(
            dimension_semantics=("parallel",)),
    )(x_flat, w6_0, w6_1, w6_2, w6_3, b_all, g_all, bt_all, a_all)

    # Kernel output has value (t, f) at lane t*FP + f (f < F); junk lanes dropped.
    return out_flat.reshape(B, C, T, FP)[:, :, :, :F]


def init_params(key, C, depth=DEPTH):
    params = []
    for i in range(depth):
        cin = C * (i + 1)
        key, k1, k2, k3, k4, k5 = jax.random.split(key, 6)
        params.append(dict(
            w=jax.random.normal(k1, (C, cin, 2, 3), jnp.float32) * 0.1,  # OIHW
            b=jax.random.normal(k2, (C,), jnp.float32) * 0.1,
            g=1.0 + 0.1 * jax.random.normal(k3, (C,), jnp.float32),
            bt=0.1 * jax.random.normal(k4, (C,), jnp.float32),
            a=0.25 + 0.05 * jax.random.normal(k5, (C,), jnp.float32),
        ))
    return params


def pack_params(params, C):
    # conv weights (O, I, 2, 3) -> (6, O, I) with tap index k = kt*3 + kf
    w6 = [jnp.transpose(p["w"], (2, 3, 0, 1)).reshape(6, C, p["w"].shape[1])
          for p in params]
    stack = lambda name: jnp.stack([p[name] for p in params]).reshape(DEPTH, C, 1)
    return w6, stack("b"), stack("g"), stack("bt"), stack("a")


def ref_forward(x, params):
    """Plain-JAX reference mirroring the PyTorch module (NCHW)."""
    skip = x
    out = None
    for i, p in enumerate(params):
        dil = 2 ** i
        xp = jnp.pad(skip, ((0, 0), (0, 0), (dil, 0), (1, 1)))
        y = jax.lax.conv_general_dilated(
            xp, p["w"], window_strides=(1, 1), padding="VALID",
            rhs_dilation=(dil, 1),
            dimension_numbers=("NCHW", "OIHW", "NCHW"))
        y = y + p["b"][None, :, None, None]
        mean = jnp.mean(y, axis=(2, 3), keepdims=True)
        var = jnp.mean(jnp.square(y - mean), axis=(2, 3), keepdims=True)
        y = (y - mean) * jax.lax.rsqrt(var + EPS)
        y = p["g"][None, :, None, None] * y + p["bt"][None, :, None, None]
        y = jnp.where(y > 0, y, p["a"][None, :, None, None] * y)
        out = y
        skip = jnp.concatenate([y, skip], axis=1)
    return out


if __name__ == "__main__":
    B, C, T, F = 2, 8, 8, 16          # (batch, dense_channel, time, freq)
    key = jax.random.PRNGKey(0)
    kx, kp = jax.random.split(key)
    x = jax.random.normal(kx, (B, C, T, F), jnp.float32)
    params = init_params(kp, C)
    w6, b_all, g_all, bt_all, a_all = pack_params(params, C)

    out = dense_block_v2(x, w6[0], w6[1], w6[2], w6[3],
                         b_all, g_all, bt_all, a_all)
    out = jax.block_until_ready(out)

    ref = ref_forward(x, params)
    assert out.shape == (B, C, T, F)
    err = float(jnp.max(jnp.abs(out - ref)))
    assert err < 5e-2, f"max abs diff too large: {err}"
    print("KERNEL_OK")
</pallas_src>

<mosaic_0001>
module attributes {stable_mosaic.version = 11 : i64} {
  func.func @_dense_block_kernel(%arg0: i32, %arg1: memref<1x8x144xf32, #tpu.memory_space<vmem>>, %arg2: memref<6x8x8xf32, #tpu.memory_space<vmem>>, %arg3: memref<6x8x16xf32, #tpu.memory_space<vmem>>, %arg4: memref<6x8x24xf32, #tpu.memory_space<vmem>>, %arg5: memref<6x8x32xf32, #tpu.memory_space<vmem>>, %arg6: memref<4x8x1xf32, #tpu.memory_space<vmem>>, %arg7: memref<4x8x1xf32, #tpu.memory_space<vmem>>, %arg8: memref<4x8x1xf32, #tpu.memory_space<vmem>>, %arg9: memref<4x8x1xf32, #tpu.memory_space<vmem>>, %arg10: memref<1x8x144xf32, #tpu.memory_space<vmem>>, %arg11: memref<32x306xf32, #tpu.memory_space<vmem>>) attributes {dimension_semantics = [#tpu.dimension_semantics<parallel>], iteration_bounds = array<i64: 2>, scalar_prefetch = 0 : i64, scratch_operands = 1 : i64, tpu.core_type = #tpu.core_type<tc>, window_params = [{transform_indices = @transform_0, window_bounds = array<i64: 1, 8, 144>}, {pipeline_mode = #tpu.pipeline_mode<synchronous>, transform_indices = @transform_1, window_bounds = array<i64: 6, 8, 8>}, {pipeline_mode = #tpu.pipeline_mode<synchronous>, transform_indices = @transform_2, window_bounds = array<i64: 6, 8, 16>}, {pipeline_mode = #tpu.pipeline_mode<synchronous>, transform_indices = @transform_3, window_bounds = array<i64: 6, 8, 24>}, {pipeline_mode = #tpu.pipeline_mode<synchronous>, transform_indices = @transform_4, window_bounds = array<i64: 6, 8, 32>}, {pipeline_mode = #tpu.pipeline_mode<synchronous>, transform_indices = @transform_5, window_bounds = array<i64: 4, 8, 1>}, {pipeline_mode = #tpu.pipeline_mode<synchronous>, transform_indices = @transform_6, window_bounds = array<i64: 4, 8, 1>}, {pipeline_mode = #tpu.pipeline_mode<synchronous>, transform_indices = @transform_7, window_bounds = array<i64: 4, 8, 1>}, {pipeline_mode = #tpu.pipeline_mode<synchronous>, transform_indices = @transform_8, window_bounds = array<i64: 4, 8, 1>}, {transform_indices = @transform_9, window_bounds = array<i64: 1, 8, 144>}]} {
    %cst = arith.constant 0.000000e+00 : f32
    %0 = vector.broadcast %cst : f32 to vector<32x145xf32>
    %c0 = arith.constant 0 : index
    %c0_0 = arith.constant 0 : index
    %1 = vector.load %arg11[%c0, %c0_0] : memref<32x306xf32, #tpu.memory_space<vmem>>, vector<32x145xf32>
    tpu.vector_store %arg11[%c0, %c0_0], %0 {strides = array<i32>} : memref<32x306xf32, #tpu.memory_space<vmem>>, vector<32x145xf32>,
    %cst_1 = arith.constant 0.000000e+00 : f32
    %2 = vector.broadcast %cst_1 : f32 to vector<32x18xf32>
    %c0_2 = arith.constant 0 : index
    %c288 = arith.constant 288 : index
    %3 = vector.load %arg11[%c0_2, %c288] : memref<32x306xf32, #tpu.memory_space<vmem>>, vector<32x18xf32>
    tpu.vector_store %arg11[%c0_2, %c288], %2 {strides = array<i32>} : memref<32x306xf32, #tpu.memory_space<vmem>>, vector<32x18xf32>,
    %c0_3 = arith.constant 0 : index
    %c0_4 = arith.constant 0 : index
    %c0_5 = arith.constant 0 : index
    %4 = vector.load %arg1[%c0_3, %c0_4, %c0_5] : memref<1x8x144xf32, #tpu.memory_space<vmem>>, vector<1x8x144xf32>
    %5 = vector.shape_cast %4 : vector<1x8x144xf32> to vector<8x144xf32>
    %c24 = arith.constant 24 : index
    %c144 = arith.constant 144 : index
    %6 = vector.load %arg11[%c24, %c144] : memref<32x306xf32, #tpu.memory_space<vmem>>, vector<8x144xf32>
    tpu.vector_store %arg11[%c24, %c144], %5 {strides = array<i32>} : memref<32x306xf32, #tpu.memory_space<vmem>>, vector<8x144xf32>,
    %7 = tpu.iota {dimensions = array<i32: 1>} : vector<1x144xi32>
    %c18_i32 = arith.constant 18 : i32
    %c0_i32 = arith.constant 0 : i32
    %8 = arith.cmpi eq, %c18_i32, %c0_i32 : i32
    %c1_i32 = arith.constant 1 : i32
    %9 = arith.select %8, %c1_i32, %c18_i32 : i32
    %10 = vector.broadcast %9 : i32 to vector<1x144xi32>
    %11 = arith.remsi %7, %10 : vector<1x144xi32>
    %c0_i32_6 = arith.constant 0 : i32
    %12 = vector.broadcast %c0_i32_6 : i32 to vector<1x144xi32>
    %13 = arith.cmpi ne, %11, %12 : vector<1x144xi32>
    %c0_i32_7 = arith.constant 0 : i32
    %14 = vector.broadcast %c0_i32_7 : i32 to vector<1x144xi32>
    %15 = arith.cmpi slt, %11, %14 : vector<1x144xi32>
    %c0_i32_8 = arith.constant 0 : i32
    %16 = arith.cmpi slt, %9, %c0_i32_8 : i32
    %17 = vector.broadcast %16 : i1 to vector<1x144xi1>
    %18 = vector.broadcast %17 : vector<1x144xi1> to vector<1x144xi1>
    %19 = arith.xori %15, %18 : vector<1x144xi1>
    %20 = arith.andi %19, %13 : vector<1x144xi1>
    %21 = vector.broadcast %9 : i32 to vector<1x144xi32>
    %22 = arith.addi %11, %21 : vector<1x144xi32>
    %23 = arith.select %20, %22, %11 : vector<1x144xi1>, vector<1x144xi32>
    %c16_i32 = arith.constant 16 : i32
    %24 = vector.broadcast %c16_i32 : i32 to vector<1x144xi32>
    %25 = arith.cmpi slt, %23, %24 : vector<1x144xi32>
    %26 = arith.extui %25 : vector<1x144xi1> to vector<1x144xi32>
    %27 = arith.sitofp %26 : vector<1x144xi32> to vector<1x144xf32>
    %cst_9 = arith.constant 0.000000e+00 : f32
    %28 = vector.broadcast %cst_9 : f32 to vector<8x144xf32>
    %c0_10 = arith.constant 0 : index
    %c0_11 = arith.constant 0 : index
    %c0_12 = arith.constant 0 : index
    %29 = vector.load %arg2[%c0_10, %c0_11, %c0_12] : memref<6x8x8xf32, #tpu.memory_space<vmem>>, vector<1x8x8xf32>
    %30 = vector.shape_cast %29 : vector<1x8x8xf32> to vector<8x8xf32>
    %c24_13 = arith.constant 24 : index
    %c126 = arith.constant 126 : index
    %31 = vector.load %arg11[%c24_13, %c126] : memref<32x306xf32, #tpu.memory_space<vmem>>, vector<8x144xf32>
    %cst_14 = arith.constant dense<0.000000e+00> : vector<8x144xf32>
    %32 = tpu.matmul %30, %31, %cst_14 {dimension_numbers = #tpu.dot_dimension_numbers<[1], [0], [0], [1], [0, 0, 1, 1], [], []>} : vector<8x8xf32>, vector<8x144xf32>, vector<8x144xf32> -> vector<8x144xf32>
    %33 = arith.addf %28, %32 : vector<8x144xf32>
    %c1 = arith.constant 1 : index
    %c0_15 = arith.constant 0 : index
    %c0_16 = arith.constant 0 : index
    %34 = vector.load %arg2[%c1, %c0_15, %c0_16] : memref<6x8x8xf32, #tpu.memory_space<vmem>>, vector<1x8x8xf32>
    %35 = vector.shape_cast %34 : vector<1x8x8xf32> to vector<8x8xf32>
    %c24_17 = arith.constant 24 : index
    %c127 = arith.constant 127 : index
    %36 = vector.load %arg11[%c24_17, %c127] : memref<32x306xf32, #tpu.memory_space<vmem>>, vector<8x144xf32>
    %cst_18 = arith.constant dense<0.000000e+00> : vector<8x144xf32>
    %37 = tpu.matmul %35, %36, %cst_18 {dimension_numbers = #tpu.dot_dimension_numbers<[1], [0], [0], [1], [0, 0, 1, 1], [], []>} : vector<8x8xf32>, vector<8x144xf32>, vector<8x144xf32> -> vector<8x144xf32>
    %38 = arith.addf %33, %37 : vector<8x144xf32>
    %c2 = arith.constant 2 : index
    %c0_19 = arith.constant 0 : index
    %c0_20 = arith.constant 0 : index
    %39 = vector.load %arg2[%c2, %c0_19, %c0_20] : memref<6x8x8xf32, #tpu.memory_space<vmem>>, vector<1x8x8xf32>
    %40 = vector.shape_cast %39 : vector<1x8x8xf32> to vector<8x8xf32>
    %c24_21 = arith.constant 24 : index
    %c128 = arith.constant 128 : index
    %41 = vector.load %arg11[%c24_21, %c128] : memref<32x306xf32, #tpu.memory_space<vmem>>, vector<8x144xf32>
    %cst_22 = arith.constant dense<0.000000e+00> : vector<8x144xf32>
    %42 = tpu.matmul %40, %41, %cst_22 {dimension_numbers = #tpu.dot_dimension_numbers<[1], [0], [0], [1], [0, 0, 1, 1], [], []>} : vector<8x8xf32>, vector<8x144xf32>, vector<8x144xf32> -> vector<8x144xf32>
    %43 = arith.addf %38, %42 : vector<8x144xf32>
    %c3 = arith.constant 3 : index
    %c0_23 = arith.constant 0 : index
    %c0_24 = arith.constant 0 : index
    %44 = vector.load %arg2[%c3, %c0_23, %c0_24] : memref<6x8x8xf32, #tpu.memory_space<vmem>>, vector<1x8x8xf32>
    %45 = vector.shape_cast %44 : vector<1x8x8xf32> to vector<8x8xf32>
    %c24_25 = arith.constant 24 : index
    %c144_26 = arith.constant 144 : index
    %46 = vector.load %arg11[%c24_25, %c144_26] : memref<32x306xf32, #tpu.memory_space<vmem>>, vector<8x144xf32>
    %cst_27 = arith.constant dense<0.000000e+00> : vector<8x144xf32>
    %47 = tpu.matmul %45, %46, %cst_27 {dimension_numbers = #tpu.dot_dimension_numbers<[1], [0], [0], [1], [0, 0, 1, 1], [], []>} : vector<8x8xf32>, vector<8x144xf32>, vector<8x144xf32> -> vector<8x144xf32>
    %48 = arith.addf %43, %47 : vector<8x144xf32>
    %c4 = arith.constant 4 : index
    %c0_28 = arith.constant 0 : index
    %c0_29 = arith.constant 0 : index
    %49 = vector.load %arg2[%c4, %c0_28, %c0_29] : memref<6x8x8xf32, #tpu.memory_space<vmem>>, vector<1x8x8xf32>
    %50 = vector.shape_cast %49 : vector<1x8x8xf32> to vector<8x8xf32>
    %c24_30 = arith.constant 24 : index
    %c145 = arith.constant 145 : index
    %51 = vector.load %arg11[%c24_30, %c145] : memref<32x306xf32, #tpu.memory_space<vmem>>, vector<8x144xf32>
    %cst_31 = arith.constant dense<0.000000e+00> : vector<8x144xf32>
    %52 = tpu.matmul %50, %51, %cst_31 {dimension_numbers = #tpu.dot_dimension_numbers<[1], [0], [0], [1], [0, 0, 1, 1], [], []>} : vector<8x8xf32>, vector<8x144xf32>, vector<8x144xf32> -> vector<8x144xf32>
    %53 = arith.addf %48, %52 : vector<8x144xf32>
    %c5 = arith.constant 5 : index
    %c0_32 = arith.constant 0 : index
    %c0_33 = arith.constant 0 : index
    %54 = vector.load %arg2[%c5, %c0_32, %c0_33] : memref<6x8x8xf32, #tpu.memory_space<vmem>>, vector<1x8x8xf32>
    %55 = vector.shape_cast %54 : vector<1x8x8xf32> to vector<8x8xf32>
    %c24_34 = arith.constant 24 : index
    %c146 = arith.constant 146 : index
    %56 = vector.load %arg11[%c24_34, %c146] : memref<32x306xf32, #tpu.memory_space<vmem>>, vector<8x144xf32>
    %cst_35 = arith.constant dense<0.000000e+00> : vector<8x144xf32>
    %57 = tpu.matmul %55, %56, %cst_35 {dimension_numbers = #tpu.dot_dimension_numbers<[1], [0], [0], [1], [0, 0, 1, 1], [], []>} : vector<8x8xf32>, vector<8x144xf32>, vector<8x144xf32> -> vector<8x144xf32>
    %58 = arith.addf %53, %57 : vector<8x144xf32>
    %c0_36 = arith.constant 0 : index
    %c0_37 = arith.constant 0 : index
    %c0_38 = arith.constant 0 : index
    %59 = vector.load %arg6[%c0_36, %c0_37, %c0_38] : memref<4x8x1xf32, #tpu.memory_space<vmem>>, vector<1x8x1xf32>
    %60 = vector.shape_cast %59 : vector<1x8x1xf32> to vector<8x1xf32>
    %61 = vector.broadcast %60 : vector<8x1xf32> to vector<8x144xf32>
    %62 = arith.addf %58, %61 : vector<8x144xf32>
    %63 = vector.broadcast %27 : vector<1x144xf32> to vector<8x144xf32>
    %64 = arith.mulf %62, %63 : vector<8x144xf32>
    %cst_39 = arith.constant dense<0.000000e+00> : vector<8xf32>
    %65 = vector.multi_reduction <add>, %64, %cst_39 [1] : vector<8x144xf32> to vector<8xf32>
    %66 = vector.shape_cast %65 : vector<8xf32> to vector<8x1xf32>
    %cst_40 = arith.constant 7.812500e-03 : f32
    %67 = vector.broadcast %cst_40 : f32 to vector<8x1xf32>
    %68 = arith.mulf %66, %67 : vector<8x1xf32>
    %69 = vector.broadcast %68 : vector<8x1xf32> to vector<8x144xf32>
    %70 = arith.subf %62, %69 : vector<8x144xf32>
    %71 = arith.mulf %70, %70 : vector<8x144xf32>
    %72 = vector.broadcast %27 : vector<1x144xf32> to vector<8x144xf32>
    %73 = arith.mulf %71, %72 : vector<8x144xf32>
    %cst_41 = arith.constant dense<0.000000e+00> : vector<8xf32>
    %74 = vector.multi_reduction <add>, %73, %cst_41 [1] : vector<8x144xf32> to vector<8xf32>
    %75 = vector.shape_cast %74 : vector<8xf32> to vector<8x1xf32>
    %cst_42 = arith.constant 7.812500e-03 : f32
    %76 = vector.broadcast %cst_42 : f32 to vector<8x1xf32>
    %77 = arith.mulf %75, %76 : vector<8x1xf32>
    %c0_43 = arith.constant 0 : index
    %c0_44 = arith.constant 0 : index
    %c0_45 = arith.constant 0 : index
    %78 = vector.load %arg7[%c0_43, %c0_44, %c0_45] : memref<4x8x1xf32, #tpu.memory_space<vmem>>, vector<1x8x1xf32>
    %79 = vector.shape_cast %78 : vector<1x8x1xf32> to vector<8x1xf32>
    %cst_46 = arith.constant 9.99999974E-6 : f32
    %80 = vector.broadcast %cst_46 : f32 to vector<8x1xf32>
    %81 = arith.addf %77, %80 : vector<8x1xf32>
    %82 = math.rsqrt %81 : vector<8x1xf32>
    %83 = vector.broadcast %82 : vector<8x1xf32> to vector<8x144xf32>
    %84 = arith.mulf %70, %83 : vector<8x144xf32>
    %85 = vector.broadcast %79 : vector<8x1xf32> to vector<8x144xf32>
    %86 = arith.mulf %85, %84 : vector<8x144xf32>
    %c0_47 = arith.constant 0 : index
    %c0_48 = arith.constant 0 : index
    %c0_49 = arith.constant 0 : index
    %87 = vector.load %arg8[%c0_47, %c0_48, %c0_49] : memref<4x8x1xf32, #tpu.memory_space<vmem>>, vector<1x8x1xf32>
    %88 = vector.shape_cast %87 : vector<1x8x1xf32> to vector<8x1xf32>
    %89 = vector.broadcast %88 : vector<8x1xf32> to vector<8x144xf32>
    %90 = arith.addf %86, %89 : vector<8x144xf32>
    %cst_50 = arith.constant 0.000000e+00 : f32
    %91 = vector.broadcast %cst_50 : f32 to vector<8x144xf32>
    %92 = arith.cmpf ogt, %90, %91 : vector<8x144xf32>
    %c0_51 = arith.constant 0 : index
    %c0_52 = arith.constant 0 : index
    %c0_53 = arith.constant 0 : index
    %93 = vector.load %arg9[%c0_51, %c0_52, %c0_53] : memref<4x8x1xf32, #tpu.memory_space<vmem>>, vector<1x8x1xf32>
    %94 = vector.shape_cast %93 : vector<1x8x1xf32> to vector<8x1xf32>
    %95 = vector.broadcast %94 : vector<8x1xf32> to vector<8x144xf32>
    %96 = arith.mulf %95, %90 : vector<8x144xf32>
    %97 = arith.select %92, %90, %96 : vector<8x144xi1>, vector<8x144xf32>
    %98 = vector.broadcast %27 : vector<1x144xf32> to vector<8x144xf32>
    %99 = arith.mulf %97, %98 : vector<8x144xf32>
    %c16 = arith.constant 16 : index
    %c145_54 = arith.constant 145 : index
    %100 = vector.load %arg11[%c16, %c145_54] : memref<32x306xf32, #tpu.memory_space<vmem>>, vector<8x144xf32>
    tpu.vector_store %arg11[%c16, %c145_54], %99 {strides = array<i32>} : memref<32x306xf32, #tpu.memory_space<vmem>>, vector<8x144xf32>,
    %cst_55 = arith.constant 0.000000e+00 : f32
    %101 = vector.broadcast %cst_55 : f32 to vector<8x144xf32>
    %c0_56 = arith.constant 0 : index
    %c0_57 = arith.constant 0 : index
    %c0_58 = arith.constant 0 : index
    %102 = vector.load %arg3[%c0_56, %c0_57, %c0_58] : memref<6x8x16xf32, #tpu.memory_space<vmem>>, vector<1x8x16xf32>
    %103 = vector.shape_cast %102 : vector<1x8x16xf32> to vector<8x16xf32>
    %c16_59 = arith.constant 16 : index
    %c108 = arith.constant 108 : index
    %104 = vector.load %arg11[%c16_59, %c108] : memref<32x306xf32, #tpu.memory_space<vmem>>, vector<16x144xf32>
    %cst_60 = arith.constant dense<0.000000e+00> : vector<8x144xf32>
    %105 = tpu.matmul %103, %104, %cst_60 {dimension_numbers = #tpu.dot_dimension_numbers<[1], [0], [0], [1], [0, 0, 1, 1], [], []>} : vector<8x16xf32>, vector<16x144xf32>, vector<8x144xf32> -> vector<8x144xf32>
    %106 = arith.addf %101, %105 : vector<8x144xf32>
    %c1_61 = arith.constant 1 : index
    %c0_62 = arith.constant 0 : index
    %c0_63 = arith.constant 0 : index
    %107 = vector.load %arg3[%c1_61, %c0_62, %c0_63] : memref<6x8x16xf32, #tpu.memory_space<vmem>>, vector<1x8x16xf32>
    %108 = vector.shape_cast %107 : vector<1x8x16xf32> to vector<8x16xf32>
    %c16_64 = arith.constant 16 : index
    %c109 = arith.constant 109 : index
    %109 = vector.load %arg11[%c16_64, %c109] : memref<32x306xf32, #tpu.memory_space<vmem>>, vector<16x144xf32>
    %cst_65 = arith.constant dense<0.000000e+00> : vector<8x144xf32>
    %110 = tpu.matmul %108, %109, %cst_65 {dimension_numbers = #tpu.dot_dimension_numbers<[1], [0], [0], [1], [0, 0, 1, 1], [], []>} : vector<8x16xf32>, vector<16x144xf32>, vector<8x144xf32> -> vector<8x144xf32>
    %111 = arith.addf %106, %110 : vector<8x144xf32>
    %c2_66 = arith.constant 2 : index
    %c0_67 = arith.constant 0 : index
    %c0_68 = arith.constant 0 : index
    %112 = vector.load %arg3[%c2_66, %c0_67, %c0_68] : memref<6x8x16xf32, #tpu.memory_space<vmem>>, vector<1x8x16xf32>
    %113 = vector.shape_cast %112 : vector<1x8x16xf32> to vector<8x16xf32>
    %c16_69 = arith.constant 16 : index
    %c110 = arith.constant 110 : index
    %114 = vector.load %arg11[%c16_69, %c110] : memref<32x306xf32, #tpu.memory_space<vmem>>, vector<16x144xf32>
    %cst_70 = arith.constant dense<0.000000e+00> : vector<8x144xf32>
    %115 = tpu.matmul %113, %114, %cst_70 {dimension_numbers = #tpu.dot_dimension_numbers<[1], [0], [0], [1], [0, 0, 1, 1], [], []>} : vector<8x16xf32>, vector<16x144xf32>, vector<8x144xf32> -> vector<8x144xf32>
    %116 = arith.addf %111, %115 : vector<8x144xf32>
    %c3_71 = arith.constant 3 : index
    %c0_72 = arith.constant 0 : index
    %c0_73 = arith.constant 0 : index
    %117 = vector.load %arg3[%c3_71, %c0_72, %c0_73] : memref<6x8x16xf32, #tpu.memory_space<vmem>>, vector<1x8x16xf32>
    %118 = vector.shape_cast %117 : vector<1x8x16xf32> to vector<8x16xf32>
    %c16_74 = arith.constant 16 : index
    %c144_75 = arith.constant 144 : index
    %119 = vector.load %arg11[%c16_74, %c144_75] : memref<32x306xf32, #tpu.memory_space<vmem>>, vector<16x144xf32>
    %cst_76 = arith.constant dense<0.000000e+00> : vector<8x144xf32>
    %120 = tpu.matmul %118, %119, %cst_76 {dimension_numbers = #tpu.dot_dimension_numbers<[1], [0], [0], [1], [0, 0, 1, 1], [], []>} : vector<8x16xf32>, vector<16x144xf32>, vector<8x144xf32> -> vector<8x144xf32>
    %121 = arith.addf %116, %120 : vector<8x144xf32>
    %c4_77 = arith.constant 4 : index
    %c0_78 = arith.constant 0 : index
    %c0_79 = arith.constant 0 : index
    %122 = vector.load %arg3[%c4_77, %c0_78, %c0_79] : memref<6x8x16xf32, #tpu.memory_space<vmem>>, vector<1x8x16xf32>
    %123 = vector.shape_cast %122 : vector<1x8x16xf32> to vector<8x16xf32>
    %c16_80 = arith.constant 16 : index
    %c145_81 = arith.constant 145 : index
    %124 = vector.load %arg11[%c16_80, %c145_81] : memref<32x306xf32, #tpu.memory_space<vmem>>, vector<16x144xf32>
    %cst_82 = arith.constant dense<0.000000e+00> : vector<8x144xf32>
    %125 = tpu.matmul %123, %124, %cst_82 {dimension_numbers = #tpu.dot_dimension_numbers<[1], [0], [0], [1], [0, 0, 1, 1], [], []>} : vector<8x16xf32>, vector<16x144xf32>, vector<8x144xf32> -> vector<8x144xf32>
    %126 = arith.addf %121, %125 : vector<8x144xf32>
    %c5_83 = arith.constant 5 : index
    %c0_84 = arith.constant 0 : index
    %c0_85 = arith.constant 0 : index
    %127 = vector.load %arg3[%c5_83, %c0_84, %c0_85] : memref<6x8x16xf32, #tpu.memory_space<vmem>>, vector<1x8x16xf32>
    %128 = vector.shape_cast %127 : vector<1x8x16xf32> to vector<8x16xf32>
    %c16_86 = arith.constant 16 : index
    %c146_87 = arith.constant 146 : index
    %129 = vector.load %arg11[%c16_86, %c146_87] : memref<32x306xf32, #tpu.memory_space<vmem>>, vector<16x144xf32>
    %cst_88 = arith.constant dense<0.000000e+00> : vector<8x144xf32>
    %130 = tpu.matmul %128, %129, %cst_88 {dimension_numbers = #tpu.dot_dimension_numbers<[1], [0], [0], [1], [0, 0, 1, 1], [], []>} : vector<8x16xf32>, vector<16x144xf32>, vector<8x144xf32> -> vector<8x144xf32>
    %131 = arith.addf %126, %130 : vector<8x144xf32>
    %c1_89 = arith.constant 1 : index
    %c0_90 = arith.constant 0 : index
    %c0_91 = arith.constant 0 : index
    %132 = vector.load %arg6[%c1_89, %c0_90, %c0_91] : memref<4x8x1xf32, #tpu.memory_space<vmem>>, vector<1x8x1xf32>
    %133 = vector.shape_cast %132 : vector<1x8x1xf32> to vector<8x1xf32>
    %134 = vector.broadcast %133 : vector<8x1xf32> to vector<8x144xf32>
    %135 = arith.addf %131, %134 : vector<8x144xf32>
    %136 = vector.broadcast %27 : vector<1x144xf32> to vector<8x144xf32>
    %137 = arith.mulf %135, %136 : vector<8x144xf32>
    %cst_92 = arith.constant dense<0.000000e+00> : vector<8xf32>
    %138 = vector.multi_reduction <add>, %137, %cst_92 [1] : vector<8x144xf32> to vector<8xf32>
    %139 = vector.shape_cast %138 : vector<8xf32> to vector<8x1xf32>
    %cst_93 = arith.constant 7.812500e-03 : f32
    %140 = vector.broadcast %cst_93 : f32 to vector<8x1xf32>
    %141 = arith.mulf %139, %140 : vector<8x1xf32>
    %142 = vector.broadcast %141 : vector<8x1xf32> to vector<8x144xf32>
    %143 = arith.subf %135, %142 : vector<8x144xf32>
    %144 = arith.mulf %143, %143 : vector<8x144xf32>
    %145 = vector.broadcast %27 : vector<1x144xf32> to vector<8x144xf32>
    %146 = arith.mulf %144, %145 : vector<8x144xf32>
    %cst_94 = arith.constant dense<0.000000e+00> : vector<8xf32>
    %147 = vector.multi_reduction <add>, %146, %cst_94 [1] : vector<8x144xf32> to vector<8xf32>
    %148 = vector.shape_cast %147 : vector<8xf32> to vector<8x1xf32>
    %cst_95 = arith.constant 7.812500e-03 : f32
    %149 = vector.broadcast %cst_95 : f32 to vector<8x1xf32>
    %150 = arith.mulf %148, %149 : vector<8x1xf32>
    %c1_96 = arith.constant 1 : index
    %c0_97 = arith.constant 0 : index
    %c0_98 = arith.constant 0 : index
    %151 = vector.load %arg7[%c1_96, %c0_97, %c0_98] : memref<4x8x1xf32, #tpu.memory_space<vmem>>, vector<1x8x1xf32>
    %152 = vector.shape_cast %151 : vector<1x8x1xf32> to vector<8x1xf32>
    %cst_99 = arith.constant 9.99999974E-6 : f32
    %153 = vector.broadcast %cst_99 : f32 to vector<8x1xf32>
    %154 = arith.addf %150, %153 : vector<8x1xf32>
    %155 = math.rsqrt %154 : vector<8x1xf32>
    %156 = vector.broadcast %155 : vector<8x1xf32> to vector<8x144xf32>
    %157 = arith.mulf %143, %156 : vector<8x144xf32>
    %158 = vector.broadcast %152 : vector<8x1xf32> to vector<8x144xf32>
    %159 = arith.mulf %158, %157 : vector<8x144xf32>
    %c1_100 = arith.constant 1 : index
    %c0_101 = arith.constant 0 : index
    %c0_102 = arith.constant 0 : index
    %160 = vector.load %arg8[%c1_100, %c0_101, %c0_102] : memref<4x8x1xf32, #tpu.memory_space<vmem>>, vector<1x8x1xf32>
    %161 = vector.shape_cast %160 : vector<1x8x1xf32> to vector<8x1xf32>
    %162 = vector.broadcast %161 : vector<8x1xf32> to vector<8x144xf32>
    %163 = arith.addf %159, %162 : vector<8x144xf32>
    %cst_103 = arith.constant 0.000000e+00 : f32
    %164 = vector.broadcast %cst_103 : f32 to vector<8x144xf32>
    %165 = arith.cmpf ogt, %163, %164 : vector<8x144xf32>
    %c1_104 = arith.constant 1 : index
    %c0_105 = arith.constant 0 : index
    %c0_106 = arith.constant 0 : index
    %166 = vector.load %arg9[%c1_104, %c0_105, %c0_106] : memref<4x8x1xf32, #tpu.memory_space<vmem>>, vector<1x8x1xf32>
    %167 = vector.shape_cast %166 : vector<1x8x1xf32> to vector<8x1xf32>
    %168 = vector.broadcast %167 : vector<8x1xf32> to vector<8x144xf32>
    %169 = arith.mulf %168, %163 : vector<8x144xf32>
    %170 = arith.select %165, %163, %169 : vector<8x144xi1>, vector<8x144xf32>
    %171 = vector.broadcast %27 : vector<1x144xf32> to vector<8x144xf32>
    %172 = arith.mulf %170, %171 : vector<8x144xf32>
    %c8 = arith.constant 8 : index
    %c145_107 = arith.constant 145 : index
    %173 = vector.load %arg11[%c8, %c145_107] : memref<32x306xf32, #tpu.memory_space<vmem>>, vector<8x144xf32>
    tpu.vector_store %arg11[%c8, %c145_107], %172 {strides = array<i32>} : memref<32x306xf32, #tpu.memory_space<vmem>>, vector<8x144xf32>,
    %cst_108 = arith.constant 0.000000e+00 : f32
    %174 = vector.broadcast %cst_108 : f32 to vector<8x144xf32>
    %c0_109 = arith.constant 0 : index
    %c0_110 = arith.constant 0 : index
    %c0_111 = arith.constant 0 : index
    %175 = vector.load %arg4[%c0_109, %c0_110, %c0_111] : memref<6x8x24xf32, #tpu.memory_space<vmem>>, vector<1x8x24xf32>
    %176 = vector.shape_cast %175 : vector<1x8x24xf32> to vector<8x24xf32>
    %c8_112 = arith.constant 8 : index
    %c72 = arith.constant 72 : index
    %177 = vector.load %arg11[%c8_112, %c72] : memref<32x306xf32, #tpu.memory_space<vmem>>, vector<24x144xf32>
    %cst_113 = arith.constant dense<0.000000e+00> : vector<8x144xf32>
    %178 = tpu.matmul %176, %177, %cst_113 {dimension_numbers = #tpu.dot_dimension_numbers<[1], [0], [0], [1], [0, 0, 1, 1], [], []>} : vector<8x24xf32>, vector<24x144xf32>, vector<8x144xf32> -> vector<8x144xf32>
    %179 = arith.addf %174, %178 : vector<8x144xf32>
    %c1_114 = arith.constant 1 : index
    %c0_115 = arith.constant 0 : index
    %c0_116 = arith.constant 0 : index
    %180 = vector.load %arg4[%c1_114, %c0_115, %c0_116] : memref<6x8x24xf32, #tpu.memory_space<vmem>>, vector<1x8x24xf32>
    %181 = vector.shape_cast %180 : vector<1x8x24xf32> to vector<8x24xf32>
    %c8_117 = arith.constant 8 : index
    %c73 = arith.constant 73 : index
    %182 = vector.load %arg11[%c8_117, %c73] : memref<32x306xf32, #tpu.memory_space<vmem>>, vector<24x144xf32>
    %cst_118 = arith.constant dense<0.000000e+00> : vector<8x144xf32>
    %183 = tpu.matmul %181, %182, %cst_118 {dimension_numbers = #tpu.dot_dimension_numbers<[1], [0], [0], [1], [0, 0, 1, 1], [], []>} : vector<8x24xf32>, vector<24x144xf32>, vector<8x144xf32> -> vector<8x144xf32>
    %184 = arith.addf %179, %183 : vector<8x144xf32>
    %c2_119 = arith.constant 2 : index
    %c0_120 = arith.constant 0 : index
    %c0_121 = arith.constant 0 : index
    %185 = vector.load %arg4[%c2_119, %c0_120, %c0_121] : memref<6x8x24xf32, #tpu.memory_space<vmem>>, vector<1x8x24xf32>
    %186 = vector.shape_cast %185 : vector<1x8x24xf32> to vector<8x24xf32>
    %c8_122 = arith.constant 8 : index
    %c74 = arith.constant 74 : index
    %187 = vector.load %arg11[%c8_122, %c74] : memref<32x306xf32, #tpu.memory_space<vmem>>, vector<24x144xf32>
    %cst_123 = arith.constant dense<0.000000e+00> : vector<8x144xf32>
    %188 = tpu.matmul %186, %187, %cst_123 {dimension_numbers = #tpu.dot_dimension_numbers<[1], [0], [0], [1], [0, 0, 1, 1], [], []>} : vector<8x24xf32>, vector<24x144xf32>, vector<8x144xf32> -> vector<8x144xf32>
    %189 = arith.addf %184, %188 : vector<8x144xf32>
    %c3_124 = arith.constant 3 : index
    %c0_125 = arith.constant 0 : index
    %c0_126 = arith.constant 0 : index
    %190 = vector.load %arg4[%c3_124, %c0_125, %c0_126] : memref<6x8x24xf32, #tpu.memory_space<vmem>>, vector<1x8x24xf32>
    %191 = vector.shape_cast %190 : vector<1x8x24xf32> to vector<8x24xf32>
    %c8_127 = arith.constant 8 : index
    %c144_128 = arith.constant 144 : index
    %192 = vector.load %arg11[%c8_127, %c144_128] : memref<32x306xf32, #tpu.memory_space<vmem>>, vector<24x144xf32>
    %cst_129 = arith.constant dense<0.000000e+00> : vector<8x144xf32>
    %193 = tpu.matmul %191, %192, %cst_129 {dimension_numbers = #tpu.dot_dimension_numbers<[1], [0], [0], [1], [0, 0, 1, 1], [], []>} : vector<8x24xf32>, vector<24x144xf32>, vector<8x144xf32> -> vector<8x144xf32>
    %194 = arith.addf %189, %193 : vector<8x144xf32>
    %c4_130 = arith.constant 4 : index
    %c0_131 = arith.constant 0 : index
    %c0_132 = arith.constant 0 : index
    %195 = vector.load %arg4[%c4_130, %c0_131, %c0_132] : memref<6x8x24xf32, #tpu.memory_space<vmem>>, vector<1x8x24xf32>
    %196 = vector.shape_cast %195 : vector<1x8x24xf32> to vector<8x24xf32>
    %c8_133 = arith.constant 8 : index
    %c145_134 = arith.constant 145 : index
    %197 = vector.load %arg11[%c8_133, %c145_134] : memref<32x306xf32, #tpu.memory_space<vmem>>, vector<24x144xf32>
    %cst_135 = arith.constant dense<0.000000e+00> : vector<8x144xf32>
    %198 = tpu.matmul %196, %197, %cst_135 {dimension_numbers = #tpu.dot_dimension_numbers<[1], [0], [0], [1], [0, 0, 1, 1], [], []>} : vector<8x24xf32>, vector<24x144xf32>, vector<8x144xf32> -> vector<8x144xf32>
    %199 = arith.addf %194, %198 : vector<8x144xf32>
    %c5_136 = arith.constant 5 : index
    %c0_137 = arith.constant 0 : index
    %c0_138 = arith.constant 0 : index
    %200 = vector.load %arg4[%c5_136, %c0_137, %c0_138] : memref<6x8x24xf32, #tpu.memory_space<vmem>>, vector<1x8x24xf32>
    %201 = vector.shape_cast %200 : vector<1x8x24xf32> to vector<8x24xf32>
    %c8_139 = arith.constant 8 : index
    %c146_140 = arith.constant 146 : index
    %202 = vector.load %arg11[%c8_139, %c146_140] : memref<32x306xf32, #tpu.memory_space<vmem>>, vector<24x144xf32>
    %cst_141 = arith.constant dense<0.000000e+00> : vector<8x144xf32>
    %203 = tpu.matmul %201, %202, %cst_141 {dimension_numbers = #tpu.dot_dimension_numbers<[1], [0], [0], [1], [0, 0, 1, 1], [], []>} : vector<8x24xf32>, vector<24x144xf32>, vector<8x144xf32> -> vector<8x144xf32>
    %204 = arith.addf %199, %203 : vector<8x144xf32>
    %c2_142 = arith.constant 2 : index
    %c0_143 = arith.constant 0 : index
    %c0_144 = arith.constant 0 : index
    %205 = vector.load %arg6[%c2_142, %c0_143, %c0_144] : memref<4x8x1xf32, #tpu.memory_space<vmem>>, vector<1x8x1xf32>
    %206 = vector.shape_cast %205 : vector<1x8x1xf32> to vector<8x1xf32>
    %207 = vector.broadcast %206 : vector<8x1xf32> to vector<8x144xf32>
    %208 = arith.addf %204, %207 : vector<8x144xf32>
    %209 = vector.broadcast %27 : vector<1x144xf32> to vector<8x144xf32>
    %210 = arith.mulf %208, %209 : vector<8x144xf32>
    %cst_145 = arith.constant dense<0.000000e+00> : vector<8xf32>
    %211 = vector.multi_reduction <add>, %210, %cst_145 [1] : vector<8x144xf32> to vector<8xf32>
    %212 = vector.shape_cast %211 : vector<8xf32> to vector<8x1xf32>
    %cst_146 = arith.constant 7.812500e-03 : f32
    %213 = vector.broadcast %cst_146 : f32 to vector<8x1xf32>
    %214 = arith.mulf %212, %213 : vector<8x1xf32>
    %215 = vector.broadcast %214 : vector<8x1xf32> to vector<8x144xf32>
    %216 = arith.subf %208, %215 : vector<8x144xf32>
    %217 = arith.mulf %216, %216 : vector<8x144xf32>
    %218 = vector.broadcast %27 : vector<1x144xf32> to vector<8x144xf32>
    %219 = arith.mulf %217, %218 : vector<8x144xf32>
    %cst_147 = arith.constant dense<0.000000e+00> : vector<8xf32>
    %220 = vector.multi_reduction <add>, %219, %cst_147 [1] : vector<8x144xf32> to vector<8xf32>
    %221 = vector.shape_cast %220 : vector<8xf32> to vector<8x1xf32>
    %cst_148 = arith.constant 7.812500e-03 : f32
    %222 = vector.broadcast %cst_148 : f32 to vector<8x1xf32>
    %223 = arith.mulf %221, %222 : vector<8x1xf32>
    %c2_149 = arith.constant 2 : index
    %c0_150 = arith.constant 0 : index
    %c0_151 = arith.constant 0 : index
    %224 = vector.load %arg7[%c2_149, %c0_150, %c0_151] : memref<4x8x1xf32, #tpu.memory_space<vmem>>, vector<1x8x1xf32>
    %225 = vector.shape_cast %224 : vector<1x8x1xf32> to vector<8x1xf32>
    %cst_152 = arith.constant 9.99999974E-6 : f32
    %226 = vector.broadcast %cst_152 : f32 to vector<8x1xf32>
    %227 = arith.addf %223, %226 : vector<8x1xf32>
    %228 = math.rsqrt %227 : vector<8x1xf32>
    %229 = vector.broadcast %228 : vector<8x1xf32> to vector<8x144xf32>
    %230 = arith.mulf %216, %229 : vector<8x144xf32>
    %231 = vector.broadcast %225 : vector<8x1xf32> to vector<8x144xf32>
    %232 = arith.mulf %231, %230 : vector<8x144xf32>
    %c2_153 = arith.constant 2 : index
    %c0_154 = arith.constant 0 : index
    %c0_155 = arith.constant 0 : index
    %233 = vector.load %arg8[%c2_153, %c0_154, %c0_155] : memref<4x8x1xf32, #tpu.memory_space<vmem>>, vector<1x8x1xf32>
    %234 = vector.shape_cast %233 : vector<1x8x1xf32> to vector<8x1xf32>
    %235 = vector.broadcast %234 : vector<8x1xf32> to vector<8x144xf32>
    %236 = arith.addf %232, %235 : vector<8x144xf32>
    %cst_156 = arith.constant 0.000000e+00 : f32
    %237 = vector.broadcast %cst_156 : f32 to vector<8x144xf32>
    %238 = arith.cmpf ogt, %236, %237 : vector<8x144xf32>
    %c2_157 = arith.constant 2 : index
    %c0_158 = arith.constant 0 : index
    %c0_159 = arith.constant 0 : index
    %239 = vector.load %arg9[%c2_157, %c0_158, %c0_159] : memref<4x8x1xf32, #tpu.memory_space<vmem>>, vector<1x8x1xf32>
    %240 = vector.shape_cast %239 : vector<1x8x1xf32> to vector<8x1xf32>
    %241 = vector.broadcast %240 : vector<8x1xf32> to vector<8x144xf32>
    %242 = arith.mulf %241, %236 : vector<8x144xf32>
    %243 = arith.select %238, %236, %242 : vector<8x144xi1>, vector<8x144xf32>
    %244 = vector.broadcast %27 : vector<1x144xf32> to vector<8x144xf32>
    %245 = arith.mulf %243, %244 : vector<8x144xf32>
    %c0_160 = arith.constant 0 : index
    %c145_161 = arith.constant 145 : index
    %246 = vector.load %arg11[%c0_160, %c145_161] : memref<32x306xf32, #tpu.memory_space<vmem>>, vector<8x144xf32>
    tpu.vector_store %arg11[%c0_160, %c145_161], %245 {strides = array<i32>} : memref<32x306xf32, #tpu.memory_space<vmem>>, vector<8x144xf32>,
    %cst_162 = arith.constant 0.000000e+00 : f32
    %247 = vector.broadcast %cst_162 : f32 to vector<8x144xf32>
    %c0_163 = arith.constant 0 : index
    %c0_164 = arith.constant 0 : index
    %c0_165 = arith.constant 0 : index
    %248 = vector.load %arg5[%c0_163, %c0_164, %c0_165] : memref<6x8x32xf32, #tpu.memory_space<vmem>>, vector<1x8x32xf32>
    %249 = vector.shape_cast %248 : vector<1x8x32xf32> to vector<8x32xf32>
    %c0_166 = arith.constant 0 : index
    %c0_167 = arith.constant 0 : index
    %250 = vector.load %arg11[%c0_166, %c0_167] : memref<32x306xf32, #tpu.memory_space<vmem>>, vector<32x144xf32>
    %cst_168 = arith.constant dense<0.000000e+00> : vector<8x144xf32>
    %251 = tpu.matmul %249, %250, %cst_168 {dimension_numbers = #tpu.dot_dimension_numbers<[1], [0], [0], [1], [0, 0, 1, 1], [], []>} : vector<8x32xf32>, vector<32x144xf32>, vector<8x144xf32> -> vector<8x144xf32>
    %252 = arith.addf %247, %251 : vector<8x144xf32>
    %c1_169 = arith.constant 1 : index
    %c0_170 = arith.constant 0 : index
    %c0_171 = arith.constant 0 : index
    %253 = vector.load %arg5[%c1_169, %c0_170, %c0_171] : memref<6x8x32xf32, #tpu.memory_space<vmem>>, vector<1x8x32xf32>
    %254 = vector.shape_cast %253 : vector<1x8x32xf32> to vector<8x32xf32>
    %c0_172 = arith.constant 0 : index
    %c1_173 = arith.constant 1 : index
    %255 = vector.load %arg11[%c0_172, %c1_173] : memref<32x306xf32, #tpu.memory_space<vmem>>, vector<32x144xf32>
    %cst_174 = arith.constant dense<0.000000e+00> : vector<8x144xf32>
    %256 = tpu.matmul %254, %255, %cst_174 {dimension_numbers = #tpu.dot_dimension_numbers<[1], [0], [0], [1], [0, 0, 1, 1], [], []>} : vector<8x32xf32>, vector<32x144xf32>, vector<8x144xf32> -> vector<8x144xf32>
    %257 = arith.addf %252, %256 : vector<8x144xf32>
    %c2_175 = arith.constant 2 : index
    %c0_176 = arith.constant 0 : index
    %c0_177 = arith.constant 0 : index
    %258 = vector.load %arg5[%c2_175, %c0_176, %c0_177] : memref<6x8x32xf32, #tpu.memory_space<vmem>>, vector<1x8x32xf32>
    %259 = vector.shape_cast %258 : vector<1x8x32xf32> to vector<8x32xf32>
    %c0_178 = arith.constant 0 : index
    %c2_179 = arith.constant 2 : index
    %260 = vector.load %arg11[%c0_178, %c2_179] : memref<32x306xf32, #tpu.memory_space<vmem>>, vector<32x144xf32>
    %cst_180 = arith.constant dense<0.000000e+00> : vector<8x144xf32>
    %261 = tpu.matmul %259, %260, %cst_180 {dimension_numbers = #tpu.dot_dimension_numbers<[1], [0], [0], [1], [0, 0, 1, 1], [], []>} : vector<8x32xf32>, vector<32x144xf32>, vector<8x144xf32> -> vector<8x144xf32>
    %262 = arith.addf %257, %261 : vector<8x144xf32>
    %c3_181 = arith.constant 3 : index
    %c0_182 = arith.constant 0 : index
    %c0_183 = arith.constant 0 : index
    %263 = vector.load %arg5[%c3_181, %c0_182, %c0_183] : memref<6x8x32xf32, #tpu.memory_space<vmem>>, vector<1x8x32xf32>
    %264 = vector.shape_cast %263 : vector<1x8x32xf32> to vector<8x32xf32>
    %c0_184 = arith.constant 0 : index
    %c144_185 = arith.constant 144 : index
    %265 = vector.load %arg11[%c0_184, %c144_185] : memref<32x306xf32, #tpu.memory_space<vmem>>, vector<32x144xf32>
    %cst_186 = arith.constant dense<0.000000e+00> : vector<8x144xf32>
    %266 = tpu.matmul %264, %265, %cst_186 {dimension_numbers = #tpu.dot_dimension_numbers<[1], [0], [0], [1], [0, 0, 1, 1], [], []>} : vector<8x32xf32>, vector<32x144xf32>, vector<8x144xf32> -> vector<8x144xf32>
    %267 = arith.addf %262, %266 : vector<8x144xf32>
    %c4_187 = arith.constant 4 : index
    %c0_188 = arith.constant 0 : index
    %c0_189 = arith.constant 0 : index
    %268 = vector.load %arg5[%c4_187, %c0_188, %c0_189] : memref<6x8x32xf32, #tpu.memory_space<vmem>>, vector<1x8x32xf32>
    %269 = vector.shape_cast %268 : vector<1x8x32xf32> to vector<8x32xf32>
    %c0_190 = arith.constant 0 : index
    %c145_191 = arith.constant 145 : index
    %270 = vector.load %arg11[%c0_190, %c145_191] : memref<32x306xf32, #tpu.memory_space<vmem>>, vector<32x144xf32>
    %cst_192 = arith.constant dense<0.000000e+00> : vector<8x144xf32>
    %271 = tpu.matmul %269, %270, %cst_192 {dimension_numbers = #tpu.dot_dimension_numbers<[1], [0], [0], [1], [0, 0, 1, 1], [], []>} : vector<8x32xf32>, vector<32x144xf32>, vector<8x144xf32> -> vector<8x144xf32>
    %272 = arith.addf %267, %271 : vector<8x144xf32>
    %c5_193 = arith.constant 5 : index
    %c0_194 = arith.constant 0 : index
    %c0_195 = arith.constant 0 : index
    %273 = vector.load %arg5[%c5_193, %c0_194, %c0_195] : memref<6x8x32xf32, #tpu.memory_space<vmem>>, vector<1x8x32xf32>
    %274 = vector.shape_cast %273 : vector<1x8x32xf32> to vector<8x32xf32>
    %c0_196 = arith.constant 0 : index
    %c146_197 = arith.constant 146 : index
    %275 = vector.load %arg11[%c0_196, %c146_197] : memref<32x306xf32, #tpu.memory_space<vmem>>, vector<32x144xf32>
    %cst_198 = arith.constant dense<0.000000e+00> : vector<8x144xf32>
    %276 = tpu.matmul %274, %275, %cst_198 {dimension_numbers = #tpu.dot_dimension_numbers<[1], [0], [0], [1], [0, 0, 1, 1], [], []>} : vector<8x32xf32>, vector<32x144xf32>, vector<8x144xf32> -> vector<8x144xf32>
    %277 = arith.addf %272, %276 : vector<8x144xf32>
    %c3_199 = arith.constant 3 : index
    %c0_200 = arith.constant 0 : index
    %c0_201 = arith.constant 0 : index
    %278 = vector.load %arg6[%c3_199, %c0_200, %c0_201] : memref<4x8x1xf32, #tpu.memory_space<vmem>>, vector<1x8x1xf32>
    %279 = vector.shape_cast %278 : vector<1x8x1xf32> to vector<8x1xf32>
    %280 = vector.broadcast %279 : vector<8x1xf32> to vector<8x144xf32>
    %281 = arith.addf %277, %280 : vector<8x144xf32>
    %282 = vector.broadcast %27 : vector<1x144xf32> to vector<8x144xf32>
    %283 = arith.mulf %281, %282 : vector<8x144xf32>
    %cst_202 = arith.constant dense<0.000000e+00> : vector<8xf32>
    %284 = vector.multi_reduction <add>, %283, %cst_202 [1] : vector<8x144xf32> to vector<8xf32>
    %285 = vector.shape_cast %284 : vector<8xf32> to vector<8x1xf32>
    %cst_203 = arith.constant 7.812500e-03 : f32
    %286 = vector.broadcast %cst_203 : f32 to vector<8x1xf32>
    %287 = arith.mulf %285, %286 : vector<8x1xf32>
    %288 = vector.broadcast %287 : vector<8x1xf32> to vector<8x144xf32>
    %289 = arith.subf %281, %288 : vector<8x144xf32>
    %290 = arith.mulf %289, %289 : vector<8x144xf32>
    %291 = vector.broadcast %27 : vector<1x144xf32> to vector<8x144xf32>
    %292 = arith.mulf %290, %291 : vector<8x144xf32>
    %cst_204 = arith.constant dense<0.000000e+00> : vector<8xf32>
    %293 = vector.multi_reduction <add>, %292, %cst_204 [1] : vector<8x144xf32> to vector<8xf32>
    %294 = vector.shape_cast %293 : vector<8xf32> to vector<8x1xf32>
    %cst_205 = arith.constant 7.812500e-03 : f32
    %295 = vector.broadcast %cst_205 : f32 to vector<8x1xf32>
    %296 = arith.mulf %294, %295 : vector<8x1xf32>
    %c3_206 = arith.constant 3 : index
    %c0_207 = arith.constant 0 : index
    %c0_208 = arith.constant 0 : index
    %297 = vector.load %arg7[%c3_206, %c0_207, %c0_208] : memref<4x8x1xf32, #tpu.memory_space<vmem>>, vector<1x8x1xf32>
    %298 = vector.shape_cast %297 : vector<1x8x1xf32> to vector<8x1xf32>
    %cst_209 = arith.constant 9.99999974E-6 : f32
    %299 = vector.broadcast %cst_209 : f32 to vector<8x1xf32>
    %300 = arith.addf %296, %299 : vector<8x1xf32>
    %301 = math.rsqrt %300 : vector<8x1xf32>
    %302 = vector.broadcast %301 : vector<8x1xf32> to vector<8x144xf32>
    %303 = arith.mulf %289, %302 : vector<8x144xf32>
    %304 = vector.broadcast %298 : vector<8x1xf32> to vector<8x144xf32>
    %305 = arith.mulf %304, %303 : vector<8x144xf32>
    %c3_210 = arith.constant 3 : index
    %c0_211 = arith.constant 0 : index
    %c0_212 = arith.constant 0 : index
    %306 = vector.load %arg8[%c3_210, %c0_211, %c0_212] : memref<4x8x1xf32, #tpu.memory_space<vmem>>, vector<1x8x1xf32>
    %307 = vector.shape_cast %306 : vector<1x8x1xf32> to vector<8x1xf32>
    %308 = vector.broadcast %307 : vector<8x1xf32> to vector<8x144xf32>
    %309 = arith.addf %305, %308 : vector<8x144xf32>
    %cst_213 = arith.constant 0.000000e+00 : f32
    %310 = vector.broadcast %cst_213 : f32 to vector<8x144xf32>
    %311 = arith.cmpf ogt, %309, %310 : vector<8x144xf32>
    %c3_214 = arith.constant 3 : index
    %c0_215 = arith.constant 0 : index
    %c0_216 = arith.constant 0 : index
    %312 = vector.load %arg9[%c3_214, %c0_215, %c0_216] : memref<4x8x1xf32, #tpu.memory_space<vmem>>, vector<1x8x1xf32>
    %313 = vector.shape_cast %312 : vector<1x8x1xf32> to vector<8x1xf32>
    %314 = vector.broadcast %313 : vector<8x1xf32> to vector<8x144xf32>
    %315 = arith.mulf %314, %309 : vector<8x144xf32>
    %316 = arith.select %311, %309, %315 : vector<8x144xi1>, vector<8x144xf32>
    %c0_217 = arith.constant 0 : index
    %c0_218 = arith.constant 0 : index
    %c0_219 = arith.constant 0 : index
    %317 = vector.load %arg10[%c0_217, %c0_218, %c0_219] : memref<1x8x144xf32, #tpu.memory_space<vmem>>, vector<1x8x144xf32>
    %318 = vector.shape_cast %317 : vector<1x8x144xf32> to vector<8x144xf32>
    %319 = vector.shape_cast %316 : vector<8x144xf32> to vector<1x8x144xf32>
    tpu.vector_store %arg10[%c0_217, %c0_218, %c0_219], %319 {strides = array<i32>} : memref<1x8x144xf32, #tpu.memory_space<vmem>>, vector<1x8x144xf32>,
    return
  }
  func.func @transform_0(%arg0: i32) -> (i32, i32, i32) {
    %c0_i32 = arith.constant 0 : i32
    %c0_i32_0 = arith.constant 0 : i32
    %c0_i32_1 = arith.constant 0 : i32
    return %arg0, %c0_i32, %c0_i32_0 : i32, i32, i32
  }
  func.func @transform_1(%arg0: i32) -> (i32, i32, i32) {
    %c0_i32 = arith.constant 0 : i32
    %c0_i32_0 = arith.constant 0 : i32
    %c0_i32_1 = arith.constant 0 : i32
    %c0_i32_2 = arith.constant 0 : i32
    return %c0_i32, %c0_i32_0, %c0_i32_1 : i32, i32, i32
  }
  func.func @transform_2(%arg0: i32) -> (i32, i32, i32) {
    %c0_i32 = arith.constant 0 : i32
    %c0_i32_0 = arith.constant 0 : i32
    %c0_i32_1 = arith.constant 0 : i32
    %c0_i32_2 = arith.constant 0 : i32
    return %c0_i32, %c0_i32_0, %c0_i32_1 : i32, i32, i32
  }
  func.func @transform_3(%arg0: i32) -> (i32, i32, i32) {
    %c0_i32 = arith.constant 0 : i32
    %c0_i32_0 = arith.constant 0 : i32
    %c0_i32_1 = arith.constant 0 : i32
    %c0_i32_2 = arith.constant 0 : i32
    return %c0_i32, %c0_i32_0, %c0_i32_1 : i32, i32, i32
  }
  func.func @transform_4(%arg0: i32) -> (i32, i32, i32) {
    %c0_i32 = arith.constant 0 : i32
    %c0_i32_0 = arith.constant 0 : i32
    %c0_i32_1 = arith.constant 0 : i32
    %c0_i32_2 = arith.constant 0 : i32
    return %c0_i32, %c0_i32_0, %c0_i32_1 : i32, i32, i32
  }
  func.func @transform_5(%arg0: i32) -> (i32, i32, i32) {
    %c0_i32 = arith.constant 0 : i32
    %c0_i32_0 = arith.constant 0 : i32
    %c0_i32_1 = arith.constant 0 : i32
    %c0_i32_2 = arith.constant 0 : i32
    return %c0_i32, %c0_i32_0, %c0_i32_1 : i32, i32, i32
  }
  func.func @transform_6(%arg0: i32) -> (i32, i32, i32) {
    %c0_i32 = arith.constant 0 : i32
    %c0_i32_0 = arith.constant 0 : i32
    %c0_i32_1 = arith.constant 0 : i32
    %c0_i32_2 = arith.constant 0 : i32
    return %c0_i32, %c0_i32_0, %c0_i32_1 : i32, i32, i32
  }
  func.func @transform_7(%arg0: i32) -> (i32, i32, i32) {
    %c0_i32 = arith.constant 0 : i32
    %c0_i32_0 = arith.constant 0 : i32
    %c0_i32_1 = arith.constant 0 : i32
    %c0_i32_2 = arith.constant 0 : i32
    return %c0_i32, %c0_i32_0, %c0_i32_1 : i32, i32, i32
  }
  func.func @transform_8(%arg0: i32) -> (i32, i32, i32) {
    %c0_i32 = arith.constant 0 : i32
    %c0_i32_0 = arith.constant 0 : i32
    %c0_i32_1 = arith.constant 0 : i32
    %c0_i32_2 = arith.constant 0 : i32
    return %c0_i32, %c0_i32_0, %c0_i32_1 : i32, i32, i32
  }
  func.func @transform_9(%arg0: i32) -> (i32, i32, i32) {
    %c0_i32 = arith.constant 0 : i32
    %c0_i32_0 = arith.constant 0 : i32
    %c0_i32_1 = arith.constant 0 : i32
    return %arg0, %c0_i32, %c0_i32_0 : i32, i32, i32
  }
}

</mosaic_0001>

<llo_original>
// kernel: dense_block_v2.1
$region0: #{dense_block_v2.1}
  #allocation0 [shape = 'u32[]', space=smem, size = 0x4, offset = 0x4, fixed_abs, tag = 'smem constant byte address 0x4 - core index']
  #allocation1 [shape = 'u32[144,128]{1,0:T(1,128)}', space=vmem, size = 0x12000, scoped, tag = 'internal scratch']
  #allocation2 [shape = 'f32[32,306]{1,0:T(8,128)}', space=vmem, size = 0xc000, scoped, tag = 'scratch operand']
  %s0 = inlined_call_operand.vmem [shape: f32[2,8,144], index: 0, kind: input, shape index: {}]
  %s1 = inlined_call_operand.vmem [shape: f32[6,8,8], index: 1, kind: input, shape index: {}]
  %s2 = inlined_call_operand.vmem [shape: f32[6,8,16], index: 2, kind: input, shape index: {}]
  %s3 = inlined_call_operand.vmem [shape: f32[6,8,24], index: 3, kind: input, shape index: {}]
  %s4 = inlined_call_operand.vmem [shape: f32[6,8,32], index: 4, kind: input, shape index: {}]
  %s5 = inlined_call_operand.vmem [shape: f32[4,8,1], index: 5, kind: input, shape index: {}]
  %s6 = inlined_call_operand.vmem [shape: f32[4,8,1], index: 6, kind: input, shape index: {}]
  %s7 = inlined_call_operand.vmem [shape: f32[4,8,1], index: 7, kind: input, shape index: {}]
  %s8 = inlined_call_operand.vmem [shape: f32[4,8,1], index: 8, kind: input, shape index: {}]
  %s9 = inlined_call_operand.vmem [shape: f32[2,8,144], index: 9, kind: output, shape index: {}]
  %s10 = sld [smem:[#allocation0]]
  $region69: #{dense_block_v2.1} parent=0
    _
  %s12 = ssub.s32 1, %s10
  %s13 = scalar_select 0, %s12, %s10
  loop: start=0, step=1, limit=4
  $region2: #{dense_block_v2.1} parent=0 // loop_pre_header
    _
  $region3: #{dense_block_v2.1} parent=0 // loop_header
    %s15 = sphi 0, %s19
    %p16 = scmp.ge.s32.totalorder %s15, 4
    %s25 = sphi 0, %s27
    %s28 = sphi 0, %s25
    %s29 = sphi 0, %s28
    %s45 = sphi 0, %s29
    %s49 = sphi 0, %s49
    %s51 = sphi 0, %s49
    %s52 = sphi 0, %s51
    %s66 = sphi 0, %s52
    %s70 = sphi 0, %s70
    %s72 = sphi 0, %s70
    %s73 = sphi 0, %s72
    %s87 = sphi 0, %s73
    %s91 = sphi 0, %s91
    %s93 = sphi 0, %s91
    %s94 = sphi 0, %s93
    %s108 = sphi 0, %s94
    %s112 = sphi 0, %s112
    %s114 = sphi 0, %s112
    %s115 = sphi 0, %s114
    %s129 = sphi 0, %s115
    %s133 = sphi 0, %s133
    %s135 = sphi 0, %s133
    %s136 = sphi 0, %s135
    %s150 = sphi 0, %s136
    %s154 = sphi 0, %s154
    %s156 = sphi 0, %s154
    %s157 = sphi 0, %s156
    %s171 = sphi 0, %s157
    %s175 = sphi 0, %s175
    %s177 = sphi 0, %s175
    %s178 = sphi 0, %s177
    %s192 = sphi 0, %s178
    %s196 = sphi 0, %s196
    %s198 = sphi 0, %s196
    %s199 = sphi 0, %s198
    %s213 = sphi 0, %s199
    %s219 = sphi 0, %s221
    %s222 = sphi 0, %s219
    %s223 = sphi 0, %s222
    %s239 = sphi 0, %s223
  $region4: #{dense_block_v2.1} parent=0 // loop_header_branch
    %18 = sbr.rel (%p16) target = $region8
  $region5: #{dense_block_v2.1} parent=0 // loop_body
    %s20 = ssub.s32 %s15, 1
    %s21 = ssub.s32 %s15, 2
    %s22 = sadd.s32 %s15, 1
    %s23 = ssub.s32 %s15, %s22
    %p24 = scmp.eq.s32.totalorder %s23, 0
    %s26 = sadd.s32 %s25, 1
    %s27 = scalar_select %p24, %s25, %s26
    %p30 = pneg %p24
    %p31 = scmp.eq.s32.totalorder %s15, 1
    %p32 = por %p30, %p31
    %p33 = scmp.ne.s32.totalorder %s25, %s28
    %p34 = scmp.eq.s32.totalorder %s15, 0
    %p35 = por %p33, %p34
    %p36 = scmp.ne.s32.totalorder %s25, %s28
    %p37 = scmp.eq.s32.totalorder %s20, 1
    %p38 = por %p36, %p37
    %p39 = scmp.ne.s32.totalorder %s28, %s29
    %p40 = scmp.eq.s32.totalorder %s20, 0
    %p41 = por %p39, %p40
    %p42 = scmp.ne.s32.totalorder %s28, %s29
    %p43 = scmp.eq.s32.totalorder %s21, 1
    %p44 = por %p42, %p43
    %p46 = scmp.ne.s32.totalorder %s29, %s45
    %p47 = scmp.eq.s32.totalorder %s21, 0
    %p48 = por %p46, %p47
    %s50 = sadd.s32 %s49, 1
    %p53 = scmp.eq.s32.totalorder %s15, 1
    %p54 = scmp.ne.s32.totalorder %s49, %s51
    %p55 = scmp.eq.s32.totalorder %s15, 0
    %p56 = por %p54, %p55
    %p57 = scmp.ne.s32.totalorder %s49, %s51
    %p58 = scmp.eq.s32.totalorder %s20, 1
    %p59 = por %p57, %p58
    %p60 = scmp.ne.s32.totalorder %s51, %s52
    %p61 = scmp.eq.s32.totalorder %s20, 0
    %p62 = por %p60, %p61
    %p63 = scmp.ne.s32.totalorder %s51, %s52
    %p64 = scmp.eq.s32.totalorder %s21, 1
    %p65 = por %p63, %p64
    %p67 = scmp.ne.s32.totalorder %s52, %s66
    %p68 = scmp.eq.s32.totalorder %s21, 0
    %p69 = por %p67, %p68
    %s71 = sadd.s32 %s70, 1
    %p74 = scmp.eq.s32.totalorder %s15, 1
    %p75 = scmp.ne.s32.totalorder %s70, %s72
    %p76 = scmp.eq.s32.totalorder %s15, 0
    %p77 = por %p75, %p76
    %p78 = scmp.ne.s32.totalorder %s70, %s72
    %p79 = scmp.eq.s32.totalorder %s20, 1
    %p80 = por %p78, %p79
    %p81 = scmp.ne.s32.totalorder %s72, %s73
    %p82 = scmp.eq.s32.totalorder %s20, 0
    %p83 = por %p81, %p82
    %p84 = scmp.ne.s32.totalorder %s72, %s73
    %p85 = scmp.eq.s32.totalorder %s21, 1
    %p86 = por %p84, %p85
    %p88 = scmp.ne.s32.totalorder %s73, %s87
    %p89 = scmp.eq.s32.totalorder %s21, 0
    %p90 = por %p88, %p89
    %s92 = sadd.s32 %s91, 1
    %p95 = scmp.eq.s32.totalorder %s15, 1
    %p96 = scmp.ne.s32.totalorder %s91, %s93
    %p97 = scmp.eq.s32.totalorder %s15, 0
    %p98 = por %p96, %p97
    %p99 = scmp.ne.s32.totalorder %s91, %s93
    %p100 = scmp.eq.s32.totalorder %s20, 1
    %p101 = por %p99, %p100
    %p102 = scmp.ne.s32.totalorder %s93, %s94
    %p103 = scmp.eq.s32.totalorder %s20, 0
    %p104 = por %p102, %p103
    %p105 = scmp.ne.s32.totalorder %s93, %s94
    %p106 = scmp.eq.s32.totalorder %s21, 1
    %p107 = por %p105, %p106
    %p109 = scmp.ne.s32.totalorder %s94, %s108
    %p110 = scmp.eq.s32.totalorder %s21, 0
    %p111 = por %p109, %p110
    %s113 = sadd.s32 %s112, 1
    %p116 = scmp.eq.s32.totalorder %s15, 1
    %p117 = scmp.ne.s32.totalorder %s112, %s114
    %p118 = scmp.eq.s32.totalorder %s15, 0
    %p119 = por %p117, %p118
    %p120 = scmp.ne.s32.totalorder %s112, %s114
    %p121 = scmp.eq.s32.totalorder %s20, 1
    %p122 = por %p120, %p121
    %p123 = scmp.ne.s32.totalorder %s114, %s115
    %p124 = scmp.eq.s32.totalorder %s20, 0
    %p125 = por %p123, %p124
    %p126 = scmp.ne.s32.totalorder %s114, %s115
    %p127 = scmp.eq.s32.totalorder %s21, 1
    %p128 = por %p126, %p127
    %p130 = scmp.ne.s32.totalorder %s115, %s129
    %p131 = scmp.eq.s32.totalorder %s21, 0
    %p132 = por %p130, %p131
    %s134 = sadd.s32 %s133, 1
    %p137 = scmp.eq.s32.totalorder %s15, 1
    %p138 = scmp.ne.s32.totalorder %s133, %s135
    %p139 = scmp.eq.s32.totalorder %s15, 0
    %p140 = por %p138, %p139
    %p141 = scmp.ne.s32.totalorder %s133, %s135
    %p142 = scmp.eq.s32.totalorder %s20, 1
    %p143 = por %p141, %p142
    %p144 = scmp.ne.s32.totalorder %s135, %s136
    %p145 = scmp.eq.s32.totalorder %s20, 0
    %p146 = por %p144, %p145
    %p147 = scmp.ne.s32.totalorder %s135, %s136
    %p148 = scmp.eq.s32.totalorder %s21, 1
    %p149 = por %p147, %p148
    %p151 = scmp.ne.s32.totalorder %s136, %s150
    %p152 = scmp.eq.s32.totalorder %s21, 0
    %p153 = por %p151, %p152
    %s155 = sadd.s32 %s154, 1
    %p158 = scmp.eq.s32.totalorder %s15, 1
    %p159 = scmp.ne.s32.totalorder %s154, %s156
    %p160 = scmp.eq.s32.totalorder %s15, 0
    %p161 = por %p159, %p160
    %p162 = scmp.ne.s32.totalorder %s154, %s156
    %p163 = scmp.eq.s32.totalorder %s20, 1
    %p164 = por %p162, %p163
    %p165 = scmp.ne.s32.totalorder %s156, %s157
    %p166 = scmp.eq.s32.totalorder %s20, 0
    %p167 = por %p165, %p166
    %p168 = scmp.ne.s32.totalorder %s156, %s157
    %p169 = scmp.eq.s32.totalorder %s21, 1
    %p170 = por %p168, %p169
    %p172 = scmp.ne.s32.totalorder %s157, %s171
    %p173 = scmp.eq.s32.totalorder %s21, 0
    %p174 = por %p172, %p173
    %s176 = sadd.s32 %s175, 1
    %p179 = scmp.eq.s32.totalorder %s15, 1
    %p180 = scmp.ne.s32.totalorder %s175, %s177
    %p181 = scmp.eq.s32.totalorder %s15, 0
    %p182 = por %p180, %p181
    %p183 = scmp.ne.s32.totalorder %s175, %s177
    %p184 = scmp.eq.s32.totalorder %s20, 1
    %p185 = por %p183, %p184
    %p186 = scmp.ne.s32.totalorder %s177, %s178
    %p187 = scmp.eq.s32.totalorder %s20, 0
    %p188 = por %p186, %p187
    %p189 = scmp.ne.s32.totalorder %s177, %s178
    %p190 = scmp.eq.s32.totalorder %s21, 1
    %p191 = por %p189, %p190
    %p193 = scmp.ne.s32.totalorder %s178, %s192
    %p194 = scmp.eq.s32.totalorder %s21, 0
    %p195 = por %p193, %p194
    %s197 = sadd.s32 %s196, 1
    %p200 = scmp.eq.s32.totalorder %s15, 1
    %p201 = scmp.ne.s32.totalorder %s196, %s198
    %p202 = scmp.eq.s32.totalorder %s15, 0
    %p203 = por %p201, %p202
    %p204 = scmp.ne.s32.totalorder %s196, %s198
    %p205 = scmp.eq.s32.totalorder %s20, 1
    %p206 = por %p204, %p205
    %p207 = scmp.ne.s32.totalorder %s198, %s199
    %p208 = scmp.eq.s32.totalorder %s20, 0
    %p209 = por %p207, %p208
    %p210 = scmp.ne.s32.totalorder %s198, %s199
    %p211 = scmp.eq.s32.totalorder %s21, 1
    %p212 = por %p210, %p211
    %p214 = scmp.ne.s32.totalorder %s199, %s213
    %p215 = scmp.eq.s32.totalorder %s21, 0
    %p216 = por %p214, %p215
    %s217 = ssub.s32 %s15, %s22
    %p218 = scmp.eq.s32.totalorder %s217, 0
    %s220 = sadd.s32 %s219, 1
    %s221 = scalar_select %p218, %s219, %s220
    %p224 = pneg %p218
    %p225 = scmp.eq.s32.totalorder %s15, 1
    %p226 = por %p224, %p225
    %p227 = scmp.ne.s32.totalorder %s219, %s222
    %p228 = scmp.eq.s32.totalorder %s15, 0
    %p229 = por %p227, %p228
    %p230 = scmp.ne.s32.totalorder %s219, %s222
    %p231 = scmp.eq.s32.totalorder %s20, 1
    %p232 = por %p230, %p231
    %p233 = scmp.ne.s32.totalorder %s222, %s223
    %p234 = scmp.eq.s32.totalorder %s20, 0
    %p235 = por %p233, %p234
    %p236 = scmp.ne.s32.totalorder %s222, %s223
    %p237 = scmp.eq.s32.totalorder %s21, 1
    %p238 = por %p236, %p237
    %p240 = scmp.ne.s32.totalorder %s223, %s239
    %p241 = scmp.eq.s32.totalorder %s21, 0
    %p242 = por %p240, %p241
    %p243 = scmp.le.s32.totalorder 1, %s15
    %p244 = scmp.lt.s32.totalorder %s15, 3
    %p245 = pnand %p243, %p244
    %p246 = pneg %p245
    // Predicated region
    $region9: #{dense_block_v2.1} parent=5 // pred_check
      _
    $region10: #{dense_block_v2.1} parent=5 // pred_check_branch
      %248 = sbr.rel (%p245) target = $region12
    $region11: #{dense_block_v2.1} parent=5 // pred_region
      %s249 = ssub.s32 %s15, 1
      // Predicated region
      $region13: #{dense_block_v2.1} parent=11 // pred_check
        %p250 = pneg %p62
      $region14: #{dense_block_v2.1} parent=11 // pred_check_branch
        %252 = sbr.rel (%p250) target = $region16
      $region15: #{dense_block_v2.1} parent=11 // pred_region
        _
      $region16: #{dense_block_v2.1} parent=11 // pred_fallthru
        _
      // Predicated region
      $region17: #{dense_block_v2.1} parent=11 // pred_check
        %p253 = pneg %p83
      $region18: #{dense_block_v2.1} parent=11 // pred_check_branch
        %255 = sbr.rel (%p253) target = $region20
      $region19: #{dense_block_v2.1} parent=11 // pred_region
        _
      $region20: #{dense_block_v2.1} parent=11 // pred_fallthru
        _
      // Predicated region
      $region21: #{dense_block_v2.1} parent=11 // pred_check
        %p256 = pneg %p104
      $region22: #{dense_block_v2.1} parent=11 // pred_check_branch
        %258 = sbr.rel (%p256) target = $region24
      $region23: #{dense_block_v2.1} parent=11 // pred_region
        _
      $region24: #{dense_block_v2.1} parent=11 // pred_fallthru
        _
      // Predicated region
      $region25: #{dense_block_v2.1} parent=11 // pred_check
        %p259 = pneg %p125
      $region26: #{dense_block_v2.1} parent=11 // pred_check_branch
        %261 = sbr.rel (%p259) target = $region28
      $region27: #{dense_block_v2.1} parent=11 // pred_region
        _
      $region28: #{dense_block_v2.1} parent=11 // pred_fallthru
        _
      // Predicated region
      $region29: #{dense_block_v2.1} parent=11 // pred_check
        %p262 = pneg %p146
      $region30: #{dense_block_v2.1} parent=11 // pred_check_branch
        %264 = sbr.rel (%p262) target = $region32
      $region31: #{dense_block_v2.1} parent=11 // pred_region
        _
      $region32: #{dense_block_v2.1} parent=11 // pred_fallthru
        _
      // Predicated region
      $region33: #{dense_block_v2.1} parent=11 // pred_check
        %p265 = pneg %p167
      $region34: #{dense_block_v2.1} parent=11 // pred_check_branch
        %267 = sbr.rel (%p265) target = $region36
      $region35: #{dense_block_v2.1} parent=11 // pred_region
        _
      $region36: #{dense_block_v2.1} parent=11 // pred_fallthru
        _
      // Predicated region
      $region37: #{dense_block_v2.1} parent=11 // pred_check
        %p268 = pneg %p188
      $region38: #{dense_block_v2.1} parent=11 // pred_check_branch
        %270 = sbr.rel (%p268) target = $region40
      $region39: #{dense_block_v2.1} parent=11 // pred_region
        _
      $region40: #{dense_block_v2.1} parent=11 // pred_fallthru
        _
      // Predicated region
      $region41: #{dense_block_v2.1} parent=11 // pred_check
        %p271 = pneg %p209
      $region42: #{dense_block_v2.1} parent=11 // pred_check_branch
        %273 = sbr.rel (%p271) target = $region44
      $region43: #{dense_block_v2.1} parent=11 // pred_region
        _
      $region44: #{dense_block_v2.1} parent=11 // pred_fallthru
        _
    $region12: #{dense_block_v2.1} parent=5 // pred_fallthru
      _
    %p274 = scmp.lt.s32.totalorder %s15, 2
    // Predicated region
    $region45: #{dense_block_v2.1} parent=5 // pred_check
      %p275 = pneg %p274
    $region46: #{dense_block_v2.1} parent=5 // pred_check_branch
      %277 = sbr.rel (%p275) target = $region48
    $region47: #{dense_block_v2.1} parent=5 // pred_region
      // Predicated region
      $region49: #{dense_block_v2.1} parent=47 // pred_check
        %p278 = pneg %p35
      $region50: #{dense_block_v2.1} parent=47 // pred_check_branch
        %280 = sbr.rel (%p278) target = $region52
      $region51: #{dense_block_v2.1} parent=47 // pred_region
        %p281 = scmp.lt.s32.totalorder %s15, 1
        %s282 = scalar_select %p281, %s15, 1
        %s283 = smul.addr %s282, 2
        %s284 = smul.addr %s283, 8
        %s285 = scalar_lea.vmem %s0, %s284
      $region52: #{dense_block_v2.1} parent=47 // pred_fallthru
        _
    $region48: #{dense_block_v2.1} parent=5 // pred_fallthru
      _
    %p286 = scmp.le.s32.totalorder 1, %s15
    %p287 = scmp.lt.s32.totalorder %s15, 3
    %p288 = pnand %p286, %p287
    %p289 = pneg %p288
    // Predicated region
    $region53: #{dense_block_v2.1} parent=5 // pred_check
      _
    $region54: #{dense_block_v2.1} parent=5 // pred_check_branch
      %291 = sbr.rel (%p288) target = $region56
    $region55: #{dense_block_v2.1} parent=5 // pred_region
      %s292 = ssub.s32 %s15, 1
      %p293 = scmp.lt.s32.totalorder %s20, 1
      %s294 = scalar_select %p293, %s20, 1
      %s295 = smul.addr %s294, 2
      %s296 = smul.addr %s295, 8
      %s297 = scalar_lea.vmem %s0, %s296
      %p298 = pneg %p41
      %p299 = pneg %p38
      %p300 = pneg %p62
      %p301 = pneg %p59
      %p302 = pneg %p83
      %p303 = pneg %p80
      %p304 = pneg %p104
      %p305 = pneg %p101
      %p306 = pneg %p125
      %p307 = pneg %p122
      %p308 = pneg %p146
      %p309 = pneg %p143
      %p310 = pneg %p167
      %p311 = pneg %p164
      %p312 = pneg %p188
      %p313 = pneg %p185
      %p314 = pneg %p209
      %p315 = pneg %p206
      %p316 = pneg %p235
      %p317 = pneg %p232
      %p318 = scmp.lt.s32.totalorder %s20, 1
      %s319 = scalar_select %p318, %s20, 1
      %s320 = smul.addr %s319, 2
      %s321 = smul.addr %s320, 8
      %s322 = scalar_lea.vmem %s9, %s321
      %p323 = scmp.lt.s32.totalorder %s20, 1
      %s324 = scalar_select %p323, %s20, 1
      %s325 = smul.addr %s324, 2
      %s326 = smul.addr %s325, 8
      %s327 = scalar_lea.vmem %s0, %s326
      %p328 = scmp.lt.s32.totalorder %s20, 1
      %s329 = scalar_select %p328, %s20, 1
      %s330 = smul.addr %s329, 2
      %s331 = smul.addr %s330, 8
      %s332 = scalar_lea.vmem %s9, %s331
      %333 = vst [vmem:[#allocation2] sm:$0xff] 0.0
      %vm334 = vcmask 138240
      %335 = vst.msk [vmem:[#allocation2 + $0x8] sm:$0xff] %vm334, 0.0
      %336 = vst [vmem:[#allocation2 + $0x18] sm:$0xff] 0.0
      %337 = vst.msk [vmem:[#allocation2 + $0x20] sm:$0xff] %vm334, 0.0
      %338 = vst [vmem:[#allocation2 + $0x30] sm:$0xff] 0.0
      %339 = vst.msk [vmem:[#allocation2 + $0x38] sm:$0xff] %vm334, 0.0
      %340 = vst [vmem:[#allocation2 + $0x48] sm:$0xff] 0.0
      %341 = vst.msk [vmem:[#allocation2 + $0x50] sm:$0xff] %vm334, 0.0
      %vm342 = vcmask 408832
      %343 = vst.msk [vmem:[#allocation2 + $0x10] sm:$0xff] %vm342, 0.0
      %344 = vst.msk [vmem:[#allocation2 + $0x28] sm:$0xff] %vm342, 0.0
      %345 = vst.msk [vmem:[#allocation2 + $0x40] sm:$0xff] %vm342, 0.0
      %346 = vst.msk [vmem:[#allocation2 + $0x58] sm:$0xff] %vm342, 0.0
      %v347 = vld [vmem:[%s327] sm:$0xff]
      %v348 = vld [vmem:[%s327 + $0x8] sm:$0xff]
      %351 = vrot.lane.b32.xlu0 %v347, 16
      %v352 = vpop.permute.xlu0 %351
      %353 = vrot.lane.b32.xlu0 %v348, 16
      %v354 = vpop.permute.xlu0 %353
      %vm355 = vcmask 130048
      %v356 = vsel %vm355, %v352, %v354
      %vm359 = vcmask 1047680
      %360 = vst.msk [vmem:[#allocation2 + $0x50] sm:$0xff] %vm359, %v352
      %vm361 = vcmask 261120
      %362 = vst.msk [vmem:[#allocation2 + $0x58] sm:$0xff] %vm361, %v356
      %v363 = vlaneseq
      %v364 = vand.u32 %v363, 127
      %v365 = vadd.s32 %v364, 128
      %vm366 = vcmp.lt.s32.totalorder %v364, 0
      %v367 = vsub.s32 0, %v364
      %v368 = vsel %vm366, %v367, %v364
      %v369 = vmul.u32.u64.compose %v368, 3817748708
      %v370 = vextract.low.u32 %v369
      %v371 = vextract.high.u32 %v369
      %v372 = vshrl.u32 %v371, 4
      %v373 = vmul.u32 %v372, 18
      %v374 = vsub.s32 %v368, %v373
      %v375 = vsub.s32 0, %v374
      %v376 = vsel %vm366, %v375, %v374
      %vm377 = vcmp.lt.s32.totalorder %v365, 0
      %v378 = vsub.s32 0, %v365
      %v379 = vsel %vm377, %v378, %v365
      %v380 = vmul.u32.u64.compose %v379, 3817748708
      %v381 = vextract.low.u32 %v380
      %v382 = vextract.high.u32 %v380
      %v383 = vshrl.u32 %v382, 4
      %v384 = vmul.u32 %v383, 18
      %v385 = vsub.s32 %v379, %v384
      %v386 = vsub.s32 0, %v385
      %v387 = vsel %vm377, %v386, %v385
      %vm388 = vcmp.ne.s32.totalorder %v376, 0
      %vm389 = vcmp.ne.s32.totalorder %v387, 0
      %vm390 = vcmp.lt.s32.totalorder %v376, 0
      %vm391 = vcmp.lt.s32.totalorder %v387, 0
      %vm392 = vmand %vm390, %vm388
      %vm393 = vmand %vm391, %vm389
      %v394 = vadd.s32 %v376, 18
      %v395 = vadd.s32 %v387, 18
      %v396 = vsel %vm392, %v394, %v376
      %v397 = vsel %vm393, %v395, %v387
      %vm398 = vcmp.lt.s32.totalorder %v396, 16
      %vm399 = vcmp.lt.s32.totalorder %v397, 16
      %v400 = vsel %vm398, 1, 0
      %v401 = vsel %vm399, 1, 0
      %v402 = vcvt.s32.f32 %v400
      %v403 = vcvt.s32.f32 %v401
      %v404 = vld [vmem:[%s1] sm:$0xff]
      %v405 = vld [vmem:[#allocation2 + $0x48] sm:$0xff]
      %v406 = vld [vmem:[#allocation2 + $0x50] sm:$0xff]
      %v407 = vld [vmem:[#allocation2 + $0x58] sm:$0xff]
      %s408 = scalar_lea.vmem %s1, 8
      %v409 = vld [vmem:[%s408] sm:$0xff]
      %413 = vrot.lane.b32.xlu0 %v405, 1
      %v414 = vpop.permute.xlu0 %413
      %415 = vrot.lane.b32.xlu0 %v406, 1
      %v416 = vpop.permute.xlu0 %415
      %417 = vrot.lane.b32.xlu0 %v407, 1
      %v418 = vpop.permute.xlu0 %417
      %vm419 = vcmask 7168
      %v420 = vsel %vm419, %v414, %v416
      %v421 = vsel %vm419, %v416, %v418
      %vm424 = vcmask 64512
      %v426 = vsel %vm424, %v409, 0
      %428 = vmatprep.subr.mxu0 %v421
      %429 = vmatpush1.msra.mxu0 %v420
      %430 = vmatprep.subr.mxu0 0.0
      %431 = vmatpush1.msra.mxu0 0.0
      %432 = vmatprep.subr.mxu0 0.0
      %433 = vmatpush1.msra.mxu0 0.0
      %434 = vmatprep.subr.mxu0 0.0
      %435 = vmatpush1.msra.mxu0 0.0
      %436 = vmatprep.subr.mxu0 0.0
      %437 = vmatpush1.msra.mxu0 0.0
      %438 = vmatprep.subr.mxu0 0.0
      %439 = vmatpush1.msra.mxu0 0.0
      %440 = vmatprep.subr.mxu0 0.0
      %441 = vmatpush1.msra.mxu0 0.0
      %442 = vmatprep.subr.mxu0 0.0
      %443 = vmatpush1.msra.mxu0 0.0
      %444 = vmatprep.subr.mxu0 0.0
      %445 = vmatpush1.msra.mxu0 0.0
      %446 = vmatprep.subr.mxu0 0.0
      %447 = vmatpush1.msra.mxu0 0.0
      %448 = vmatprep.subr.mxu0 0.0
      %449 = vmatpush1.msra.mxu0 0.0
      %450 = vmatprep.subr.mxu0 0.0
      %451 = vmatpush1.msra.mxu0 0.0
      %452 = vmatprep.subr.mxu0 0.0
      %453 = vmatpush1.msra.mxu0 0.0
      %454 = vmatprep.subr.mxu0 0.0
      %455 = vmatpush1.msra.mxu0 0.0
      %456 = vmatprep.subr.mxu0 0.0
      %457 = vmatpush1.msra.mxu0 0.0
      %458 = vmatprep.subr.mxu0 0.0
      %459 = vmatpush1.msra.mxu0 0.0
      %460 = vmatprep.subr.mxu0 0.0
      %461 = vmatpush1.msra.mxu0 0.0
      %462 = vmatprep.subr.mxu0 0.0
      %463 = vmatpush1.msra.mxu0 0.0
      %464 = vmatprep.subr.mxu0 0.0
      %465 = vmatpush1.msra.mxu0 0.0
      %466 = vmatprep.subr.mxu0 0.0
      %467 = vmatpush1.msra.mxu0 0.0
      %468 = vmatprep.subr.mxu0 0.0
      %469 = vmatpush1.msra.mxu0 0.0
      %470 = vmatprep.subr.mxu0 0.0
      %471 = vmatpush1.msra.mxu0 0.0
      %472 = vmatprep.subr.mxu0 0.0
      %473 = vmatpush1.msra.mxu0 0.0
      %474 = vmatprep.subr.mxu0 0.0
      %475 = vmatpush1.msra.mxu0 0.0
      %476 = vmatprep.subr.mxu0 0.0
      %477 = vmatpush1.msra.mxu0 0.0
      %478 = vmatprep.subr.mxu0 0.0
      %479 = vmatpush1.msra.mxu0 0.0
      %480 = vmatprep.subr.mxu0 0.0
      %481 = vmatpush1.msra.mxu0 0.0
      %482 = vmatprep.subr.mxu0 0.0
      %483 = vmatpush1.msra.mxu0 0.0
      %484 = vmatprep.subr.mxu0 0.0
      %485 = vmatpush1.msra.mxu0 0.0
      %486 = vmatprep.subr.mxu0 0.0
      %487 = vmatpush1.msra.mxu0 0.0
      %488 = vmatprep.subr.mxu0 0.0
      %489 = vmatpush1.msra.mxu0 0.0
      %490 = vmatprep.subr.mxu0 0.0
      %491 = vmatpush1.msra.mxu0 0.0
      %492 = vmatprep.mubr.f32.mxu0 0.0
      %493 = vmatmul.mubr.f32.gmra.mrb[0].mxu0 %v426
      %v494 = vpop.f32.mrb[0].mxu0
      %v495 = vadd.f32 0.0, %v494
      %v496 = vpop.f32.mrb[0].mxu0
      %v497 = vadd.f32 0.0, %v496
      %498 = vdwg.mxu0
      %499 = vrot.lane.b32.xlu0 %v405, 2
      %v500 = vpop.permute.xlu0 %499
      %501 = vrot.lane.b32.xlu0 %v406, 2
      %v502 = vpop.permute.xlu0 %501
      %503 = vrot.lane.b32.xlu0 %v407, 2
      %v504 = vpop.permute.xlu0 %503
      %vm505 = vcmask 15360
      %v506 = vsel %vm505, %v500, %v502
      %v507 = vsel %vm505, %v502, %v504
      %v511 = vsel %vm424, %v404, 0
      %513 = vmatprep.subr.mxu0 %v507
      %514 = vmatpush1.msra.mxu0 %v506
      %515 = vmatprep.subr.mxu0 0.0
      %516 = vmatpush1.msra.mxu0 0.0
      %517 = vmatprep.subr.mxu0 0.0
      %518 = vmatpush1.msra.mxu0 0.0
      %519 = vmatprep.subr.mxu0 0.0
      %520 = vmatpush1.msra.mxu0 0.0
      %521 = vmatprep.subr.mxu0 0.0
      %522 = vmatpush1.msra.mxu0 0.0
      %523 = vmatprep.subr.mxu0 0.0
      %524 = vmatpush1.msra.mxu0 0.0
      %525 = vmatprep.subr.mxu0 0.0
      %526 = vmatpush1.msra.mxu0 0.0
      %527 = vmatprep.subr.mxu0 0.0
      %528 = vmatpush1.msra.mxu0 0.0
      %529 = vmatprep.subr.mxu0 0.0
      %530 = vmatpush1.msra.mxu0 0.0
      %531 = vmatprep.subr.mxu0 0.0
      %532 = vmatpush1.msra.mxu0 0.0
      %533 = vmatprep.subr.mxu0 0.0
      %534 = vmatpush1.msra.mxu0 0.0
      %535 = vmatprep.subr.mxu0 0.0
      %536 = vmatpush1.msra.mxu0 0.0
      %537 = vmatprep.subr.mxu0 0.0
      %538 = vmatpush1.msra.mxu0 0.0
      %539 = vmatprep.subr.mxu0 0.0
      %540 = vmatpush1.msra.mxu0 0.0
      %541 = vmatprep.subr.mxu0 0.0
      %542 = vmatpush1.msra.mxu0 0.0
      %543 = vmatprep.subr.mxu0 0.0
      %544 = vmatpush1.msra.mxu0 0.0
      %545 = vmatprep.subr.mxu0 0.0
      %546 = vmatpush1.msra.mxu0 0.0
      %547 = vmatprep.subr.mxu0 0.0
      %548 = vmatpush1.msra.mxu0 0.0
      %549 = vmatprep.subr.mxu0 0.0
      %550 = vmatpush1.msra.mxu0 0.0
      %551 = vmatprep.subr.mxu0 0.0
      %552 = vmatpush1.msra.mxu0 0.0
      %553 = vmatprep.subr.mxu0 0.0
      %554 = vmatpush1.msra.mxu0 0.0
      %555 = vmatprep.subr.mxu0 0.0
      %556 = vmatpush1.msra.mxu0 0.0
      %557 = vmatprep.subr.mxu0 0.0
      %558 = vmatpush1.msra.mxu0 0.0
      %559 = vmatprep.subr.mxu0 0.0
      %560 = vmatpush1.msra.mxu0 0.0
      %561 = vmatprep.subr.mxu0 0.0
      %562 = vmatpush1.msra.mxu0 0.0
      %563 = vmatprep.subr.mxu0 0.0
      %564 = vmatpush1.msra.mxu0 0.0
      %565 = vmatprep.subr.mxu0 0.0
      %566 = vmatpush1.msra.mxu0 0.0
      %567 = vmatprep.subr.mxu0 0.0
      %568 = vmatpush1.msra.mxu0 0.0
      %569 = vmatprep.subr.mxu0 0.0
      %570 = vmatpush1.msra.mxu0 0.0
      %571 = vmatprep.subr.mxu0 0.0
      %572 = vmatpush1.msra.mxu0 0.0
      %573 = vmatprep.subr.mxu0 0.0
      %574 = vmatpush1.msra.mxu0 0.0
      %575 = vmatprep.subr.mxu0 0.0
      %576 = vmatpush1.msra.mxu0 0.0
      %577 = vmatprep.mubr.f32.mxu0 0.0
      %578 = vmatmul.mubr.f32.gmra.mrb[0].mxu0 %v511
      %v579 = vpop.f32.mrb[0].mxu0
      %v580 = vadd.f32 %v495, %v579
      %v581 = vpop.f32.mrb[0].mxu0
      %v582 = vadd.f32 %v497, %v581
      %583 = vdwg.mxu0
      %s584 = scalar_lea.vmem %s1, 16
      %v585 = vld [vmem:[%s584] sm:$0xff]
      %v587 = vsel %vm424, %v585, 0
      %589 = vmatprep.subr.mxu0 %v407
      %590 = vmatpush1.msra.mxu0 %v406
      %591 = vmatprep.subr.mxu0 0.0
      %592 = vmatpush1.msra.mxu0 0.0
      %593 = vmatprep.subr.mxu0 0.0
      %594 = vmatpush1.msra.mxu0 0.0
      %595 = vmatprep.subr.mxu0 0.0
      %596 = vmatpush1.msra.mxu0 0.0
      %597 = vmatprep.subr.mxu0 0.0
      %598 = vmatpush1.msra.mxu0 0.0
      %599 = vmatprep.subr.mxu0 0.0
      %600 = vmatpush1.msra.mxu0 0.0
      %601 = vmatprep.subr.mxu0 0.0
      %602 = vmatpush1.msra.mxu0 0.0
      %603 = vmatprep.subr.mxu0 0.0
      %604 = vmatpush1.msra.mxu0 0.0
      %605 = vmatprep.subr.mxu0 0.0
      %606 = vmatpush1.msra.mxu0 0.0
      %607 = vmatprep.subr.mxu0 0.0
      %608 = vmatpush1.msra.mxu0 0.0
      %609 = vmatprep.subr.mxu0 0.0
      %610 = vmatpush1.msra.mxu0 0.0
      %611 = vmatprep.subr.mxu0 0.0
      %612 = vmatpush1.msra.mxu0 0.0
      %613 = vmatprep.subr.mxu0 0.0
      %614 = vmatpush1.msra.mxu0 0.0
      %615 = vmatprep.subr.mxu0 0.0
      %616 = vmatpush1.msra.mxu0 0.0
      %617 = vmatprep.subr.mxu0 0.0
      %618 = vmatpush1.msra.mxu0 0.0
      %619 = vmatprep.subr.mxu0 0.0
      %620 = vmatpush1.msra.mxu0 0.0
      %621 = vmatprep.subr.mxu0 0.0
      %622 = vmatpush1.msra.mxu0 0.0
      %623 = vmatprep.subr.mxu0 0.0
      %624 = vmatpush1.msra.mxu0 0.0
      %625 = vmatprep.subr.mxu0 0.0
      %626 = vmatpush1.msra.mxu0 0.0
      %627 = vmatprep.subr.mxu0 0.0
      %628 = vmatpush1.msra.mxu0 0.0
      %629 = vmatprep.subr.mxu0 0.0
      %630 = vmatpush1.msra.mxu0 0.0
      %631 = vmatprep.subr.mxu0 0.0
      %632 = vmatpush1.msra.mxu0 0.0
      %633 = vmatprep.subr.mxu0 0.0
      %634 = vmatpush1.msra.mxu0 0.0
      %635 = vmatprep.subr.mxu0 0.0
      %636 = vmatpush1.msra.mxu0 0.0
      %637 = vmatprep.subr.mxu0 0.0
      %638 = vmatpush1.msra.mxu0 0.0
      %639 = vmatprep.subr.mxu0 0.0
      %640 = vmatpush1.msra.mxu0 0.0
      %641 = vmatprep.subr.mxu0 0.0
      %642 = vmatpush1.msra.mxu0 0.0
      %643 = vmatprep.subr.mxu0 0.0
      %644 = vmatpush1.msra.mxu0 0.0
      %645 = vmatprep.subr.mxu0 0.0
      %646 = vmatpush1.msra.mxu0 0.0
      %647 = vmatprep.subr.mxu0 0.0
      %648 = vmatpush1.msra.mxu0 0.0
      %649 = vmatprep.subr.mxu0 0.0
      %650 = vmatpush1.msra.mxu0 0.0
      %651 = vmatprep.subr.mxu0 0.0
      %652 = vmatpush1.msra.mxu0 0.0
      %653 = vmatprep.mubr.f32.mxu0 0.0
      %654 = vmatmul.mubr.f32.gmra.mrb[0].mxu0 %v587
      %v655 = vpop.f32.mrb[0].mxu0
      %v656 = vadd.f32 0.0, %v655
      %v657 = vpop.f32.mrb[0].mxu0
      %v658 = vadd.f32 0.0, %v657
      %659 = vdwg.mxu0
      %v660 = vadd.f32 %v580, %v656
      %v661 = vadd.f32 %v582, %v658
      %s662 = scalar_lea.vmem %s1, 24
      %v663 = vld [vmem:[%s662] sm:$0xff]
      %664 = vrot.lane.b32.xlu0 %v406, 112
      %v665 = vpop.permute.xlu0 %664
      %666 = vrot.lane.b32.xlu0 %v407, 112
      %v667 = vpop.permute.xlu0 %666
      %vm668 = vcmask 916480
      %v669 = vsel %vm668, %v665, %v667
      %v673 = vsel %vm424, %v663, 0
      %675 = vmatprep.subr.mxu0 %v667
      %676 = vmatpush1.msra.mxu0 %v669
      %677 = vmatprep.subr.mxu0 0.0
      %678 = vmatpush1.msra.mxu0 0.0
      %679 = vmatprep.subr.mxu0 0.0
      %680 = vmatpush1.msra.mxu0 0.0
      %681 = vmatprep.subr.mxu0 0.0
      %682 = vmatpush1.msra.mxu0 0.0
      %683 = vmatprep.subr.mxu0 0.0
      %684 = vmatpush1.msra.mxu0 0.0
      %685 = vmatprep.subr.mxu0 0.0
      %686 = vmatpush1.msra.mxu0 0.0
      %687 = vmatprep.subr.mxu0 0.0
      %688 = vmatpush1.msra.mxu0 0.0
      %689 = vmatprep.subr.mxu0 0.0
      %690 = vmatpush1.msra.mxu0 0.0
      %691 = vmatprep.subr.mxu0 0.0
      %692 = vmatpush1.msra.mxu0 0.0
      %693 = vmatprep.subr.mxu0 0.0
      %694 = vmatpush1.msra.mxu0 0.0
      %695 = vmatprep.subr.mxu0 0.0
      %696 = vmatpush1.msra.mxu0 0.0
      %697 = vmatprep.subr.mxu0 0.0
      %698 = vmatpush1.msra.mxu0 0.0
      %699 = vmatprep.subr.mxu0 0.0
      %700 = vmatpush1.msra.mxu0 0.0
      %701 = vmatprep.subr.mxu0 0.0
      %702 = vmatpush1.msra.mxu0 0.0
      %703 = vmatprep.subr.mxu0 0.0
      %704 = vmatpush1.msra.mxu0 0.0
      %705 = vmatprep.subr.mxu0 0.0
      %706 = vmatpush1.msra.mxu0 0.0
      %707 = vmatprep.subr.mxu0 0.0
      %708 = vmatpush1.msra.mxu0 0.0
      %709 = vmatprep.subr.mxu0 0.0
      %710 = vmatpush1.msra.mxu0 0.0
      %711 = vmatprep.subr.mxu0 0.0
      %712 = vmatpush1.msra.mxu0 0.0
      %713 = vmatprep.subr.mxu0 0.0
      %714 = vmatpush1.msra.mxu0 0.0
      %715 = vmatprep.subr.mxu0 0.0
      %716 = vmatpush1.msra.mxu0 0.0
      %717 = vmatprep.subr.mxu0 0.0
      %718 = vmatpush1.msra.mxu0 0.0
      %719 = vmatprep.subr.mxu0 0.0
      %720 = vmatpush1.msra.mxu0 0.0
      %721 = vmatprep.subr.mxu0 0.0
      %722 = vmatpush1.msra.mxu0 0.0
      %723 = vmatprep.subr.mxu0 0.0
      %724 = vmatpush1.msra.mxu0 0.0
      %725 = vmatprep.subr.mxu0 0.0
      %726 = vmatpush1.msra.mxu0 0.0
      %727 = vmatprep.subr.mxu0 0.0
      %728 = vmatpush1.msra.mxu0 0.0
      %729 = vmatprep.subr.mxu0 0.0
      %730 = vmatpush1.msra.mxu0 0.0
      %731 = vmatprep.subr.mxu0 0.0
      %732 = vmatpush1.msra.mxu0 0.0
      %733 = vmatprep.subr.mxu0 0.0
      %734 = vmatpush1.msra.mxu0 0.0
      %735 = vmatprep.subr.mxu0 0.0
      %736 = vmatpush1.msra.mxu0 0.0
      %737 = vmatprep.subr.mxu0 0.0
      %738 = vmatpush1.msra.mxu0 0.0
      %739 = vmatprep.mubr.f32.mxu0 0.0
      %740 = vmatmul.mubr.f32.gmra.mrb[0].mxu0 %v673
      %v741 = vpop.f32.mrb[0].mxu0
      %v742 = vadd.f32 0.0, %v741
      %v743 = vpop.f32.mrb[0].mxu0
      %v744 = vadd.f32 0.0, %v743
      %745 = vdwg.mxu0
      %v746 = vadd.f32 %v660, %v742
      %v747 = vadd.f32 %v661, %v744
      %s748 = scalar_lea.vmem %s1, 32
      %v749 = vld [vmem:[%s748] sm:$0xff]
      %750 = vrot.lane.b32.xlu0 %v406, 111
      %v751 = vpop.permute.xlu0 %750
      %752 = vrot.lane.b32.xlu0 %v407, 111
      %v753 = vpop.permute.xlu0 %752
      %vm754 = vcmask 908288
      %v755 = vsel %vm754, %v751, %v753
      %v759 = vsel %vm424, %v749, 0
      %761 = vmatprep.subr.mxu0 %v753
      %762 = vmatpush1.msra.mxu0 %v755
      %763 = vmatprep.subr.mxu0 0.0
      %764 = vmatpush1.msra.mxu0 0.0
      %765 = vmatprep.subr.mxu0 0.0
      %766 = vmatpush1.msra.mxu0 0.0
      %767 = vmatprep.subr.mxu0 0.0
      %768 = vmatpush1.msra.mxu0 0.0
      %769 = vmatprep.subr.mxu0 0.0
      %770 = vmatpush1.msra.mxu0 0.0
      %771 = vmatprep.subr.mxu0 0.0
      %772 = vmatpush1.msra.mxu0 0.0
      %773 = vmatprep.subr.mxu0 0.0
      %774 = vmatpush1.msra.mxu0 0.0
      %775 = vmatprep.subr.mxu0 0.0
      %776 = vmatpush1.msra.mxu0 0.0
      %777 = vmatprep.subr.mxu0 0.0
      %778 = vmatpush1.msra.mxu0 0.0
      %779 = vmatprep.subr.mxu0 0.0
      %780 = vmatpush1.msra.mxu0 0.0
      %781 = vmatprep.subr.mxu0 0.0
      %782 = vmatpush1.msra.mxu0 0.0
      %783 = vmatprep.subr.mxu0 0.0
      %784 = vmatpush1.msra.mxu0 0.0
      %785 = vmatprep.subr.mxu0 0.0
      %786 = vmatpush1.msra.mxu0 0.0
      %787 = vmatprep.subr.mxu0 0.0
      %788 = vmatpush1.msra.mxu0 0.0
      %789 = vmatprep.subr.mxu0 0.0
      %790 = vmatpush1.msra.mxu0 0.0
      %791 = vmatprep.subr.mxu0 0.0
      %792 = vmatpush1.msra.mxu0 0.0
      %793 = vmatprep.subr.mxu0 0.0
      %794 = vmatpush1.msra.mxu0 0.0
      %795 = vmatprep.subr.mxu0 0.0
      %796 = vmatpush1.msra.mxu0 0.0
      %797 = vmatprep.subr.mxu0 0.0
      %798 = vmatpush1.msra.mxu0 0.0
      %799 = vmatprep.subr.mxu0 0.0
      %800 = vmatpush1.msra.mxu0 0.0
      %801 = vmatprep.subr.mxu0 0.0
      %802 = vmatpush1.msra.mxu0 0.0
      %803 = vmatprep.subr.mxu0 0.0
      %804 = vmatpush1.msra.mxu0 0.0
      %805 = vmatprep.subr.mxu0 0.0
      %806 = vmatpush1.msra.mxu0 0.0
      %807 = vmatprep.subr.mxu0 0.0
      %808 = vmatpush1.msra.mxu0 0.0
      %809 = vmatprep.subr.mxu0 0.0
      %810 = vmatpush1.msra.mxu0 0.0
      %811 = vmatprep.subr.mxu0 0.0
      %812 = vmatpush1.msra.mxu0 0.0
      %813 = vmatprep.subr.mxu0 0.0
      %814 = vmatpush1.msra.mxu0 0.0
      %815 = vmatprep.subr.mxu0 0.0
      %816 = vmatpush1.msra.mxu0 0.0
      %817 = vmatprep.subr.mxu0 0.0
      %818 = vmatpush1.msra.mxu0 0.0
      %819 = vmatprep.subr.mxu0 0.0
      %820 = vmatpush1.msra.mxu0 0.0
      %821 = vmatprep.subr.mxu0 0.0
      %822 = vmatpush1.msra.mxu0 0.0
      %823 = vmatprep.subr.mxu0 0.0
      %824 = vmatpush1.msra.mxu0 0.0
      %825 = vmatprep.mubr.f32.mxu0 0.0
      %826 = vmatmul.mubr.f32.gmra.mrb[0].mxu0 %v759
      %v827 = vpop.f32.mrb[0].mxu0
      %v828 = vadd.f32 0.0, %v827
      %v829 = vpop.f32.mrb[0].mxu0
      %v830 = vadd.f32 0.0, %v829
      %831 = vdwg.mxu0
      %v832 = vadd.f32 %v746, %v828
      %v833 = vadd.f32 %v747, %v830
      %s834 = scalar_lea.vmem %s1, 40
      %v835 = vld [vmem:[%s834] sm:$0xff]
      %836 = vrot.lane.b32.xlu0 %v406, 110
      %v837 = vpop.permute.xlu0 %836
      %838 = vrot.lane.b32.xlu0 %v407, 110
      %v839 = vpop.permute.xlu0 %838
      %vm840 = vcmask 900096
      %v841 = vsel %vm840, %v837, %v839
      %v845 = vsel %vm424, %v835, 0
      %847 = vmatprep.subr.mxu0 %v839
      %848 = vmatpush1.msra.mxu0 %v841
      %849 = vmatprep.subr.mxu0 0.0
      %850 = vmatpush1.msra.mxu0 0.0
      %851 = vmatprep.subr.mxu0 0.0
      %852 = vmatpush1.msra.mxu0 0.0
      %853 = vmatprep.subr.mxu0 0.0
      %854 = vmatpush1.msra.mxu0 0.0
      %855 = vmatprep.subr.mxu0 0.0
      %856 = vmatpush1.msra.mxu0 0.0
      %857 = vmatprep.subr.mxu0 0.0
      %858 = vmatpush1.msra.mxu0 0.0
      %859 = vmatprep.subr.mxu0 0.0
      %860 = vmatpush1.msra.mxu0 0.0
      %861 = vmatprep.subr.mxu0 0.0
      %862 = vmatpush1.msra.mxu0 0.0
      %863 = vmatprep.subr.mxu0 0.0
      %864 = vmatpush1.msra.mxu0 0.0
      %865 = vmatprep.subr.mxu0 0.0
      %866 = vmatpush1.msra.mxu0 0.0
      %867 = vmatprep.subr.mxu0 0.0
      %868 = vmatpush1.msra.mxu0 0.0
      %869 = vmatprep.subr.mxu0 0.0
      %870 = vmatpush1.msra.mxu0 0.0
      %871 = vmatprep.subr.mxu0 0.0
      %872 = vmatpush1.msra.mxu0 0.0
      %873 = vmatprep.subr.mxu0 0.0
      %874 = vmatpush1.msra.mxu0 0.0
      %875 = vmatprep.subr.mxu0 0.0
      %876 = vmatpush1.msra.mxu0 0.0
      %877 = vmatprep.subr.mxu0 0.0
      %878 = vmatpush1.msra.mxu0 0.0
      %879 = vmatprep.subr.mxu0 0.0
      %880 = vmatpush1.msra.mxu0 0.0
      %881 = vmatprep.subr.mxu0 0.0
      %882 = vmatpush1.msra.mxu0 0.0
      %883 = vmatprep.subr.mxu0 0.0
      %884 = vmatpush1.msra.mxu0 0.0
      %885 = vmatprep.subr.mxu0 0.0
      %886 = vmatpush1.msra.mxu0 0.0
      %887 = vmatprep.subr.mxu0 0.0
      %888 = vmatpush1.msra.mxu0 0.0
      %889 = vmatprep.subr.mxu0 0.0
      %890 = vmatpush1.msra.mxu0 0.0
      %891 = vmatprep.subr.mxu0 0.0
      %892 = vmatpush1.msra.mxu0 0.0
      %893 = vmatprep.subr.mxu0 0.0
      %894 = vmatpush1.msra.mxu0 0.0
      %895 = vmatprep.subr.mxu0 0.0
      %896 = vmatpush1.msra.mxu0 0.0
      %897 = vmatprep.subr.mxu0 0.0
      %898 = vmatpush1.msra.mxu0 0.0
      %899 = vmatprep.subr.mxu0 0.0
      %900 = vmatpush1.msra.mxu0 0.0
      %901 = vmatprep.subr.mxu0 0.0
      %902 = vmatpush1.msra.mxu0 0.0
      %903 = vmatprep.subr.mxu0 0.0
      %904 = vmatpush1.msra.mxu0 0.0
      %905 = vmatprep.subr.mxu0 0.0
      %906 = vmatpush1.msra.mxu0 0.0
      %907 = vmatprep.subr.mxu0 0.0
      %908 = vmatpush1.msra.mxu0 0.0
      %909 = vmatprep.subr.mxu0 0.0
      %910 = vmatpush1.msra.mxu0 0.0
      %911 = vmatprep.mubr.f32.mxu0 0.0
      %912 = vmatmul.mubr.f32.gmra.mrb[0].mxu0 %v845
      %v913 = vpop.f32.mrb[0].mxu0
      %v914 = vadd.f32 0.0, %v913
      %v915 = vpop.f32.mrb[0].mxu0
      %v916 = vadd.f32 0.0, %v915
      %917 = vdwg.mxu0
      %v918 = vadd.f32 %v832, %v914
      %v919 = vadd.f32 %v833, %v916
      %v920 = vld [vmem:[%s5] sm:$0xff]
      %922 = vset.pattern.permute.xlu0 0
      %923 = vperm.xlu0 %922, %v920
      %v924 = vpop.permute.xlu0 %923
      %v926 = vadd.f32 %v918, %v924
      %v927 = vadd.f32 %v919, %v924
      %v928 = vmul.f32 %v926, %v402
      %v929 = vmul.f32 %v927, %v403
      %v930 = vsel %vm355, %v929, 0.0
      %v931 = vadd.f32 %v928, %v930
      %932 = vadd.xlane.f32.xlu0 %v931
      %v933 = vpop.xlane.xlu0 %932
      %v934 = vmul.f32 %v933, 0.0078125
      %v935 = vsub.f32 %v926, %v934
      %v936 = vsub.f32 %v927, %v934
      %v937 = vmul.f32 %v935, %v935
      %v938 = vmul.f32 %v936, %v936
      %v939 = vmul.f32 %v937, %v402
      %v940 = vmul.f32 %v938, %v403
      %v941 = vsel %vm355, %v940, 0.0
      %v942 = vadd.f32 %v939, %v941
      %943 = vadd.xlane.f32.xlu0 %v942
      %v944 = vpop.xlane.xlu0 %943
      %v945 = vmul.f32 %v944, 0.0078125
      %v946 = vld [vmem:[%s6] sm:$0xff]
      %v947 = vadd.f32 %v945, 1e-05
      %v948 = vrsqrt.pop %v947
      %v949 = vmul.f32 %v935, %v948
      %v950 = vmul.f32 %v936, %v948
      %952 = vset.pattern.permute.xlu0 0
      %953 = vperm.xlu0 %952, %v946
      %v954 = vpop.permute.xlu0 %953
      %v956 = vmul.f32 %v954, %v949
      %v957 = vmul.f32 %v954, %v950
      %v958 = vld [vmem:[%s7] sm:$0xff]
      %960 = vset.pattern.permute.xlu0 0
      %961 = vperm.xlu0 %960, %v958
      %v962 = vpop.permute.xlu0 %961
      %v964 = vadd.f32 %v956, %v962
      %v965 = vadd.f32 %v957, %v962
      %vm966 = vcmp.gt.f32.partialorder %v964, 0.0
      %vm967 = vcmp.gt.f32.partialorder %v965, 0.0
      %v968 = vld [vmem:[%s8] sm:$0xff]
      %970 = vset.pattern.permute.xlu0 0
      %971 = vperm.xlu0 %970, %v968
      %v972 = vpop.permute.xlu0 %971
      %v974 = vmul.f32 %v972, %v964
      %v975 = vmul.f32 %v972, %v965
      %v976 = vsel %vm966, %v964, %v974
      %v977 = vsel %vm967, %v965, %v975
      %v978 = vmul.f32 %v976, %v402
      %v979 = vmul.f32 %v977, %v403
      %982 = vrot.lane.b32.xlu0 %v978, 17
      %v983 = vpop.permute.xlu0 %982
      %984 = vrot.lane.b32.xlu0 %v979, 17
      %v985 = vpop.permute.xlu0 %984
      %v986 = vsel %vm334, %v983, %v985
      %vm989 = vcmask 1047688
      %990 = vst.msk [vmem:[#allocation2 + $0x38] sm:$0xff] %vm989, %v983
      %vm991 = vcmask 269312
      %992 = vst.msk [vmem:[#allocation2 + $0x40] sm:$0xff] %vm991, %v986
      %v993 = vld [vmem:[%s2] sm:$0xff]
      %v994 = vld [vmem:[#allocation2 + $0x30] sm:$0xff]
      %v995 = vld [vmem:[#allocation2 + $0x38] sm:$0xff]
      %v996 = vld [vmem:[#allocation2 + $0x48] sm:$0xff]
      %v997 = vld [vmem:[#allocation2 + $0x50] sm:$0xff]
      %s998 = scalar_lea.vmem %s2, 8
      %v999 = vld [vmem:[%s998] sm:$0xff]
      %1004 = vrot.lane.b32.xlu0 %v994, 19
      %v1005 = vpop.permute.xlu0 %1004
      %1006 = vrot.lane.b32.xlu0 %v995, 19
      %v1007 = vpop.permute.xlu0 %1006
      %1008 = vrot.lane.b32.xlu0 %v996, 19
      %v1009 = vpop.permute.xlu0 %1008
      %1010 = vrot.lane.b32.xlu0 %v997, 19
      %v1011 = vpop.permute.xlu0 %1010
      %vm1012 = vcmask 154624
      %v1013 = vsel %vm1012, %v1005, %v1007
      %v1014 = vsel %vm1012, %v1009, %v1011
      %v1020 = vsel %vm355, %v999, 0
      %1022 = vmatprep.subr.mxu0 %v1007
      %1023 = vmatpush1.msra.mxu0 %v1013
      %1024 = vmatprep.subr.mxu0 %v1011
      %1025 = vmatpush1.msra.mxu0 %v1014
      %1026 = vmatprep.subr.mxu0 0.0
      %1027 = vmatpush1.msra.mxu0 0.0
      %1028 = vmatprep.subr.mxu0 0.0
      %1029 = vmatpush1.msra.mxu0 0.0
      %1030 = vmatprep.subr.mxu0 0.0
      %1031 = vmatpush1.msra.mxu0 0.0
      %1032 = vmatprep.subr.mxu0 0.0
      %1033 = vmatpush1.msra.mxu0 0.0
      %1034 = vmatprep.subr.mxu0 0.0
      %1035 = vmatpush1.msra.mxu0 0.0
      %1036 = vmatprep.subr.mxu0 0.0
      %1037 = vmatpush1.msra.mxu0 0.0
      %1038 = vmatprep.subr.mxu0 0.0
      %1039 = vmatpush1.msra.mxu0 0.0
      %1040 = vmatprep.subr.mxu0 0.0
      %1041 = vmatpush1.msra.mxu0 0.0
      %1042 = vmatprep.subr.mxu0 0.0
      %1043 = vmatpush1.msra.mxu0 0.0
      %1044 = vmatprep.subr.mxu0 0.0
      %1045 = vmatpush1.msra.mxu0 0.0
      %1046 = vmatprep.subr.mxu0 0.0
      %1047 = vmatpush1.msra.mxu0 0.0
      %1048 = vmatprep.subr.mxu0 0.0
      %1049 = vmatpush1.msra.mxu0 0.0
      %1050 = vmatprep.subr.mxu0 0.0
      %1051 = vmatpush1.msra.mxu0 0.0
      %1052 = vmatprep.subr.mxu0 0.0
      %1053 = vmatpush1.msra.mxu0 0.0
      %1054 = vmatprep.subr.mxu0 0.0
      %1055 = vmatpush1.msra.mxu0 0.0
      %1056 = vmatprep.subr.mxu0 0.0
      %1057 = vmatpush1.msra.mxu0 0.0
      %1058 = vmatprep.subr.mxu0 0.0
      %1059 = vmatpush1.msra.mxu0 0.0
      %1060 = vmatprep.subr.mxu0 0.0
      %1061 = vmatpush1.msra.mxu0 0.0
      %1062 = vmatprep.subr.mxu0 0.0
      %1063 = vmatpush1.msra.mxu0 0.0
      %1064 = vmatprep.subr.mxu0 0.0
      %1065 = vmatpush1.msra.mxu0 0.0
      %1066 = vmatprep.subr.mxu0 0.0
      %1067 = vmatpush1.msra.mxu0 0.0
      %1068 = vmatprep.subr.mxu0 0.0
      %1069 = vmatpush1.msra.mxu0 0.0
      %1070 = vmatprep.subr.mxu0 0.0
      %1071 = vmatpush1.msra.mxu0 0.0
      %1072 = vmatprep.subr.mxu0 0.0
      %1073 = vmatpush1.msra.mxu0 0.0
      %1074 = vmatprep.subr.mxu0 0.0
      %1075 = vmatpush1.msra.mxu0 0.0
      %1076 = vmatprep.subr.mxu0 0.0
      %1077 = vmatpush1.msra.mxu0 0.0
      %1078 = vmatprep.subr.mxu0 0.0
      %1079 = vmatpush1.msra.mxu0 0.0
      %1080 = vmatprep.subr.mxu0 0.0
      %1081 = vmatpush1.msra.mxu0 0.0
      %1082 = vmatprep.subr.mxu0 0.0
      %1083 = vmatpush1.msra.mxu0 0.0
      %1084 = vmatprep.subr.mxu0 0.0
      %1085 = vmatpush1.msra.mxu0 0.0
      %1086 = vmatprep.mubr.f32.mxu0 0.0
      %1087 = vmatmul.mubr.f32.gmra.mrb[0].mxu0 %v1020
      %v1088 = vpop.f32.mrb[0].mxu0
      %v1089 = vadd.f32 0.0, %v1088
      %v1090 = vpop.f32.mrb[0].mxu0
      %v1091 = vadd.f32 0.0, %v1090
      %1092 = vdwg.mxu0
      %1093 = vrot.lane.b32.xlu0 %v994, 20
      %v1094 = vpop.permute.xlu0 %1093
      %1095 = vrot.lane.b32.xlu0 %v995, 20
      %v1096 = vpop.permute.xlu0 %1095
      %1097 = vrot.lane.b32.xlu0 %v996, 20
      %v1098 = vpop.permute.xlu0 %1097
      %1099 = vrot.lane.b32.xlu0 %v997, 20
      %v1100 = vpop.permute.xlu0 %1099
      %vm1101 = vcmask 162816
      %v1102 = vsel %vm1101, %v1094, %v1096
      %v1103 = vsel %vm1101, %v1098, %v1100
      %v1109 = vsel %vm355, %v993, 0
      %1111 = vmatprep.subr.mxu0 %v1096
      %1112 = vmatpush1.msra.mxu0 %v1102
      %1113 = vmatprep.subr.mxu0 %v1100
      %1114 = vmatpush1.msra.mxu0 %v1103
      %1115 = vmatprep.subr.mxu0 0.0
      %1116 = vmatpush1.msra.mxu0 0.0
      %1117 = vmatprep.subr.mxu0 0.0
      %1118 = vmatpush1.msra.mxu0 0.0
      %1119 = vmatprep.subr.mxu0 0.0
      %1120 = vmatpush1.msra.mxu0 0.0
      %1121 = vmatprep.subr.mxu0 0.0
      %1122 = vmatpush1.msra.mxu0 0.0
      %1123 = vmatprep.subr.mxu0 0.0
      %1124 = vmatpush1.msra.mxu0 0.0
      %1125 = vmatprep.subr.mxu0 0.0
      %1126 = vmatpush1.msra.mxu0 0.0
      %1127 = vmatprep.subr.mxu0 0.0
      %1128 = vmatpush1.msra.mxu0 0.0
      %1129 = vmatprep.subr.mxu0 0.0
      %1130 = vmatpush1.msra.mxu0 0.0
      %1131 = vmatprep.subr.mxu0 0.0
      %1132 = vmatpush1.msra.mxu0 0.0
      %1133 = vmatprep.subr.mxu0 0.0
      %1134 = vmatpush1.msra.mxu0 0.0
      %1135 = vmatprep.subr.mxu0 0.0
      %1136 = vmatpush1.msra.mxu0 0.0
      %1137 = vmatprep.subr.mxu0 0.0
      %1138 = vmatpush1.msra.mxu0 0.0
      %1139 = vmatprep.subr.mxu0 0.0
      %1140 = vmatpush1.msra.mxu0 0.0
      %1141 = vmatprep.subr.mxu0 0.0
      %1142 = vmatpush1.msra.mxu0 0.0
      %1143 = vmatprep.subr.mxu0 0.0
      %1144 = vmatpush1.msra.mxu0 0.0
      %1145 = vmatprep.subr.mxu0 0.0
      %1146 = vmatpush1.msra.mxu0 0.0
      %1147 = vmatprep.subr.mxu0 0.0
      %1148 = vmatpush1.msra.mxu0 0.0
      %1149 = vmatprep.subr.mxu0 0.0
      %1150 = vmatpush1.msra.mxu0 0.0
      %1151 = vmatprep.subr.mxu0 0.0
      %1152 = vmatpush1.msra.mxu0 0.0
      %1153 = vmatprep.subr.mxu0 0.0
      %1154 = vmatpush1.msra.mxu0 0.0
      %1155 = vmatprep.subr.mxu0 0.0
      %1156 = vmatpush1.msra.mxu0 0.0
      %1157 = vmatprep.subr.mxu0 0.0
      %1158 = vmatpush1.msra.mxu0 0.0
      %1159 = vmatprep.subr.mxu0 0.0
      %1160 = vmatpush1.msra.mxu0 0.0
      %1161 = vmatprep.subr.mxu0 0.0
      %1162 = vmatpush1.msra.mxu0 0.0
      %1163 = vmatprep.subr.mxu0 0.0
      %1164 = vmatpush1.msra.mxu0 0.0
      %1165 = vmatprep.subr.mxu0 0.0
      %1166 = vmatpush1.msra.mxu0 0.0
      %1167 = vmatprep.subr.mxu0 0.0
      %1168 = vmatpush1.msra.mxu0 0.0
      %1169 = vmatprep.subr.mxu0 0.0
      %1170 = vmatpush1.msra.mxu0 0.0
      %1171 = vmatprep.subr.mxu0 0.0
      %1172 = vmatpush1.msra.mxu0 0.0
      %1173 = vmatprep.subr.mxu0 0.0
      %1174 = vmatpush1.msra.mxu0 0.0
      %1175 = vmatprep.mubr.f32.mxu0 0.0
      %1176 = vmatmul.mubr.f32.gmra.mrb[0].mxu0 %v1109
      %v1177 = vpop.f32.mrb[0].mxu0
      %v1178 = vadd.f32 %v1089, %v1177
      %v1179 = vpop.f32.mrb[0].mxu0
      %v1180 = vadd.f32 %v1091, %v1179
      %1181 = vdwg.mxu0
      %s1182 = scalar_lea.vmem %s2, 16
      %v1183 = vld [vmem:[%s1182] sm:$0xff]
      %1184 = vrot.lane.b32.xlu0 %v994, 18
      %v1185 = vpop.permute.xlu0 %1184
      %1186 = vrot.lane.b32.xlu0 %v995, 18
      %v1187 = vpop.permute.xlu0 %1186
      %1188 = vrot.lane.b32.xlu0 %v996, 18
      %v1189 = vpop.permute.xlu0 %1188
      %1190 = vrot.lane.b32.xlu0 %v997, 18
      %v1191 = vpop.permute.xlu0 %1190
      %vm1192 = vcmask 146432
      %v1193 = vsel %vm1192, %v1185, %v1187
      %v1194 = vsel %vm1192, %v1189, %v1191
      %v1200 = vsel %vm355, %v1183, 0
      %1202 = vmatprep.subr.mxu0 %v1187
      %1203 = vmatpush1.msra.mxu0 %v1193
      %1204 = vmatprep.subr.mxu0 %v1191
      %1205 = vmatpush1.msra.mxu0 %v1194
      %1206 = vmatprep.subr.mxu0 0.0
      %1207 = vmatpush1.msra.mxu0 0.0
      %1208 = vmatprep.subr.mxu0 0.0
      %1209 = vmatpush1.msra.mxu0 0.0
      %1210 = vmatprep.subr.mxu0 0.0
      %1211 = vmatpush1.msra.mxu0 0.0
      %1212 = vmatprep.subr.mxu0 0.0
      %1213 = vmatpush1.msra.mxu0 0.0
      %1214 = vmatprep.subr.mxu0 0.0
      %1215 = vmatpush1.msra.mxu0 0.0
      %1216 = vmatprep.subr.mxu0 0.0
      %1217 = vmatpush1.msra.mxu0 0.0
      %1218 = vmatprep.subr.mxu0 0.0
      %1219 = vmatpush1.msra.mxu0 0.0
      %1220 = vmatprep.subr.mxu0 0.0
      %1221 = vmatpush1.msra.mxu0 0.0
      %1222 = vmatprep.subr.mxu0 0.0
      %1223 = vmatpush1.msra.mxu0 0.0
      %1224 = vmatprep.subr.mxu0 0.0
      %1225 = vmatpush1.msra.mxu0 0.0
      %1226 = vmatprep.subr.mxu0 0.0
      %1227 = vmatpush1.msra.mxu0 0.0
      %1228 = vmatprep.subr.mxu0 0.0
      %1229 = vmatpush1.msra.mxu0 0.0
      %1230 = vmatprep.subr.mxu0 0.0
      %1231 = vmatpush1.msra.mxu0 0.0
      %1232 = vmatprep.subr.mxu0 0.0
      %1233 = vmatpush1.msra.mxu0 0.0
      %1234 = vmatprep.subr.mxu0 0.0
      %1235 = vmatpush1.msra.mxu0 0.0
      %1236 = vmatprep.subr.mxu0 0.0
      %1237 = vmatpush1.msra.mxu0 0.0
      %1238 = vmatprep.subr.mxu0 0.0
      %1239 = vmatpush1.msra.mxu0 0.0
      %1240 = vmatprep.subr.mxu0 0.0
      %1241 = vmatpush1.msra.mxu0 0.0
      %1242 = vmatprep.subr.mxu0 0.0
      %1243 = vmatpush1.msra.mxu0 0.0
      %1244 = vmatprep.subr.mxu0 0.0
      %1245 = vmatpush1.msra.mxu0 0.0
      %1246 = vmatprep.subr.mxu0 0.0
      %1247 = vmatpush1.msra.mxu0 0.0
      %1248 = vmatprep.subr.mxu0 0.0
      %1249 = vmatpush1.msra.mxu0 0.0
      %1250 = vmatprep.subr.mxu0 0.0
      %1251 = vmatpush1.msra.mxu0 0.0
      %1252 = vmatprep.subr.mxu0 0.0
      %1253 = vmatpush1.msra.mxu0 0.0
      %1254 = vmatprep.subr.mxu0 0.0
      %1255 = vmatpush1.msra.mxu0 0.0
      %1256 = vmatprep.subr.mxu0 0.0
      %1257 = vmatpush1.msra.mxu0 0.0
      %1258 = vmatprep.subr.mxu0 0.0
      %1259 = vmatpush1.msra.mxu0 0.0
      %1260 = vmatprep.subr.mxu0 0.0
      %1261 = vmatpush1.msra.mxu0 0.0
      %1262 = vmatprep.subr.mxu0 0.0
      %1263 = vmatpush1.msra.mxu0 0.0
      %1264 = vmatprep.subr.mxu0 0.0
      %1265 = vmatpush1.msra.mxu0 0.0
      %1266 = vmatprep.mubr.f32.mxu0 0.0
      %1267 = vmatmul.mubr.f32.gmra.mrb[0].mxu0 %v1200
      %v1268 = vpop.f32.mrb[0].mxu0
      %v1269 = vadd.f32 0.0, %v1268
      %v1270 = vpop.f32.mrb[0].mxu0
      %v1271 = vadd.f32 0.0, %v1270
      %1272 = vdwg.mxu0
      %v1273 = vadd.f32 %v1178, %v1269
      %v1274 = vadd.f32 %v1180, %v1271
      %s1275 = scalar_lea.vmem %s2, 24
      %v1276 = vld [vmem:[%s1275] sm:$0xff]
      %v1277 = vld [vmem:[#allocation2 + $0x38] sm:$0xff]
      %v1278 = vld [vmem:[#allocation2 + $0x40] sm:$0xff]
      %v1279 = vld [vmem:[#allocation2 + $0x50] sm:$0xff]
      %v1280 = vld [vmem:[#allocation2 + $0x58] sm:$0xff]
      %1285 = vrot.lane.b32.xlu0 %v1277, 112
      %v1286 = vpop.permute.xlu0 %1285
      %1287 = vrot.lane.b32.xlu0 %v1278, 112
      %v1288 = vpop.permute.xlu0 %1287
      %1289 = vrot.lane.b32.xlu0 %v1279, 112
      %v1290 = vpop.permute.xlu0 %1289
      %1291 = vrot.lane.b32.xlu0 %v1280, 112
      %v1292 = vpop.permute.xlu0 %1291
      %v1293 = vsel %vm668, %v1286, %v1288
      %v1294 = vsel %vm668, %v1290, %v1292
      %v1300 = vsel %vm355, %v1276, 0
      %1302 = vmatprep.subr.mxu0 %v1288
      %1303 = vmatpush1.msra.mxu0 %v1293
      %1304 = vmatprep.subr.mxu0 %v1292
      %1305 = vmatpush1.msra.mxu0 %v1294
      %1306 = vmatprep.subr.mxu0 0.0
      %1307 = vmatpush1.msra.mxu0 0.0
      %1308 = vmatprep.subr.mxu0 0.0
      %1309 = vmatpush1.msra.mxu0 0.0
      %1310 = vmatprep.subr.mxu0 0.0
      %1311 = vmatpush1.msra.mxu0 0.0
      %1312 = vmatprep.subr.mxu0 0.0
      %1313 = vmatpush1.msra.mxu0 0.0
      %1314 = vmatprep.subr.mxu0 0.0
      %1315 = vmatpush1.msra.mxu0 0.0
      %1316 = vmatprep.subr.mxu0 0.0
      %1317 = vmatpush1.msra.mxu0 0.0
      %1318 = vmatprep.subr.mxu0 0.0
      %1319 = vmatpush1.msra.mxu0 0.0
      %1320 = vmatprep.subr.mxu0 0.0
      %1321 = vmatpush1.msra.mxu0 0.0
      %1322 = vmatprep.subr.mxu0 0.0
      %1323 = vmatpush1.msra.mxu0 0.0
      %1324 = vmatprep.subr.mxu0 0.0
      %1325 = vmatpush1.msra.mxu0 0.0
      %1326 = vmatprep.subr.mxu0 0.0
      %1327 = vmatpush1.msra.mxu0 0.0
      %1328 = vmatprep.subr.mxu0 0.0
      %1329 = vmatpush1.msra.mxu0 0.0
      %1330 = vmatprep.subr.mxu0 0.0
      %1331 = vmatpush1.msra.mxu0 0.0
      %1332 = vmatprep.subr.mxu0 0.0
      %1333 = vmatpush1.msra.mxu0 0.0
      %1334 = vmatprep.subr.mxu0 0.0
      %1335 = vmatpush1.msra.mxu0 0.0
      %1336 = vmatprep.subr.mxu0 0.0
      %1337 = vmatpush1.msra.mxu0 0.0
      %1338 = vmatprep.subr.mxu0 0.0
      %1339 = vmatpush1.msra.mxu0 0.0
      %1340 = vmatprep.subr.mxu0 0.0
      %1341 = vmatpush1.msra.mxu0 0.0
      %1342 = vmatprep.subr.mxu0 0.0
      %1343 = vmatpush1.msra.mxu0 0.0
      %1344 = vmatprep.subr.mxu0 0.0
      %1345 = vmatpush1.msra.mxu0 0.0
      %1346 = vmatprep.subr.mxu0 0.0
      %1347 = vmatpush1.msra.mxu0 0.0
      %1348 = vmatprep.subr.mxu0 0.0
      %1349 = vmatpush1.msra.mxu0 0.0
      %1350 = vmatprep.subr.mxu0 0.0
      %1351 = vmatpush1.msra.mxu0 0.0
      %1352 = vmatprep.subr.mxu0 0.0
      %1353 = vmatpush1.msra.mxu0 0.0
      %1354 = vmatprep.subr.mxu0 0.0
      %1355 = vmatpush1.msra.mxu0 0.0
      %1356 = vmatprep.subr.mxu0 0.0
      %1357 = vmatpush1.msra.mxu0 0.0
      %1358 = vmatprep.subr.mxu0 0.0
      %1359 = vmatpush1.msra.mxu0 0.0
      %1360 = vmatprep.subr.mxu0 0.0
      %1361 = vmatpush1.msra.mxu0 0.0
      %1362 = vmatprep.subr.mxu0 0.0
      %1363 = vmatpush1.msra.mxu0 0.0
      %1364 = vmatprep.subr.mxu0 0.0
      %1365 = vmatpush1.msra.mxu0 0.0
      %1366 = vmatprep.mubr.f32.mxu0 0.0
      %1367 = vmatmul.mubr.f32.gmra.mrb[0].mxu0 %v1300
      %v1368 = vpop.f32.mrb[0].mxu0
      %v1369 = vadd.f32 0.0, %v1368
      %v1370 = vpop.f32.mrb[0].mxu0
      %v1371 = vadd.f32 0.0, %v1370
      %1372 = vdwg.mxu0
      %v1373 = vadd.f32 %v1273, %v1369
      %v1374 = vadd.f32 %v1274, %v1371
      %s1375 = scalar_lea.vmem %s2, 32
      %v1376 = vld [vmem:[%s1375] sm:$0xff]
      %1377 = vrot.lane.b32.xlu0 %v1277, 111
      %v1378 = vpop.permute.xlu0 %1377
      %1379 = vrot.lane.b32.xlu0 %v1278, 111
      %v1380 = vpop.permute.xlu0 %1379
      %1381 = vrot.lane.b32.xlu0 %v1279, 111
      %v1382 = vpop.permute.xlu0 %1381
      %1383 = vrot.lane.b32.xlu0 %v1280, 111
      %v1384 = vpop.permute.xlu0 %1383
      %v1385 = vsel %vm754, %v1378, %v1380
      %v1386 = vsel %vm754, %v1382, %v1384
      %v1392 = vsel %vm355, %v1376, 0
      %1394 = vmatprep.subr.mxu0 %v1380
      %1395 = vmatpush1.msra.mxu0 %v1385
      %1396 = vmatprep.subr.mxu0 %v1384
      %1397 = vmatpush1.msra.mxu0 %v1386
      %1398 = vmatprep.subr.mxu0 0.0
      %1399 = vmatpush1.msra.mxu0 0.0
      %1400 = vmatprep.subr.mxu0 0.0
      %1401 = vmatpush1.msra.mxu0 0.0
      %1402 = vmatprep.subr.mxu0 0.0
      %1403 = vmatpush1.msra.mxu0 0.0
      %1404 = vmatprep.subr.mxu0 0.0
      %1405 = vmatpush1.msra.mxu0 0.0
      %1406 = vmatprep.subr.mxu0 0.0
      %1407 = vmatpush1.msra.mxu0 0.0
      %1408 = vmatprep.subr.mxu0 0.0
      %1409 = vmatpush1.msra.mxu0 0.0
      %1410 = vmatprep.subr.mxu0 0.0
      %1411 = vmatpush1.msra.mxu0 0.0
      %1412 = vmatprep.subr.mxu0 0.0
      %1413 = vmatpush1.msra.mxu0 0.0
      %1414 = vmatprep.subr.mxu0 0.0
      %1415 = vmatpush1.msra.mxu0 0.0
      %1416 = vmatprep.subr.mxu0 0.0
      %1417 = vmatpush1.msra.mxu0 0.0
      %1418 = vmatprep.subr.mxu0 0.0
      %1419 = vmatpush1.msra.mxu0 0.0
      %1420 = vmatprep.subr.mxu0 0.0
      %1421 = vmatpush1.msra.mxu0 0.0
      %1422 = vmatprep.subr.mxu0 0.0
      %1423 = vmatpush1.msra.mxu0 0.0
      %1424 = vmatprep.subr.mxu0 0.0
      %1425 = vmatpush1.msra.mxu0 0.0
      %1426 = vmatprep.subr.mxu0 0.0
      %1427 = vmatpush1.msra.mxu0 0.0
      %1428 = vmatprep.subr.mxu0 0.0
      %1429 = vmatpush1.msra.mxu0 0.0
      %1430 = vmatprep.subr.mxu0 0.0
      %1431 = vmatpush1.msra.mxu0 0.0
      %1432 = vmatprep.subr.mxu0 0.0
      %1433 = vmatpush1.msra.mxu0 0.0
      %1434 = vmatprep.subr.mxu0 0.0
      %1435 = vmatpush1.msra.mxu0 0.0
      %1436 = vmatprep.subr.mxu0 0.0
      %1437 = vmatpush1.msra.mxu0 0.0
      %1438 = vmatprep.subr.mxu0 0.0
      %1439 = vmatpush1.msra.mxu0 0.0
      %1440 = vmatprep.subr.mxu0 0.0
      %1441 = vmatpush1.msra.mxu0 0.0
      %1442 = vmatprep.subr.mxu0 0.0
      %1443 = vmatpush1.msra.mxu0 0.0
      %1444 = vmatprep.subr.mxu0 0.0
      %1445 = vmatpush1.msra.mxu0 0.0
      %1446 = vmatprep.subr.mxu0 0.0
      %1447 = vmatpush1.msra.mxu0 0.0
      %1448 = vmatprep.subr.mxu0 0.0
      %1449 = vmatpush1.msra.mxu0 0.0
      %1450 = vmatprep.subr.mxu0 0.0
      %1451 = vmatpush1.msra.mxu0 0.0
      %1452 = vmatprep.subr.mxu0 0.0
      %1453 = vmatpush1.msra.mxu0 0.0
      %1454 = vmatprep.subr.mxu0 0.0
      %1455 = vmatpush1.msra.mxu0 0.0
      %1456 = vmatprep.subr.mxu0 0.0
      %1457 = vmatpush1.msra.mxu0 0.0
      %1458 = vmatprep.mubr.f32.mxu0 0.0
      %1459 = vmatmul.mubr.f32.gmra.mrb[0].mxu0 %v1392
      %v1460 = vpop.f32.mrb[0].mxu0
      %v1461 = vadd.f32 0.0, %v1460
      %v1462 = vpop.f32.mrb[0].mxu0
      %v1463 = vadd.f32 0.0, %v1462
      %1464 = vdwg.mxu0
      %v1465 = vadd.f32 %v1373, %v1461
      %v1466 = vadd.f32 %v1374, %v1463
      %s1467 = scalar_lea.vmem %s2, 40
      %v1468 = vld [vmem:[%s1467] sm:$0xff]
      %1469 = vrot.lane.b32.xlu0 %v1277, 110
      %v1470 = vpop.permute.xlu0 %1469
      %1471 = vrot.lane.b32.xlu0 %v1278, 110
      %v1472 = vpop.permute.xlu0 %1471
      %1473 = vrot.lane.b32.xlu0 %v1279, 110
      %v1474 = vpop.permute.xlu0 %1473
      %1475 = vrot.lane.b32.xlu0 %v1280, 110
      %v1476 = vpop.permute.xlu0 %1475
      %v1477 = vsel %vm840, %v1470, %v1472
      %v1478 = vsel %vm840, %v1474, %v1476
      %v1484 = vsel %vm355, %v1468, 0
      %1486 = vmatprep.subr.mxu0 %v1472
      %1487 = vmatpush1.msra.mxu0 %v1477
      %1488 = vmatprep.subr.mxu0 %v1476
      %1489 = vmatpush1.msra.mxu0 %v1478
      %1490 = vmatprep.subr.mxu0 0.0
      %1491 = vmatpush1.msra.mxu0 0.0
      %1492 = vmatprep.subr.mxu0 0.0
      %1493 = vmatpush1.msra.mxu0 0.0
      %1494 = vmatprep.subr.mxu0 0.0
      %1495 = vmatpush1.msra.mxu0 0.0
      %1496 = vmatprep.subr.mxu0 0.0
      %1497 = vmatpush1.msra.mxu0 0.0
      %1498 = vmatprep.subr.mxu0 0.0
      %1499 = vmatpush1.msra.mxu0 0.0
      %1500 = vmatprep.subr.mxu0 0.0
      %1501 = vmatpush1.msra.mxu0 0.0
      %1502 = vmatprep.subr.mxu0 0.0
      %1503 = vmatpush1.msra.mxu0 0.0
      %1504 = vmatprep.subr.mxu0 0.0
      %1505 = vmatpush1.msra.mxu0 0.0
      %1506 = vmatprep.subr.mxu0 0.0
      %1507 = vmatpush1.msra.mxu0 0.0
      %1508 = vmatprep.subr.mxu0 0.0
      %1509 = vmatpush1.msra.mxu0 0.0
      %1510 = vmatprep.subr.mxu0 0.0
      %1511 = vmatpush1.msra.mxu0 0.0
      %1512 = vmatprep.subr.mxu0 0.0
      %1513 = vmatpush1.msra.mxu0 0.0
      %1514 = vmatprep.subr.mxu0 0.0
      %1515 = vmatpush1.msra.mxu0 0.0
      %1516 = vmatprep.subr.mxu0 0.0
      %1517 = vmatpush1.msra.mxu0 0.0
      %1518 = vmatprep.subr.mxu0 0.0
      %1519 = vmatpush1.msra.mxu0 0.0
      %1520 = vmatprep.subr.mxu0 0.0
      %1521 = vmatpush1.msra.mxu0 0.0
      %1522 = vmatprep.subr.mxu0 0.0
      %1523 = vmatpush1.msra.mxu0 0.0
      %1524 = vmatprep.subr.mxu0 0.0
      %1525 = vmatpush1.msra.mxu0 0.0
      %1526 = vmatprep.subr.mxu0 0.0
      %1527 = vmatpush1.msra.mxu0 0.0
      %1528 = vmatprep.subr.mxu0 0.0
      %1529 = vmatpush1.msra.mxu0 0.0
      %1530 = vmatprep.subr.mxu0 0.0
      %1531 = vmatpush1.msra.mxu0 0.0
      %1532 = vmatprep.subr.mxu0 0.0
      %1533 = vmatpush1.msra.mxu0 0.0
      %1534 = vmatprep.subr.mxu0 0.0
      %1535 = vmatpush1.msra.mxu0 0.0
      %1536 = vmatprep.subr.mxu0 0.0
      %1537 = vmatpush1.msra.mxu0 0.0
      %1538 = vmatprep.subr.mxu0 0.0
      %1539 = vmatpush1.msra.mxu0 0.0
      %1540 = vmatprep.subr.mxu0 0.0
      %1541 = vmatpush1.msra.mxu0 0.0
      %1542 = vmatprep.subr.mxu0 0.0
      %1543 = vmatpush1.msra.mxu0 0.0
      %1544 = vmatprep.subr.mxu0 0.0
      %1545 = vmatpush1.msra.mxu0 0.0
      %1546 = vmatprep.subr.mxu0 0.0
      %1547 = vmatpush1.msra.mxu0 0.0
      %1548 = vmatprep.subr.mxu0 0.0
      %1549 = vmatpush1.msra.mxu0 0.0
      %1550 = vmatprep.mubr.f32.mxu0 0.0
      %1551 = vmatmul.mubr.f32.gmra.mrb[0].mxu0 %v1484
      %v1552 = vpop.f32.mrb[0].mxu0
      %v1553 = vadd.f32 0.0, %v1552
      %v1554 = vpop.f32.mrb[0].mxu0
      %v1555 = vadd.f32 0.0, %v1554
      %1556 = vdwg.mxu0
      %v1557 = vadd.f32 %v1465, %v1553
      %v1558 = vadd.f32 %v1466, %v1555
      %s1559 = scalar_lea.vmem %s5, 8
      %v1560 = vld [vmem:[%s1559] sm:$0xff]
      %1562 = vset.pattern.permute.xlu0 0
      %1563 = vperm.xlu0 %1562, %v1560
      %v1564 = vpop.permute.xlu0 %1563
      %v1566 = vadd.f32 %v1557, %v1564
      %v1567 = vadd.f32 %v1558, %v1564
      %v1568 = vmul.f32 %v1566, %v402
      %v1569 = vmul.f32 %v1567, %v403
      %v1570 = vsel %vm355, %v1569, 0.0
      %v1571 = vadd.f32 %v1568, %v1570
      %1572 = vadd.xlane.f32.xlu0 %v1571
      %v1573 = vpop.xlane.xlu0 %1572
      %v1574 = vmul.f32 %v1573, 0.0078125
      %v1575 = vsub.f32 %v1566, %v1574
      %v1576 = vsub.f32 %v1567, %v1574
      %v1577 = vmul.f32 %v1575, %v1575
      %v1578 = vmul.f32 %v1576, %v1576
      %v1579 = vmul.f32 %v1577, %v402
      %v1580 = vmul.f32 %v1578, %v403
      %v1581 = vsel %vm355, %v1580, 0.0
      %v1582 = vadd.f32 %v1579, %v1581
      %1583 = vadd.xlane.f32.xlu0 %v1582
      %v1584 = vpop.xlane.xlu0 %1583
      %v1585 = vmul.f32 %v1584, 0.0078125
      %s1586 = scalar_lea.vmem %s6, 8
      %v1587 = vld [vmem:[%s1586] sm:$0xff]
      %v1588 = vadd.f32 %v1585, 1e-05
      %v1589 = vrsqrt.pop %v1588
      %v1590 = vmul.f32 %v1575, %v1589
      %v1591 = vmul.f32 %v1576, %v1589
      %1593 = vset.pattern.permute.xlu0 0
      %1594 = vperm.xlu0 %1593, %v1587
      %v1595 = vpop.permute.xlu0 %1594
      %v1597 = vmul.f32 %v1595, %v1590
      %v1598 = vmul.f32 %v1595, %v1591
      %s1599 = scalar_lea.vmem %s7, 8
      %v1600 = vld [vmem:[%s1599] sm:$0xff]
      %1602 = vset.pattern.permute.xlu0 0
      %1603 = vperm.xlu0 %1602, %v1600
      %v1604 = vpop.permute.xlu0 %1603
      %v1606 = vadd.f32 %v1597, %v1604
      %v1607 = vadd.f32 %v1598, %v1604
      %vm1608 = vcmp.gt.f32.partialorder %v1606, 0.0
      %vm1609 = vcmp.gt.f32.partialorder %v1607, 0.0
      %s1610 = scalar_lea.vmem %s8, 8
      %v1611 = vld [vmem:[%s1610] sm:$0xff]
      %1613 = vset.pattern.permute.xlu0 0
      %1614 = vperm.xlu0 %1613, %v1611
      %v1615 = vpop.permute.xlu0 %1614
      %v1617 = vmul.f32 %v1615, %v1606
      %v1618 = vmul.f32 %v1615, %v1607
      %v1619 = vsel %vm1608, %v1606, %v1617
      %v1620 = vsel %vm1609, %v1607, %v1618
      %v1621 = vmul.f32 %v1619, %v402
      %v1622 = vmul.f32 %v1620, %v403
      %1625 = vrot.lane.b32.xlu0 %v1621, 17
      %v1626 = vpop.permute.xlu0 %1625
      %1627 = vrot.lane.b32.xlu0 %v1622, 17
      %v1628 = vpop.permute.xlu0 %1627
      %v1629 = vsel %vm334, %v1626, %v1628
      %1632 = vst.msk [vmem:[#allocation2 + $0x20] sm:$0xff] %vm989, %v1626
      %1633 = vst.msk [vmem:[#allocation2 + $0x28] sm:$0xff] %vm991, %v1629
      %v1634 = vld [vmem:[%s3] sm:$0xff]
      %v1635 = vld [vmem:[#allocation2 + $0x18] sm:$0xff]
      %v1636 = vld [vmem:[#allocation2 + $0x20] sm:$0xff]
      %v1637 = vld [vmem:[#allocation2 + $0x30] sm:$0xff]
      %v1638 = vld [vmem:[#allocation2 + $0x38] sm:$0xff]
      %v1639 = vld [vmem:[#allocation2 + $0x48] sm:$0xff]
      %v1640 = vld [vmem:[#allocation2 + $0x50] sm:$0xff]
      %s1641 = scalar_lea.vmem %s3, 8
      %v1642 = vld [vmem:[%s1641] sm:$0xff]
      %1649 = vrot.lane.b32.xlu0 %v1635, 55
      %v1650 = vpop.permute.xlu0 %1649
      %1651 = vrot.lane.b32.xlu0 %v1636, 55
      %v1652 = vpop.permute.xlu0 %1651
      %1653 = vrot.lane.b32.xlu0 %v1637, 55
      %v1654 = vpop.permute.xlu0 %1653
      %1655 = vrot.lane.b32.xlu0 %v1638, 55
      %v1656 = vpop.permute.xlu0 %1655
      %1657 = vrot.lane.b32.xlu0 %v1639, 55
      %v1658 = vpop.permute.xlu0 %1657
      %1659 = vrot.lane.b32.xlu0 %v1640, 55
      %v1660 = vpop.permute.xlu0 %1659
      %vm1661 = vcmask 449536
      %v1662 = vsel %vm1661, %v1650, %v1652
      %v1663 = vsel %vm1661, %v1654, %v1656
      %v1664 = vsel %vm1661, %v1658, %v1660
      %vm1671 = vcmask 195584
      %v1673 = vsel %vm1671, %v1642, 0
      %1675 = vmatprep.subr.mxu0 %v1652
      %1676 = vmatpush1.msra.mxu0 %v1662
      %1677 = vmatprep.subr.mxu0 %v1656
      %1678 = vmatpush1.msra.mxu0 %v1663
      %1679 = vmatprep.subr.mxu0 %v1660
      %1680 = vmatpush1.msra.mxu0 %v1664
      %1681 = vmatprep.subr.mxu0 0.0
      %1682 = vmatpush1.msra.mxu0 0.0
      %1683 = vmatprep.subr.mxu0 0.0
      %1684 = vmatpush1.msra.mxu0 0.0
      %1685 = vmatprep.subr.mxu0 0.0
      %1686 = vmatpush1.msra.mxu0 0.0
      %1687 = vmatprep.subr.mxu0 0.0
      %1688 = vmatpush1.msra.mxu0 0.0
      %1689 = vmatprep.subr.mxu0 0.0
      %1690 = vmatpush1.msra.mxu0 0.0
      %1691 = vmatprep.subr.mxu0 0.0
      %1692 = vmatpush1.msra.mxu0 0.0
      %1693 = vmatprep.subr.mxu0 0.0
      %1694 = vmatpush1.msra.mxu0 0.0
      %1695 = vmatprep.subr.mxu0 0.0
      %1696 = vmatpush1.msra.mxu0 0.0
      %1697 = vmatprep.subr.mxu0 0.0
      %1698 = vmatpush1.msra.mxu0 0.0
      %1699 = vmatprep.subr.mxu0 0.0
      %1700 = vmatpush1.msra.mxu0 0.0
      %1701 = vmatprep.subr.mxu0 0.0
      %1702 = vmatpush1.msra.mxu0 0.0
      %1703 = vmatprep.subr.mxu0 0.0
      %1704 = vmatpush1.msra.mxu0 0.0
      %1705 = vmatprep.subr.mxu0 0.0
      %1706 = vmatpush1.msra.mxu0 0.0
      %1707 = vmatprep.subr.mxu0 0.0
      %1708 = vmatpush1.msra.mxu0 0.0
      %1709 = vmatprep.subr.mxu0 0.0
      %1710 = vmatpush1.msra.mxu0 0.0
      %1711 = vmatprep.subr.mxu0 0.0
      %1712 = vmatpush1.msra.mxu0 0.0
      %1713 = vmatprep.subr.mxu0 0.0
      %1714 = vmatpush1.msra.mxu0 0.0
      %1715 = vmatprep.subr.mxu0 0.0
      %1716 = vmatpush1.msra.mxu0 0.0
      %1717 = vmatprep.subr.mxu0 0.0
      %1718 = vmatpush1.msra.mxu0 0.0
      %1719 = vmatprep.subr.mxu0 0.0
      %1720 = vmatpush1.msra.mxu0 0.0
      %1721 = vmatprep.subr.mxu0 0.0
      %1722 = vmatpush1.msra.mxu0 0.0
      %1723 = vmatprep.subr.mxu0 0.0
      %1724 = vmatpush1.msra.mxu0 0.0
      %1725 = vmatprep.subr.mxu0 0.0
      %1726 = vmatpush1.msra.mxu0 0.0
      %1727 = vmatprep.subr.mxu0 0.0
      %1728 = vmatpush1.msra.mxu0 0.0
      %1729 = vmatprep.subr.mxu0 0.0
      %1730 = vmatpush1.msra.mxu0 0.0
      %1731 = vmatprep.subr.mxu0 0.0
      %1732 = vmatpush1.msra.mxu0 0.0
      %1733 = vmatprep.subr.mxu0 0.0
      %1734 = vmatpush1.msra.mxu0 0.0
      %1735 = vmatprep.subr.mxu0 0.0
      %1736 = vmatpush1.msra.mxu0 0.0
      %1737 = vmatprep.subr.mxu0 0.0
      %1738 = vmatpush1.msra.mxu0 0.0
      %1739 = vmatprep.mubr.f32.mxu0 0.0
      %1740 = vmatmul.mubr.f32.gmra.mrb[0].mxu0 %v1673
      %v1741 = vpop.f32.mrb[0].mxu0
      %v1742 = vadd.f32 0.0, %v1741
      %v1743 = vpop.f32.mrb[0].mxu0
      %v1744 = vadd.f32 0.0, %v1743
      %1745 = vdwg.mxu0
      %1746 = vrot.lane.b32.xlu0 %v1635, 56
      %v1747 = vpop.permute.xlu0 %1746
      %1748 = vrot.lane.b32.xlu0 %v1636, 56
      %v1749 = vpop.permute.xlu0 %1748
      %1750 = vrot.lane.b32.xlu0 %v1637, 56
      %v1751 = vpop.permute.xlu0 %1750
      %1752 = vrot.lane.b32.xlu0 %v1638, 56
      %v1753 = vpop.permute.xlu0 %1752
      %1754 = vrot.lane.b32.xlu0 %v1639, 56
      %v1755 = vpop.permute.xlu0 %1754
      %1756 = vrot.lane.b32.xlu0 %v1640, 56
      %v1757 = vpop.permute.xlu0 %1756
      %vm1758 = vcmask 457728
      %v1759 = vsel %vm1758, %v1747, %v1749
      %v1760 = vsel %vm1758, %v1751, %v1753
      %v1761 = vsel %vm1758, %v1755, %v1757
      %v1769 = vsel %vm1671, %v1634, 0
      %1771 = vmatprep.subr.mxu0 %v1749
      %1772 = vmatpush1.msra.mxu0 %v1759
      %1773 = vmatprep.subr.mxu0 %v1753
      %1774 = vmatpush1.msra.mxu0 %v1760
      %1775 = vmatprep.subr.mxu0 %v1757
      %1776 = vmatpush1.msra.mxu0 %v1761
      %1777 = vmatprep.subr.mxu0 0.0
      %1778 = vmatpush1.msra.mxu0 0.0
      %1779 = vmatprep.subr.mxu0 0.0
      %1780 = vmatpush1.msra.mxu0 0.0
      %1781 = vmatprep.subr.mxu0 0.0
      %1782 = vmatpush1.msra.mxu0 0.0
      %1783 = vmatprep.subr.mxu0 0.0
      %1784 = vmatpush1.msra.mxu0 0.0
      %1785 = vmatprep.subr.mxu0 0.0
      %1786 = vmatpush1.msra.mxu0 0.0
      %1787 = vmatprep.subr.mxu0 0.0
      %1788 = vmatpush1.msra.mxu0 0.0
      %1789 = vmatprep.subr.mxu0 0.0
      %1790 = vmatpush1.msra.mxu0 0.0
      %1791 = vmatprep.subr.mxu0 0.0
      %1792 = vmatpush1.msra.mxu0 0.0
      %1793 = vmatprep.subr.mxu0 0.0
      %1794 = vmatpush1.msra.mxu0 0.0
      %1795 = vmatprep.subr.mxu0 0.0
      %1796 = vmatpush1.msra.mxu0 0.0
      %1797 = vmatprep.subr.mxu0 0.0
      %1798 = vmatpush1.msra.mxu0 0.0
      %1799 = vmatprep.subr.mxu0 0.0
      %1800 = vmatpush1.msra.mxu0 0.0
      %1801 = vmatprep.subr.mxu0 0.0
      %1802 = vmatpush1.msra.mxu0 0.0
      %1803 = vmatprep.subr.mxu0 0.0
      %1804 = vmatpush1.msra.mxu0 0.0
      %1805 = vmatprep.subr.mxu0 0.0
      %1806 = vmatpush1.msra.mxu0 0.0
      %1807 = vmatprep.subr.mxu0 0.0
      %1808 = vmatpush1.msra.mxu0 0.0
      %1809 = vmatprep.subr.mxu0 0.0
      %1810 = vmatpush1.msra.mxu0 0.0
      %1811 = vmatprep.subr.mxu0 0.0
      %1812 = vmatpush1.msra.mxu0 0.0
      %1813 = vmatprep.subr.mxu0 0.0
      %1814 = vmatpush1.msra.mxu0 0.0
      %1815 = vmatprep.subr.mxu0 0.0
      %1816 = vmatpush1.msra.mxu0 0.0
      %1817 = vmatprep.subr.mxu0 0.0
      %1818 = vmatpush1.msra.mxu0 0.0
      %1819 = vmatprep.subr.mxu0 0.0
      %1820 = vmatpush1.msra.mxu0 0.0
      %1821 = vmatprep.subr.mxu0 0.0
      %1822 = vmatpush1.msra.mxu0 0.0
      %1823 = vmatprep.subr.mxu0 0.0
      %1824 = vmatpush1.msra.mxu0 0.0
      %1825 = vmatprep.subr.mxu0 0.0
      %1826 = vmatpush1.msra.mxu0 0.0
      %1827 = vmatprep.subr.mxu0 0.0
      %1828 = vmatpush1.msra.mxu0 0.0
      %1829 = vmatprep.subr.mxu0 0.0
      %1830 = vmatpush1.msra.mxu0 0.0
      %1831 = vmatprep.subr.mxu0 0.0
      %1832 = vmatpush1.msra.mxu0 0.0
      %1833 = vmatprep.subr.mxu0 0.0
      %1834 = vmatpush1.msra.mxu0 0.0
      %1835 = vmatprep.mubr.f32.mxu0 0.0
      %1836 = vmatmul.mubr.f32.gmra.mrb[0].mxu0 %v1769
      %v1837 = vpop.f32.mrb[0].mxu0
      %v1838 = vadd.f32 %v1742, %v1837
      %v1839 = vpop.f32.mrb[0].mxu0
      %v1840 = vadd.f32 %v1744, %v1839
      %1841 = vdwg.mxu0
      %s1842 = scalar_lea.vmem %s3, 16
      %v1843 = vld [vmem:[%s1842] sm:$0xff]
      %1844 = vrot.lane.b32.xlu0 %v1635, 54
      %v1845 = vpop.permute.xlu0 %1844
      %1846 = vrot.lane.b32.xlu0 %v1636, 54
      %v1847 = vpop.permute.xlu0 %1846
      %1848 = vrot.lane.b32.xlu0 %v1637, 54
      %v1849 = vpop.permute.xlu0 %1848
      %1850 = vrot.lane.b32.xlu0 %v1638, 54
      %v1851 = vpop.permute.xlu0 %1850
      %1852 = vrot.lane.b32.xlu0 %v1639, 54
      %v1853 = vpop.permute.xlu0 %1852
      %1854 = vrot.lane.b32.xlu0 %v1640, 54
      %v1855 = vpop.permute.xlu0 %1854
      %vm1856 = vcmask 441344
      %v1857 = vsel %vm1856, %v1845, %v1847
      %v1858 = vsel %vm1856, %v1849, %v1851
      %v1859 = vsel %vm1856, %v1853, %v1855
      %v1867 = vsel %vm1671, %v1843, 0
      %1869 = vmatprep.subr.mxu0 %v1847
      %1870 = vmatpush1.msra.mxu0 %v1857
      %1871 = vmatprep.subr.mxu0 %v1851
      %1872 = vmatpush1.msra.mxu0 %v1858
      %1873 = vmatprep.subr.mxu0 %v1855
      %1874 = vmatpush1.msra.mxu0 %v1859
      %1875 = vmatprep.subr.mxu0 0.0
      %1876 = vmatpush1.msra.mxu0 0.0
      %1877 = vmatprep.subr.mxu0 0.0
      %1878 = vmatpush1.msra.mxu0 0.0
      %1879 = vmatprep.subr.mxu0 0.0
      %1880 = vmatpush1.msra.mxu0 0.0
      %1881 = vmatprep.subr.mxu0 0.0
      %1882 = vmatpush1.msra.mxu0 0.0
      %1883 = vmatprep.subr.mxu0 0.0
      %1884 = vmatpush1.msra.mxu0 0.0
      %1885 = vmatprep.subr.mxu0 0.0
      %1886 = vmatpush1.msra.mxu0 0.0
      %1887 = vmatprep.subr.mxu0 0.0
      %1888 = vmatpush1.msra.mxu0 0.0
      %1889 = vmatprep.subr.mxu0 0.0
      %1890 = vmatpush1.msra.mxu0 0.0
      %1891 = vmatprep.subr.mxu0 0.0
      %1892 = vmatpush1.msra.mxu0 0.0
      %1893 = vmatprep.subr.mxu0 0.0
      %1894 = vmatpush1.msra.mxu0 0.0
      %1895 = vmatprep.subr.mxu0 0.0
      %1896 = vmatpush1.msra.mxu0 0.0
      %1897 = vmatprep.subr.mxu0 0.0
      %1898 = vmatpush1.msra.mxu0 0.0
      %1899 = vmatprep.subr.mxu0 0.0
      %1900 = vmatpush1.msra.mxu0 0.0
      %1901 = vmatprep.subr.mxu0 0.0
      %1902 = vmatpush1.msra.mxu0 0.0
      %1903 = vmatprep.subr.mxu0 0.0
      %1904 = vmatpush1.msra.mxu0 0.0
      %1905 = vmatprep.subr.mxu0 0.0
      %1906 = vmatpush1.msra.mxu0 0.0
      %1907 = vmatprep.subr.mxu0 0.0
      %1908 = vmatpush1.msra.mxu0 0.0
      %1909 = vmatprep.subr.mxu0 0.0
      %1910 = vmatpush1.msra.mxu0 0.0
      %1911 = vmatprep.subr.mxu0 0.0
      %1912 = vmatpush1.msra.mxu0 0.0
      %1913 = vmatprep.subr.mxu0 0.0
      %1914 = vmatpush1.msra.mxu0 0.0
      %1915 = vmatprep.subr.mxu0 0.0
      %1916 = vmatpush1.msra.mxu0 0.0
      %1917 = vmatprep.subr.mxu0 0.0
      %1918 = vmatpush1.msra.mxu0 0.0
      %1919 = vmatprep.subr.mxu0 0.0
      %1920 = vmatpush1.msra.mxu0 0.0
      %1921 = vmatprep.subr.mxu0 0.0
      %1922 = vmatpush1.msra.mxu0 0.0
      %1923 = vmatprep.subr.mxu0 0.0
      %1924 = vmatpush1.msra.mxu0 0.0
      %1925 = vmatprep.subr.mxu0 0.0
      %1926 = vmatpush1.msra.mxu0 0.0
      %1927 = vmatprep.subr.mxu0 0.0
      %1928 = vmatpush1.msra.mxu0 0.0
      %1929 = vmatprep.subr.mxu0 0.0
      %1930 = vmatpush1.msra.mxu0 0.0
      %1931 = vmatprep.subr.mxu0 0.0
      %1932 = vmatpush1.msra.mxu0 0.0
      %1933 = vmatprep.mubr.f32.mxu0 0.0
      %1934 = vmatmul.mubr.f32.gmra.mrb[0].mxu0 %v1867
      %v1935 = vpop.f32.mrb[0].mxu0
      %v1936 = vadd.f32 0.0, %v1935
      %v1937 = vpop.f32.mrb[0].mxu0
      %v1938 = vadd.f32 0.0, %v1937
      %1939 = vdwg.mxu0
      %v1940 = vadd.f32 %v1838, %v1936
      %v1941 = vadd.f32 %v1840, %v1938
      %s1942 = scalar_lea.vmem %s3, 24
      %v1943 = vld [vmem:[%s1942] sm:$0xff]
      %v1944 = vld [vmem:[#allocation2 + $0x20] sm:$0xff]
      %v1945 = vld [vmem:[#allocation2 + $0x28] sm:$0xff]
      %v1946 = vld [vmem:[#allocation2 + $0x38] sm:$0xff]
      %v1947 = vld [vmem:[#allocation2 + $0x40] sm:$0xff]
      %v1948 = vld [vmem:[#allocation2 + $0x50] sm:$0xff]
      %v1949 = vld [vmem:[#allocation2 + $0x58] sm:$0xff]
      %1956 = vrot.lane.b32.xlu0 %v1944, 112
      %v1957 = vpop.permute.xlu0 %1956
      %1958 = vrot.lane.b32.xlu0 %v1945, 112
      %v1959 = vpop.permute.xlu0 %1958
      %1960 = vrot.lane.b32.xlu0 %v1946, 112
      %v1961 = vpop.permute.xlu0 %1960
      %1962 = vrot.lane.b32.xlu0 %v1947, 112
      %v1963 = vpop.permute.xlu0 %1962
      %1964 = vrot.lane.b32.xlu0 %v1948, 112
      %v1965 = vpop.permute.xlu0 %1964
      %1966 = vrot.lane.b32.xlu0 %v1949, 112
      %v1967 = vpop.permute.xlu0 %1966
      %v1968 = vsel %vm668, %v1957, %v1959
      %v1969 = vsel %vm668, %v1961, %v1963
      %v1970 = vsel %vm668, %v1965, %v1967
      %v1978 = vsel %vm1671, %v1943, 0
      %1980 = vmatprep.subr.mxu0 %v1959
      %1981 = vmatpush1.msra.mxu0 %v1968
      %1982 = vmatprep.subr.mxu0 %v1963
      %1983 = vmatpush1.msra.mxu0 %v1969
      %1984 = vmatprep.subr.mxu0 %v1967
      %1985 = vmatpush1.msra.mxu0 %v1970
      %1986 = vmatprep.subr.mxu0 0.0
      %1987 = vmatpush1.msra.mxu0 0.0
      %1988 = vmatprep.subr.mxu0 0.0
      %1989 = vmatpush1.msra.mxu0 0.0
      %1990 = vmatprep.subr.mxu0 0.0
      %1991 = vmatpush1.msra.mxu0 0.0
      %1992 = vmatprep.subr.mxu0 0.0
      %1993 = vmatpush1.msra.mxu0 0.0
      %1994 = vmatprep.subr.mxu0 0.0
      %1995 = vmatpush1.msra.mxu0 0.0
      %1996 = vmatprep.subr.mxu0 0.0
      %1997 = vmatpush1.msra.mxu0 0.0
      %1998 = vmatprep.subr.mxu0 0.0
      %1999 = vmatpush1.msra.mxu0 0.0
      %2000 = vmatprep.subr.mxu0 0.0
      %2001 = vmatpush1.msra.mxu0 0.0
      %2002 = vmatprep.subr.mxu0 0.0
      %2003 = vmatpush1.msra.mxu0 0.0
      %2004 = vmatprep.subr.mxu0 0.0
      %2005 = vmatpush1.msra.mxu0 0.0
      %2006 = vmatprep.subr.mxu0 0.0
      %2007 = vmatpush1.msra.mxu0 0.0
      %2008 = vmatprep.subr.mxu0 0.0
      %2009 = vmatpush1.msra.mxu0 0.0
      %2010 = vmatprep.subr.mxu0 0.0
      %2011 = vmatpush1.msra.mxu0 0.0
      %2012 = vmatprep.subr.mxu0 0.0
      %2013 = vmatpush1.msra.mxu0 0.0
      %2014 = vmatprep.subr.mxu0 0.0
      %2015 = vmatpush1.msra.mxu0 0.0
      %2016 = vmatprep.subr.mxu0 0.0
      %2017 = vmatpush1.msra.mxu0 0.0
      %2018 = vmatprep.subr.mxu0 0.0
      %2019 = vmatpush1.msra.mxu0 0.0
      %2020 = vmatprep.subr.mxu0 0.0
      %2021 = vmatpush1.msra.mxu0 0.0
      %2022 = vmatprep.subr.mxu0 0.0
      %2023 = vmatpush1.msra.mxu0 0.0
      %2024 = vmatprep.subr.mxu0 0.0
      %2025 = vmatpush1.msra.mxu0 0.0
      %2026 = vmatprep.subr.mxu0 0.0
      %2027 = vmatpush1.msra.mxu0 0.0
      %2028 = vmatprep.subr.mxu0 0.0
      %2029 = vmatpush1.msra.mxu0 0.0
      %2030 = vmatprep.subr.mxu0 0.0
      %2031 = vmatpush1.msra.mxu0 0.0
      %2032 = vmatprep.subr.mxu0 0.0
      %2033 = vmatpush1.msra.mxu0 0.0
      %2034 = vmatprep.subr.mxu0 0.0
      %2035 = vmatpush1.msra.mxu0 0.0
      %2036 = vmatprep.subr.mxu0 0.0
      %2037 = vmatpush1.msra.mxu0 0.0
      %2038 = vmatprep.subr.mxu0 0.0
      %2039 = vmatpush1.msra.mxu0 0.0
      %2040 = vmatprep.subr.mxu0 0.0
      %2041 = vmatpush1.msra.mxu0 0.0
      %2042 = vmatprep.subr.mxu0 0.0
      %2043 = vmatpush1.msra.mxu0 0.0
      %2044 = vmatprep.mubr.f32.mxu0 0.0
      %2045 = vmatmul.mubr.f32.gmra.mrb[0].mxu0 %v1978
      %v2046 = vpop.f32.mrb[0].mxu0
      %v2047 = vadd.f32 0.0, %v2046
      %v2048 = vpop.f32.mrb[0].mxu0
      %v2049 = vadd.f32 0.0, %v2048
      %2050 = vdwg.mxu0
      %v2051 = vadd.f32 %v1940, %v2047
      %v2052 = vadd.f32 %v1941, %v2049
      %s2053 = scalar_lea.vmem %s3, 32
      %v2054 = vld [vmem:[%s2053] sm:$0xff]
      %2055 = vrot.lane.b32.xlu0 %v1944, 111
      %v2056 = vpop.permute.xlu0 %2055
      %2057 = vrot.lane.b32.xlu0 %v1945, 111
      %v2058 = vpop.permute.xlu0 %2057
      %2059 = vrot.lane.b32.xlu0 %v1946, 111
      %v2060 = vpop.permute.xlu0 %2059
      %2061 = vrot.lane.b32.xlu0 %v1947, 111
      %v2062 = vpop.permute.xlu0 %2061
      %2063 = vrot.lane.b32.xlu0 %v1948, 111
      %v2064 = vpop.permute.xlu0 %2063
      %2065 = vrot.lane.b32.xlu0 %v1949, 111
      %v2066 = vpop.permute.xlu0 %2065
      %v2067 = vsel %vm754, %v2056, %v2058
      %v2068 = vsel %vm754, %v2060, %v2062
      %v2069 = vsel %vm754, %v2064, %v2066
      %v2077 = vsel %vm1671, %v2054, 0
      %2079 = vmatprep.subr.mxu0 %v2058
      %2080 = vmatpush1.msra.mxu0 %v2067
      %2081 = vmatprep.subr.mxu0 %v2062
      %2082 = vmatpush1.msra.mxu0 %v2068
      %2083 = vmatprep.subr.mxu0 %v2066
      %2084 = vmatpush1.msra.mxu0 %v2069
      %2085 = vmatprep.subr.mxu0 0.0
      %2086 = vmatpush1.msra.mxu0 0.0
      %2087 = vmatprep.subr.mxu0 0.0
      %2088 = vmatpush1.msra.mxu0 0.0
      %2089 = vmatprep.subr.mxu0 0.0
      %2090 = vmatpush1.msra.mxu0 0.0
      %2091 = vmatprep.subr.mxu0 0.0
      %2092 = vmatpush1.msra.mxu0 0.0
      %2093 = vmatprep.subr.mxu0 0.0
      %2094 = vmatpush1.msra.mxu0 0.0
      %2095 = vmatprep.subr.mxu0 0.0
      %2096 = vmatpush1.msra.mxu0 0.0
      %2097 = vmatprep.subr.mxu0 0.0
      %2098 = vmatpush1.msra.mxu0 0.0
      %2099 = vmatprep.subr.mxu0 0.0
      %2100 = vmatpush1.msra.mxu0 0.0
      %2101 = vmatprep.subr.mxu0 0.0
      %2102 = vmatpush1.msra.mxu0 0.0
      %2103 = vmatprep.subr.mxu0 0.0
      %2104 = vmatpush1.msra.mxu0 0.0
      %2105 = vmatprep.subr.mxu0 0.0
      %2106 = vmatpush1.msra.mxu0 0.0
      %2107 = vmatprep.subr.mxu0 0.0
      %2108 = vmatpush1.msra.mxu0 0.0
      %2109 = vmatprep.subr.mxu0 0.0
      %2110 = vmatpush1.msra.mxu0 0.0
      %2111 = vmatprep.subr.mxu0 0.0
      %2112 = vmatpush1.msra.mxu0 0.0
      %2113 = vmatprep.subr.mxu0 0.0
      %2114 = vmatpush1.msra.mxu0 0.0
      %2115 = vmatprep.subr.mxu0 0.0
      %2116 = vmatpush1.msra.mxu0 0.0
      %2117 = vmatprep.subr.mxu0 0.0
      %2118 = vmatpush1.msra.mxu0 0.0
      %2119 = vmatprep.subr.mxu0 0.0
      %2120 = vmatpush1.msra.mxu0 0.0
      %2121 = vmatprep.subr.mxu0 0.0
      %2122 = vmatpush1.msra.mxu0 0.0
      %2123 = vmatprep.subr.mxu0 0.0
      %2124 = vmatpush1.msra.mxu0 0.0
      %2125 = vmatprep.subr.mxu0 0.0
      %2126 = vmatpush1.msra.mxu0 0.0
      %2127 = vmatprep.subr.mxu0 0.0
      %2128 = vmatpush1.msra.mxu0 0.0
      %2129 = vmatprep.subr.mxu0 0.0
      %2130 = vmatpush1.msra.mxu0 0.0
      %2131 = vmatprep.subr.mxu0 0.0
      %2132 = vmatpush1.msra.mxu0 0.0
      %2133 = vmatprep.subr.mxu0 0.0
      %2134 = vmatpush1.msra.mxu0 0.0
      %2135 = vmatprep.subr.mxu0 0.0
      %2136 = vmatpush1.msra.mxu0 0.0
      %2137 = vmatprep.subr.mxu0 0.0
      %2138 = vmatpush1.msra.mxu0 0.0
      %2139 = vmatprep.subr.mxu0 0.0
      %2140 = vmatpush1.msra.mxu0 0.0
      %2141 = vmatprep.subr.mxu0 0.0
      %2142 = vmatpush1.msra.mxu0 0.0
      %2143 = vmatprep.mubr.f32.mxu0 0.0
      %2144 = vmatmul.mubr.f32.gmra.mrb[0].mxu0 %v2077
      %v2145 = vpop.f32.mrb[0].mxu0
      %v2146 = vadd.f32 0.0, %v2145
      %v2147 = vpop.f32.mrb[0].mxu0
      %v2148 = vadd.f32 0.0, %v2147
      %2149 = vdwg.mxu0
      %v2150 = vadd.f32 %v2051, %v2146
      %v2151 = vadd.f32 %v2052, %v2148
      %s2152 = scalar_lea.vmem %s3, 40
      %v2153 = vld [vmem:[%s2152] sm:$0xff]
      %2154 = vrot.lane.b32.xlu0 %v1944, 110
      %v2155 = vpop.permute.xlu0 %2154
      %2156 = vrot.lane.b32.xlu0 %v1945, 110
      %v2157 = vpop.permute.xlu0 %2156
      %2158 = vrot.lane.b32.xlu0 %v1946, 110
      %v2159 = vpop.permute.xlu0 %2158
      %2160 = vrot.lane.b32.xlu0 %v1947, 110
      %v2161 = vpop.permute.xlu0 %2160
      %2162 = vrot.lane.b32.xlu0 %v1948, 110
      %v2163 = vpop.permute.xlu0 %2162
      %2164 = vrot.lane.b32.xlu0 %v1949, 110
      %v2165 = vpop.permute.xlu0 %2164
      %v2166 = vsel %vm840, %v2155, %v2157
      %v2167 = vsel %vm840, %v2159, %v2161
      %v2168 = vsel %vm840, %v2163, %v2165
      %v2176 = vsel %vm1671, %v2153, 0
      %2178 = vmatprep.subr.mxu0 %v2157
      %2179 = vmatpush1.msra.mxu0 %v2166
      %2180 = vmatprep.subr.mxu0 %v2161
      %2181 = vmatpush1.msra.mxu0 %v2167
      %2182 = vmatprep.subr.mxu0 %v2165
      %2183 = vmatpush1.msra.mxu0 %v2168
      %2184 = vmatprep.subr.mxu0 0.0
      %2185 = vmatpush1.msra.mxu0 0.0
      %2186 = vmatprep.subr.mxu0 0.0
      %2187 = vmatpush1.msra.mxu0 0.0
      %2188 = vmatprep.subr.mxu0 0.0
      %2189 = vmatpush1.msra.mxu0 0.0
      %2190 = vmatprep.subr.mxu0 0.0
      %2191 = vmatpush1.msra.mxu0 0.0
      %2192 = vmatprep.subr.mxu0 0.0
      %2193 = vmatpush1.msra.mxu0 0.0
      %2194 = vmatprep.subr.mxu0 0.0
      %2195 = vmatpush1.msra.mxu0 0.0
      %2196 = vmatprep.subr.mxu0 0.0
      %2197 = vmatpush1.msra.mxu0 0.0
      %2198 = vmatprep.subr.mxu0 0.0
      %2199 = vmatpush1.msra.mxu0 0.0
      %2200 = vmatprep.subr.mxu0 0.0
      %2201 = vmatpush1.msra.mxu0 0.0
      %2202 = vmatprep.subr.mxu0 0.0
      %2203 = vmatpush1.msra.mxu0 0.0
      %2204 = vmatprep.subr.mxu0 0.0
      %2205 = vmatpush1.msra.mxu0 0.0
      %2206 = vmatprep.subr.mxu0 0.0
      %2207 = vmatpush1.msra.mxu0 0.0
      %2208 = vmatprep.subr.mxu0 0.0
      %2209 = vmatpush1.msra.mxu0 0.0
      %2210 = vmatprep.subr.mxu0 0.0
      %2211 = vmatpush1.msra.mxu0 0.0
      %2212 = vmatprep.subr.mxu0 0.0
      %2213 = vmatpush1.msra.mxu0 0.0
      %2214 = vmatprep.subr.mxu0 0.0
      %2215 = vmatpush1.msra.mxu0 0.0
      %2216 = vmatprep.subr.mxu0 0.0
      %2217 = vmatpush1.msra.mxu0 0.0
      %2218 = vmatprep.subr.mxu0 0.0
      %2219 = vmatpush1.msra.mxu0 0.0
      %2220 = vmatprep.subr.mxu0 0.0
      %2221 = vmatpush1.msra.mxu0 0.0
      %2222 = vmatprep.subr.mxu0 0.0
      %2223 = vmatpush1.msra.mxu0 0.0
      %2224 = vmatprep.subr.mxu0 0.0
      %2225 = vmatpush1.msra.mxu0 0.0
      %2226 = vmatprep.subr.mxu0 0.0
      %2227 = vmatpush1.msra.mxu0 0.0
      %2228 = vmatprep.subr.mxu0 0.0
      %2229 = vmatpush1.msra.mxu0 0.0
      %2230 = vmatprep.subr.mxu0 0.0
      %2231 = vmatpush1.msra.mxu0 0.0
      %2232 = vmatprep.subr.mxu0 0.0
      %2233 = vmatpush1.msra.mxu0 0.0
      %2234 = vmatprep.subr.mxu0 0.0
      %2235 = vmatpush1.msra.mxu0 0.0
      %2236 = vmatprep.subr.mxu0 0.0
      %2237 = vmatpush1.msra.mxu0 0.0
      %2238 = vmatprep.subr.mxu0 0.0
      %2239 = vmatpush1.msra.mxu0 0.0
      %2240 = vmatprep.subr.mxu0 0.0
      %2241 = vmatpush1.msra.mxu0 0.0
      %2242 = vmatprep.mubr.f32.mxu0 0.0
      %2243 = vmatmul.mubr.f32.gmra.mrb[0].mxu0 %v2176
      %v2244 = vpop.f32.mrb[0].mxu0
      %v2245 = vadd.f32 0.0, %v2244
      %v2246 = vpop.f32.mrb[0].mxu0
      %v2247 = vadd.f32 0.0, %v2246
      %2248 = vdwg.mxu0
      %v2249 = vadd.f32 %v2150, %v2245
      %v2250 = vadd.f32 %v2151, %v2247
      %s2251 = scalar_lea.vmem %s5, 16
      %v2252 = vld [vmem:[%s2251] sm:$0xff]
      %2254 = vset.pattern.permute.xlu0 0
      %2255 = vperm.xlu0 %2254, %v2252
      %v2256 = vpop.permute.xlu0 %2255
      %v2258 = vadd.f32 %v2249, %v2256
      %v2259 = vadd.f32 %v2250, %v2256
      %v2260 = vmul.f32 %v2258, %v402
      %v2261 = vmul.f32 %v2259, %v403
      %v2262 = vsel %vm355, %v2261, 0.0
      %v2263 = vadd.f32 %v2260, %v2262
      %2264 = vadd.xlane.f32.xlu0 %v2263
      %v2265 = vpop.xlane.xlu0 %2264
      %v2266 = vmul.f32 %v2265, 0.0078125
      %v2267 = vsub.f32 %v2258, %v2266
      %v2268 = vsub.f32 %v2259, %v2266
      %v2269 = vmul.f32 %v2267, %v2267
      %v2270 = vmul.f32 %v2268, %v2268
      %v2271 = vmul.f32 %v2269, %v402
      %v2272 = vmul.f32 %v2270, %v403
      %v2273 = vsel %vm355, %v2272, 0.0
      %v2274 = vadd.f32 %v2271, %v2273
      %2275 = vadd.xlane.f32.xlu0 %v2274
      %v2276 = vpop.xlane.xlu0 %2275
      %v2277 = vmul.f32 %v2276, 0.0078125
      %s2278 = scalar_lea.vmem %s6, 16
      %v2279 = vld [vmem:[%s2278] sm:$0xff]
      %v2280 = vadd.f32 %v2277, 1e-05
      %v2281 = vrsqrt.pop %v2280
      %v2282 = vmul.f32 %v2267, %v2281
      %v2283 = vmul.f32 %v2268, %v2281
      %2285 = vset.pattern.permute.xlu0 0
      %2286 = vperm.xlu0 %2285, %v2279
      %v2287 = vpop.permute.xlu0 %2286
      %v2289 = vmul.f32 %v2287, %v2282
      %v2290 = vmul.f32 %v2287, %v2283
      %s2291 = scalar_lea.vmem %s7, 16
      %v2292 = vld [vmem:[%s2291] sm:$0xff]
      %2294 = vset.pattern.permute.xlu0 0
      %2295 = vperm.xlu0 %2294, %v2292
      %v2296 = vpop.permute.xlu0 %2295
      %v2298 = vadd.f32 %v2289, %v2296
      %v2299 = vadd.f32 %v2290, %v2296
      %vm2300 = vcmp.gt.f32.partialorder %v2298, 0.0
      %vm2301 = vcmp.gt.f32.partialorder %v2299, 0.0
      %s2302 = scalar_lea.vmem %s8, 16
      %v2303 = vld [vmem:[%s2302] sm:$0xff]
      %2305 = vset.pattern.permute.xlu0 0
      %2306 = vperm.xlu0 %2305, %v2303
      %v2307 = vpop.permute.xlu0 %2306
      %v2309 = vmul.f32 %v2307, %v2298
      %v2310 = vmul.f32 %v2307, %v2299
      %v2311 = vsel %vm2300, %v2298, %v2309
      %v2312 = vsel %vm2301, %v2299, %v2310
      %v2313 = vmul.f32 %v2311, %v402
      %v2314 = vmul.f32 %v2312, %v403
      %2317 = vrot.lane.b32.xlu0 %v2313, 17
      %v2318 = vpop.permute.xlu0 %2317
      %2319 = vrot.lane.b32.xlu0 %v2314, 17
      %v2320 = vpop.permute.xlu0 %2319
      %v2321 = vsel %vm334, %v2318, %v2320
      %2324 = vst.msk [vmem:[#allocation2 + $0x8] sm:$0xff] %vm989, %v2318
      %2325 = vst.msk [vmem:[#allocation2 + $0x10] sm:$0xff] %vm991, %v2321
      %v2326 = vld [vmem:[%s4] sm:$0xff]
      %v2327 = vld [vmem:[#allocation2] sm:$0xff]
      %v2328 = vld [vmem:[#allocation2 + $0x8] sm:$0xff]
      %v2329 = vld [vmem:[#allocation2 + $0x18] sm:$0xff]
      %v2330 = vld [vmem:[#allocation2 + $0x20] sm:$0xff]
      %v2331 = vld [vmem:[#allocation2 + $0x30] sm:$0xff]
      %v2332 = vld [vmem:[#allocation2 + $0x38] sm:$0xff]
      %v2333 = vld [vmem:[#allocation2 + $0x48] sm:$0xff]
      %v2334 = vld [vmem:[#allocation2 + $0x50] sm:$0xff]
      %s2335 = scalar_lea.vmem %s4, 8
      %v2336 = vld [vmem:[%s2335] sm:$0xff]
      %2345 = vrot.lane.b32.xlu0 %v2327, 127
      %v2346 = vpop.permute.xlu0 %2345
      %2347 = vrot.lane.b32.xlu0 %v2328, 127
      %v2348 = vpop.permute.xlu0 %2347
      %2349 = vrot.lane.b32.xlu0 %v2329, 127
      %v2350 = vpop.permute.xlu0 %2349
      %2351 = vrot.lane.b32.xlu0 %v2330, 127
      %v2352 = vpop.permute.xlu0 %2351
      %2353 = vrot.lane.b32.xlu0 %v2331, 127
      %v2354 = vpop.permute.xlu0 %2353
      %2355 = vrot.lane.b32.xlu0 %v2332, 127
      %v2356 = vpop.permute.xlu0 %2355
      %2357 = vrot.lane.b32.xlu0 %v2333, 127
      %v2358 = vpop.permute.xlu0 %2357
      %2359 = vrot.lane.b32.xlu0 %v2334, 127
      %v2360 = vpop.permute.xlu0 %2359
      %vm2361 = vcmask 1039360
      %v2362 = vsel %vm2361, %v2346, %v2348
      %v2363 = vsel %vm2361, %v2350, %v2352
      %v2364 = vsel %vm2361, %v2354, %v2356
      %v2365 = vsel %vm2361, %v2358, %v2360
      %v2375 = vsel %vm361, %v2336, 0
      %2377 = vmatprep.subr.mxu0 %v2348
      %2378 = vmatpush1.msra.mxu0 %v2362
      %2379 = vmatprep.subr.mxu0 %v2352
      %2380 = vmatpush1.msra.mxu0 %v2363
      %2381 = vmatprep.subr.mxu0 %v2356
      %2382 = vmatpush1.msra.mxu0 %v2364
      %2383 = vmatprep.subr.mxu0 %v2360
      %2384 = vmatpush1.msra.mxu0 %v2365
      %2385 = vmatprep.subr.mxu0 0.0
      %2386 = vmatpush1.msra.mxu0 0.0
      %2387 = vmatprep.subr.mxu0 0.0
      %2388 = vmatpush1.msra.mxu0 0.0
      %2389 = vmatprep.subr.mxu0 0.0
      %2390 = vmatpush1.msra.mxu0 0.0
      %2391 = vmatprep.subr.mxu0 0.0
      %2392 = vmatpush1.msra.mxu0 0.0
      %2393 = vmatprep.subr.mxu0 0.0
      %2394 = vmatpush1.msra.mxu0 0.0
      %2395 = vmatprep.subr.mxu0 0.0
      %2396 = vmatpush1.msra.mxu0 0.0
      %2397 = vmatprep.subr.mxu0 0.0
      %2398 = vmatpush1.msra.mxu0 0.0
      %2399 = vmatprep.subr.mxu0 0.0
      %2400 = vmatpush1.msra.mxu0 0.0
      %2401 = vmatprep.subr.mxu0 0.0
      %2402 = vmatpush1.msra.mxu0 0.0
      %2403 = vmatprep.subr.mxu0 0.0
      %2404 = vmatpush1.msra.mxu0 0.0
      %2405 = vmatprep.subr.mxu0 0.0
      %2406 = vmatpush1.msra.mxu0 0.0
      %2407 = vmatprep.subr.mxu0 0.0
      %2408 = vmatpush1.msra.mxu0 0.0
      %2409 = vmatprep.subr.mxu0 0.0
      %2410 = vmatpush1.msra.mxu0 0.0
      %2411 = vmatprep.subr.mxu0 0.0
      %2412 = vmatpush1.msra.mxu0 0.0
      %2413 = vmatprep.subr.mxu0 0.0
      %2414 = vmatpush1.msra.mxu0 0.0
      %2415 = vmatprep.subr.mxu0 0.0
      %2416 = vmatpush1.msra.mxu0 0.0
      %2417 = vmatprep.subr.mxu0 0.0
      %2418 = vmatpush1.msra.mxu0 0.0
      %2419 = vmatprep.subr.mxu0 0.0
      %2420 = vmatpush1.msra.mxu0 0.0
      %2421 = vmatprep.subr.mxu0 0.0
      %2422 = vmatpush1.msra.mxu0 0.0
      %2423 = vmatprep.subr.mxu0 0.0
      %2424 = vmatpush1.msra.mxu0 0.0
      %2425 = vmatprep.subr.mxu0 0.0
      %2426 = vmatpush1.msra.mxu0 0.0
      %2427 = vmatprep.subr.mxu0 0.0
      %2428 = vmatpush1.msra.mxu0 0.0
      %2429 = vmatprep.subr.mxu0 0.0
      %2430 = vmatpush1.msra.mxu0 0.0
      %2431 = vmatprep.subr.mxu0 0.0
      %2432 = vmatpush1.msra.mxu0 0.0
      %2433 = vmatprep.subr.mxu0 0.0
      %2434 = vmatpush1.msra.mxu0 0.0
      %2435 = vmatprep.subr.mxu0 0.0
      %2436 = vmatpush1.msra.mxu0 0.0
      %2437 = vmatprep.subr.mxu0 0.0
      %2438 = vmatpush1.msra.mxu0 0.0
      %2439 = vmatprep.subr.mxu0 0.0
      %2440 = vmatpush1.msra.mxu0 0.0
      %2441 = vmatprep.mubr.f32.mxu0 0.0
      %2442 = vmatmul.mubr.f32.gmra.mrb[0].mxu0 %v2375
      %v2443 = vpop.f32.mrb[0].mxu0
      %v2444 = vadd.f32 0.0, %v2443
      %v2445 = vpop.f32.mrb[0].mxu0
      %v2446 = vadd.f32 0.0, %v2445
      %2447 = vdwg.mxu0
      %v2449 = vsel %vm361, %v2326, 0
      %2451 = vmatprep.subr.mxu0 %v2328
      %2452 = vmatpush1.msra.mxu0 %v2327
      %2453 = vmatprep.subr.mxu0 %v2330
      %2454 = vmatpush1.msra.mxu0 %v2329
      %2455 = vmatprep.subr.mxu0 %v2332
      %2456 = vmatpush1.msra.mxu0 %v2331
      %2457 = vmatprep.subr.mxu0 %v2334
      %2458 = vmatpush1.msra.mxu0 %v2333
      %2459 = vmatprep.subr.mxu0 0.0
      %2460 = vmatpush1.msra.mxu0 0.0
      %2461 = vmatprep.subr.mxu0 0.0
      %2462 = vmatpush1.msra.mxu0 0.0
      %2463 = vmatprep.subr.mxu0 0.0
      %2464 = vmatpush1.msra.mxu0 0.0
      %2465 = vmatprep.subr.mxu0 0.0
      %2466 = vmatpush1.msra.mxu0 0.0
      %2467 = vmatprep.subr.mxu0 0.0
      %2468 = vmatpush1.msra.mxu0 0.0
      %2469 = vmatprep.subr.mxu0 0.0
      %2470 = vmatpush1.msra.mxu0 0.0
      %2471 = vmatprep.subr.mxu0 0.0
      %2472 = vmatpush1.msra.mxu0 0.0
      %2473 = vmatprep.subr.mxu0 0.0
      %2474 = vmatpush1.msra.mxu0 0.0
      %2475 = vmatprep.subr.mxu0 0.0
      %2476 = vmatpush1.msra.mxu0 0.0
      %2477 = vmatprep.subr.mxu0 0.0
      %2478 = vmatpush1.msra.mxu0 0.0
      %2479 = vmatprep.subr.mxu0 0.0
      %2480 = vmatpush1.msra.mxu0 0.0
      %2481 = vmatprep.subr.mxu0 0.0
      %2482 = vmatpush1.msra.mxu0 0.0
      %2483 = vmatprep.subr.mxu0 0.0
      %2484 = vmatpush1.msra.mxu0 0.0
      %2485 = vmatprep.subr.mxu0 0.0
      %2486 = vmatpush1.msra.mxu0 0.0
      %2487 = vmatprep.subr.mxu0 0.0
      %2488 = vmatpush1.msra.mxu0 0.0
      %2489 = vmatprep.subr.mxu0 0.0
      %2490 = vmatpush1.msra.mxu0 0.0
      %2491 = vmatprep.subr.mxu0 0.0
      %2492 = vmatpush1.msra.mxu0 0.0
      %2493 = vmatprep.subr.mxu0 0.0
      %2494 = vmatpush1.msra.mxu0 0.0
      %2495 = vmatprep.subr.mxu0 0.0
      %2496 = vmatpush1.msra.mxu0 0.0
      %2497 = vmatprep.subr.mxu0 0.0
      %2498 = vmatpush1.msra.mxu0 0.0
      %2499 = vmatprep.subr.mxu0 0.0
      %2500 = vmatpush1.msra.mxu0 0.0
      %2501 = vmatprep.subr.mxu0 0.0
      %2502 = vmatpush1.msra.mxu0 0.0
      %2503 = vmatprep.subr.mxu0 0.0
      %2504 = vmatpush1.msra.mxu0 0.0
      %2505 = vmatprep.subr.mxu0 0.0
      %2506 = vmatpush1.msra.mxu0 0.0
      %2507 = vmatprep.subr.mxu0 0.0
      %2508 = vmatpush1.msra.mxu0 0.0
      %2509 = vmatprep.subr.mxu0 0.0
      %2510 = vmatpush1.msra.mxu0 0.0
      %2511 = vmatprep.subr.mxu0 0.0
      %2512 = vmatpush1.msra.mxu0 0.0
      %2513 = vmatprep.subr.mxu0 0.0
      %2514 = vmatpush1.msra.mxu0 0.0
      %2515 = vmatprep.mubr.f32.mxu0 0.0
      %2516 = vmatmul.mubr.f32.gmra.mrb[0].mxu0 %v2449
      %v2517 = vpop.f32.mrb[0].mxu0
      %v2518 = vadd.f32 %v2444, %v2517
      %v2519 = vpop.f32.mrb[0].mxu0
      %v2520 = vadd.f32 %v2446, %v2519
      %2521 = vdwg.mxu0
      %s2522 = scalar_lea.vmem %s4, 16
      %v2523 = vld [vmem:[%s2522] sm:$0xff]
      %2524 = vrot.lane.b32.xlu0 %v2327, 126
      %v2525 = vpop.permute.xlu0 %2524
      %2526 = vrot.lane.b32.xlu0 %v2328, 126
      %v2527 = vpop.permute.xlu0 %2526
      %2528 = vrot.lane.b32.xlu0 %v2329, 126
      %v2529 = vpop.permute.xlu0 %2528
      %2530 = vrot.lane.b32.xlu0 %v2330, 126
      %v2531 = vpop.permute.xlu0 %2530
      %2532 = vrot.lane.b32.xlu0 %v2331, 126
      %v2533 = vpop.permute.xlu0 %2532
      %2534 = vrot.lane.b32.xlu0 %v2332, 126
      %v2535 = vpop.permute.xlu0 %2534
      %2536 = vrot.lane.b32.xlu0 %v2333, 126
      %v2537 = vpop.permute.xlu0 %2536
      %2538 = vrot.lane.b32.xlu0 %v2334, 126
      %v2539 = vpop.permute.xlu0 %2538
      %vm2540 = vcmask 1031168
      %v2541 = vsel %vm2540, %v2525, %v2527
      %v2542 = vsel %vm2540, %v2529, %v2531
      %v2543 = vsel %vm2540, %v2533, %v2535
      %v2544 = vsel %vm2540, %v2537, %v2539
      %v2554 = vsel %vm361, %v2523, 0
      %2556 = vmatprep.subr.mxu0 %v2527
      %2557 = vmatpush1.msra.mxu0 %v2541
      %2558 = vmatprep.subr.mxu0 %v2531
      %2559 = vmatpush1.msra.mxu0 %v2542
      %2560 = vmatprep.subr.mxu0 %v2535
      %2561 = vmatpush1.msra.mxu0 %v2543
      %2562 = vmatprep.subr.mxu0 %v2539
      %2563 = vmatpush1.msra.mxu0 %v2544
      %2564 = vmatprep.subr.mxu0 0.0
      %2565 = vmatpush1.msra.mxu0 0.0
      %2566 = vmatprep.subr.mxu0 0.0
      %2567 = vmatpush1.msra.mxu0 0.0
      %2568 = vmatprep.subr.mxu0 0.0
      %2569 = vmatpush1.msra.mxu0 0.0
      %2570 = vmatprep.subr.mxu0 0.0
      %2571 = vmatpush1.msra.mxu0 0.0
      %2572 = vmatprep.subr.mxu0 0.0
      %2573 = vmatpush1.msra.mxu0 0.0
      %2574 = vmatprep.subr.mxu0 0.0
      %2575 = vmatpush1.msra.mxu0 0.0
      %2576 = vmatprep.subr.mxu0 0.0
      %2577 = vmatpush1.msra.mxu0 0.0
      %2578 = vmatprep.subr.mxu0 0.0
      %2579 = vmatpush1.msra.mxu0 0.0
      %2580 = vmatprep.subr.mxu0 0.0
      %2581 = vmatpush1.msra.mxu0 0.0
      %2582 = vmatprep.subr.mxu0 0.0
      %2583 = vmatpush1.msra.mxu0 0.0
      %2584 = vmatprep.subr.mxu0 0.0
      %2585 = vmatpush1.msra.mxu0 0.0
      %2586 = vmatprep.subr.mxu0 0.0
      %2587 = vmatpush1.msra.mxu0 0.0
      %2588 = vmatprep.subr.mxu0 0.0
      %2589 = vmatpush1.msra.mxu0 0.0
      %2590 = vmatprep.subr.mxu0 0.0
      %2591 = vmatpush1.msra.mxu0 0.0
      %2592 = vmatprep.subr.mxu0 0.0
      %2593 = vmatpush1.msra.mxu0 0.0
      %2594 = vmatprep.subr.mxu0 0.0
      %2595 = vmatpush1.msra.mxu0 0.0
      %2596 = vmatprep.subr.mxu0 0.0
      %2597 = vmatpush1.msra.mxu0 0.0
      %2598 = vmatprep.subr.mxu0 0.0
      %2599 = vmatpush1.msra.mxu0 0.0
      %2600 = vmatprep.subr.mxu0 0.0
      %2601 = vmatpush1.msra.mxu0 0.0
      %2602 = vmatprep.subr.mxu0 0.0
      %2603 = vmatpush1.msra.mxu0 0.0
      %2604 = vmatprep.subr.mxu0 0.0
      %2605 = vmatpush1.msra.mxu0 0.0
      %2606 = vmatprep.subr.mxu0 0.0
      %2607 = vmatpush1.msra.mxu0 0.0
      %2608 = vmatprep.subr.mxu0 0.0
      %2609 = vmatpush1.msra.mxu0 0.0
      %2610 = vmatprep.subr.mxu0 0.0
      %2611 = vmatpush1.msra.mxu0 0.0
      %2612 = vmatprep.subr.mxu0 0.0
      %2613 = vmatpush1.msra.mxu0 0.0
      %2614 = vmatprep.subr.mxu0 0.0
      %2615 = vmatpush1.msra.mxu0 0.0
      %2616 = vmatprep.subr.mxu0 0.0
      %2617 = vmatpush1.msra.mxu0 0.0
      %2618 = vmatprep.subr.mxu0 0.0
      %2619 = vmatpush1.msra.mxu0 0.0
      %2620 = vmatprep.mubr.f32.mxu0 0.0
      %2621 = vmatmul.mubr.f32.gmra.mrb[0].mxu0 %v2554
      %v2622 = vpop.f32.mrb[0].mxu0
      %v2623 = vadd.f32 0.0, %v2622
      %v2624 = vpop.f32.mrb[0].mxu0
      %v2625 = vadd.f32 0.0, %v2624
      %2626 = vdwg.mxu0
      %v2627 = vadd.f32 %v2518, %v2623
      %v2628 = vadd.f32 %v2520, %v2625
      %s2629 = scalar_lea.vmem %s4, 24
      %v2630 = vld [vmem:[%s2629] sm:$0xff]
      %v2631 = vld [vmem:[#allocation2 + $0x8] sm:$0xff]
      %v2632 = vld [vmem:[#allocation2 + $0x10] sm:$0xff]
      %v2633 = vld [vmem:[#allocation2 + $0x20] sm:$0xff]
      %v2634 = vld [vmem:[#allocation2 + $0x28] sm:$0xff]
      %v2635 = vld [vmem:[#allocation2 + $0x38] sm:$0xff]
      %v2636 = vld [vmem:[#allocation2 + $0x40] sm:$0xff]
      %v2637 = vld [vmem:[#allocation2 + $0x50] sm:$0xff]
      %v2638 = vld [vmem:[#allocation2 + $0x58] sm:$0xff]
      %2647 = vrot.lane.b32.xlu0 %v2631, 112
      %v2648 = vpop.permute.xlu0 %2647
      %2649 = vrot.lane.b32.xlu0 %v2632, 112
      %v2650 = vpop.permute.xlu0 %2649
      %2651 = vrot.lane.b32.xlu0 %v2633, 112
      %v2652 = vpop.permute.xlu0 %2651
      %2653 = vrot.lane.b32.xlu0 %v2634, 112
      %v2654 = vpop.permute.xlu0 %2653
      %2655 = vrot.lane.b32.xlu0 %v2635, 112
      %v2656 = vpop.permute.xlu0 %2655
      %2657 = vrot.lane.b32.xlu0 %v2636, 112
      %v2658 = vpop.permute.xlu0 %2657
      %2659 = vrot.lane.b32.xlu0 %v2637, 112
      %v2660 = vpop.permute.xlu0 %2659
      %2661 = vrot.lane.b32.xlu0 %v2638, 112
      %v2662 = vpop.permute.xlu0 %2661
      %v2663 = vsel %vm668, %v2648, %v2650
      %v2664 = vsel %vm668, %v2652, %v2654
      %v2665 = vsel %vm668, %v2656, %v2658
      %v2666 = vsel %vm668, %v2660, %v2662
      %v2676 = vsel %vm361, %v2630, 0
      %2678 = vmatprep.subr.mxu0 %v2650
      %2679 = vmatpush1.msra.mxu0 %v2663
      %2680 = vmatprep.subr.mxu0 %v2654
      %2681 = vmatpush1.msra.mxu0 %v2664
      %2682 = vmatprep.subr.mxu0 %v2658
      %2683 = vmatpush1.msra.mxu0 %v2665
      %2684 = vmatprep.subr.mxu0 %v2662
      %2685 = vmatpush1.msra.mxu0 %v2666
      %2686 = vmatprep.subr.mxu0 0.0
      %2687 = vmatpush1.msra.mxu0 0.0
      %2688 = vmatprep.subr.mxu0 0.0
      %2689 = vmatpush1.msra.mxu0 0.0
      %2690 = vmatprep.subr.mxu0 0.0
      %2691 = vmatpush1.msra.mxu0 0.0
      %2692 = vmatprep.subr.mxu0 0.0
      %2693 = vmatpush1.msra.mxu0 0.0
      %2694 = vmatprep.subr.mxu0 0.0
      %2695 = vmatpush1.msra.mxu0 0.0
      %2696 = vmatprep.subr.mxu0 0.0
      %2697 = vmatpush1.msra.mxu0 0.0
      %2698 = vmatprep.subr.mxu0 0.0
      %2699 = vmatpush1.msra.mxu0 0.0
      %2700 = vmatprep.subr.mxu0 0.0
      %2701 = vmatpush1.msra.mxu0 0.0
      %2702 = vmatprep.subr.mxu0 0.0
      %2703 = vmatpush1.msra.mxu0 0.0
      %2704 = vmatprep.subr.mxu0 0.0
      %2705 = vmatpush1.msra.mxu0 0.0
      %2706 = vmatprep.subr.mxu0 0.0
      %2707 = vmatpush1.msra.mxu0 0.0
      %2708 = vmatprep.subr.mxu0 0.0
      %2709 = vmatpush1.msra.mxu0 0.0
      %2710 = vmatprep.subr.mxu0 0.0
      %2711 = vmatpush1.msra.mxu0 0.0
      %2712 = vmatprep.subr.mxu0 0.0
      %2713 = vmatpush1.msra.mxu0 0.0
      %2714 = vmatprep.subr.mxu0 0.0
      %2715 = vmatpush1.msra.mxu0 0.0
      %2716 = vmatprep.subr.mxu0 0.0
      %2717 = vmatpush1.msra.mxu0 0.0
      %2718 = vmatprep.subr.mxu0 0.0
      %2719 = vmatpush1.msra.mxu0 0.0
      %2720 = vmatprep.subr.mxu0 0.0
      %2721 = vmatpush1.msra.mxu0 0.0
      %2722 = vmatprep.subr.mxu0 0.0
      %2723 = vmatpush1.msra.mxu0 0.0
      %2724 = vmatprep.subr.mxu0 0.0
      %2725 = vmatpush1.msra.mxu0 0.0
      %2726 = vmatprep.subr.mxu0 0.0
      %2727 = vmatpush1.msra.mxu0 0.0
      %2728 = vmatprep.subr.mxu0 0.0
      %2729 = vmatpush1.msra.mxu0 0.0
      %2730 = vmatprep.subr.mxu0 0.0
      %2731 = vmatpush1.msra.mxu0 0.0
      %2732 = vmatprep.subr.mxu0 0.0
      %2733 = vmatpush1.msra.mxu0 0.0
      %2734 = vmatprep.subr.mxu0 0.0
      %2735 = vmatpush1.msra.mxu0 0.0
      %2736 = vmatprep.subr.mxu0 0.0
      %2737 = vmatpush1.msra.mxu0 0.0
      %2738 = vmatprep.subr.mxu0 0.0
      %2739 = vmatpush1.msra.mxu0 0.0
      %2740 = vmatprep.subr.mxu0 0.0
      %2741 = vmatpush1.msra.mxu0 0.0
      %2742 = vmatprep.mubr.f32.mxu0 0.0
      %2743 = vmatmul.mubr.f32.gmra.mrb[0].mxu0 %v2676
      %v2744 = vpop.f32.mrb[0].mxu0
      %v2745 = vadd.f32 0.0, %v2744
      %v2746 = vpop.f32.mrb[0].mxu0
      %v2747 = vadd.f32 0.0, %v2746
      %2748 = vdwg.mxu0
      %v2749 = vadd.f32 %v2627, %v2745
      %v2750 = vadd.f32 %v2628, %v2747
      %s2751 = scalar_lea.vmem %s4, 32
      %v2752 = vld [vmem:[%s2751] sm:$0xff]
      %2753 = vrot.lane.b32.xlu0 %v2631, 111
      %v2754 = vpop.permute.xlu0 %2753
      %2755 = vrot.lane.b32.xlu0 %v2632, 111
      %v2756 = vpop.permute.xlu0 %2755
      %2757 = vrot.lane.b32.xlu0 %v2633, 111
      %v2758 = vpop.permute.xlu0 %2757
      %2759 = vrot.lane.b32.xlu0 %v2634, 111
      %v2760 = vpop.permute.xlu0 %2759
      %2761 = vrot.lane.b32.xlu0 %v2635, 111
      %v2762 = vpop.permute.xlu0 %2761
      %2763 = vrot.lane.b32.xlu0 %v2636, 111
      %v2764 = vpop.permute.xlu0 %2763
      %2765 = vrot.lane.b32.xlu0 %v2637, 111
      %v2766 = vpop.permute.xlu0 %2765
      %2767 = vrot.lane.b32.xlu0 %v2638, 111
      %v2768 = vpop.permute.xlu0 %2767
      %v2769 = vsel %vm754, %v2754, %v2756
      %v2770 = vsel %vm754, %v2758, %v2760
      %v2771 = vsel %vm754, %v2762, %v2764
      %v2772 = vsel %vm754, %v2766, %v2768
      %v2782 = vsel %vm361, %v2752, 0
      %2784 = vmatprep.subr.mxu0 %v2756
      %2785 = vmatpush1.msra.mxu0 %v2769
      %2786 = vmatprep.subr.mxu0 %v2760
      %2787 = vmatpush1.msra.mxu0 %v2770
      %2788 = vmatprep.subr.mxu0 %v2764
      %2789 = vmatpush1.msra.mxu0 %v2771
      %2790 = vmatprep.subr.mxu0 %v2768
      %2791 = vmatpush1.msra.mxu0 %v2772
      %2792 = vmatprep.subr.mxu0 0.0
      %2793 = vmatpush1.msra.mxu0 0.0
      %2794 = vmatprep.subr.mxu0 0.0
      %2795 = vmatpush1.msra.mxu0 0.0
      %2796 = vmatprep.subr.mxu0 0.0
      %2797 = vmatpush1.msra.mxu0 0.0
      %2798 = vmatprep.subr.mxu0 0.0
      %2799 = vmatpush1.msra.mxu0 0.0
      %2800 = vmatprep.subr.mxu0 0.0
      %2801 = vmatpush1.msra.mxu0 0.0
      %2802 = vmatprep.subr.mxu0 0.0
      %2803 = vmatpush1.msra.mxu0 0.0
      %2804 = vmatprep.subr.mxu0 0.0
      %2805 = vmatpush1.msra.mxu0 0.0
      %2806 = vmatprep.subr.mxu0 0.0
      %2807 = vmatpush1.msra.mxu0 0.0
      %2808 = vmatprep.subr.mxu0 0.0
      %2809 = vmatpush1.msra.mxu0 0.0
      %2810 = vmatprep.subr.mxu0 0.0
      %2811 = vmatpush1.msra.mxu0 0.0
      %2812 = vmatprep.subr.mxu0 0.0
      %2813 = vmatpush1.msra.mxu0 0.0
      %2814 = vmatprep.subr.mxu0 0.0
      %2815 = vmatpush1.msra.mxu0 0.0
      %2816 = vmatprep.subr.mxu0 0.0
      %2817 = vmatpush1.msra.mxu0 0.0
      %2818 = vmatprep.subr.mxu0 0.0
      %2819 = vmatpush1.msra.mxu0 0.0
      %2820 = vmatprep.subr.mxu0 0.0
      %2821 = vmatpush1.msra.mxu0 0.0
      %2822 = vmatprep.subr.mxu0 0.0
      %2823 = vmatpush1.msra.mxu0 0.0
      %2824 = vmatprep.subr.mxu0 0.0
      %2825 = vmatpush1.msra.mxu0 0.0
      %2826 = vmatprep.subr.mxu0 0.0
      %2827 = vmatpush1.msra.mxu0 0.0
      %2828 = vmatprep.subr.mxu0 0.0
      %2829 = vmatpush1.msra.mxu0 0.0
      %2830 = vmatprep.subr.mxu0 0.0
      %2831 = vmatpush1.msra.mxu0 0.0
      %2832 = vmatprep.subr.mxu0 0.0
      %2833 = vmatpush1.msra.mxu0 0.0
      %2834 = vmatprep.subr.mxu0 0.0
      %2835 = vmatpush1.msra.mxu0 0.0
      %2836 = vmatprep.subr.mxu0 0.0
      %2837 = vmatpush1.msra.mxu0 0.0
      %2838 = vmatprep.subr.mxu0 0.0
      %2839 = vmatpush1.msra.mxu0 0.0
      %2840 = vmatprep.subr.mxu0 0.0
      %2841 = vmatpush1.msra.mxu0 0.0
      %2842 = vmatprep.subr.mxu0 0.0
      %2843 = vmatpush1.msra.mxu0 0.0
      %2844 = vmatprep.subr.mxu0 0.0
      %2845 = vmatpush1.msra.mxu0 0.0
      %2846 = vmatprep.subr.mxu0 0.0
      %2847 = vmatpush1.msra.mxu0 0.0
      %2848 = vmatprep.mubr.f32.mxu0 0.0
      %2849 = vmatmul.mubr.f32.gmra.mrb[0].mxu0 %v2782
      %v2850 = vpop.f32.mrb[0].mxu0
      %v2851 = vadd.f32 0.0, %v2850
      %v2852 = vpop.f32.mrb[0].mxu0
      %v2853 = vadd.f32 0.0, %v2852
      %2854 = vdwg.mxu0
      %v2855 = vadd.f32 %v2749, %v2851
      %v2856 = vadd.f32 %v2750, %v2853
      %s2857 = scalar_lea.vmem %s4, 40
      %v2858 = vld [vmem:[%s2857] sm:$0xff]
      %2859 = vrot.lane.b32.xlu0 %v2631, 110
      %v2860 = vpop.permute.xlu0 %2859
      %2861 = vrot.lane.b32.xlu0 %v2632, 110
      %v2862 = vpop.permute.xlu0 %2861
      %2863 = vrot.lane.b32.xlu0 %v2633, 110
      %v2864 = vpop.permute.xlu0 %2863
      %2865 = vrot.lane.b32.xlu0 %v2634, 110
      %v2866 = vpop.permute.xlu0 %2865
      %2867 = vrot.lane.b32.xlu0 %v2635, 110
      %v2868 = vpop.permute.xlu0 %2867
      %2869 = vrot.lane.b32.xlu0 %v2636, 110
      %v2870 = vpop.permute.xlu0 %2869
      %2871 = vrot.lane.b32.xlu0 %v2637, 110
      %v2872 = vpop.permute.xlu0 %2871
      %2873 = vrot.lane.b32.xlu0 %v2638, 110
      %v2874 = vpop.permute.xlu0 %2873
      %v2875 = vsel %vm840, %v2860, %v2862
      %v2876 = vsel %vm840, %v2864, %v2866
      %v2877 = vsel %vm840, %v2868, %v2870
      %v2878 = vsel %vm840, %v2872, %v2874
      %v2888 = vsel %vm361, %v2858, 0
      %2890 = vmatprep.subr.mxu0 %v2862
      %2891 = vmatpush1.msra.mxu0 %v2875
      %2892 = vmatprep.subr.mxu0 %v2866
      %2893 = vmatpush1.msra.mxu0 %v2876
      %2894 = vmatprep.subr.mxu0 %v2870
      %2895 = vmatpush1.msra.mxu0 %v2877
      %2896 = vmatprep.subr.mxu0 %v2874
      %2897 = vmatpush1.msra.mxu0 %v2878
      %2898 = vmatprep.subr.mxu0 0.0
      %2899 = vmatpush1.msra.mxu0 0.0
      %2900 = vmatprep.subr.mxu0 0.0
      %2901 = vmatpush1.msra.mxu0 0.0
      %2902 = vmatprep.subr.mxu0 0.0
      %2903 = vmatpush1.msra.mxu0 0.0
      %2904 = vmatprep.subr.mxu0 0.0
      %2905 = vmatpush1.msra.mxu0 0.0
      %2906 = vmatprep.subr.mxu0 0.0
      %2907 = vmatpush1.msra.mxu0 0.0
      %2908 = vmatprep.subr.mxu0 0.0
      %2909 = vmatpush1.msra.mxu0 0.0
      %2910 = vmatprep.subr.mxu0 0.0
      %2911 = vmatpush1.msra.mxu0 0.0
      %2912 = vmatprep.subr.mxu0 0.0
      %2913 = vmatpush1.msra.mxu0 0.0
      %2914 = vmatprep.subr.mxu0 0.0
      %2915 = vmatpush1.msra.mxu0 0.0
      %2916 = vmatprep.subr.mxu0 0.0
      %2917 = vmatpush1.msra.mxu0 0.0
      %2918 = vmatprep.subr.mxu0 0.0
      %2919 = vmatpush1.msra.mxu0 0.0
      %2920 = vmatprep.subr.mxu0 0.0
      %2921 = vmatpush1.msra.mxu0 0.0
      %2922 = vmatprep.subr.mxu0 0.0
      %2923 = vmatpush1.msra.mxu0 0.0
      %2924 = vmatprep.subr.mxu0 0.0
      %2925 = vmatpush1.msra.mxu0 0.0
      %2926 = vmatprep.subr.mxu0 0.0
      %2927 = vmatpush1.msra.mxu0 0.0
      %2928 = vmatprep.subr.mxu0 0.0
      %2929 = vmatpush1.msra.mxu0 0.0
      %2930 = vmatprep.subr.mxu0 0.0
      %2931 = vmatpush1.msra.mxu0 0.0
      %2932 = vmatprep.subr.mxu0 0.0
      %2933 = vmatpush1.msra.mxu0 0.0
      %2934 = vmatprep.subr.mxu0 0.0
      %2935 = vmatpush1.msra.mxu0 0.0
      %2936 = vmatprep.subr.mxu0 0.0
      %2937 = vmatpush1.msra.mxu0 0.0
      %2938 = vmatprep.subr.mxu0 0.0
      %2939 = vmatpush1.msra.mxu0 0.0
      %2940 = vmatprep.subr.mxu0 0.0
      %2941 = vmatpush1.msra.mxu0 0.0
      %2942 = vmatprep.subr.mxu0 0.0
      %2943 = vmatpush1.msra.mxu0 0.0
      %2944 = vmatprep.subr.mxu0 0.0
      %2945 = vmatpush1.msra.mxu0 0.0
      %2946 = vmatprep.subr.mxu0 0.0
      %2947 = vmatpush1.msra.mxu0 0.0
      %2948 = vmatprep.subr.mxu0 0.0
      %2949 = vmatpush1.msra.mxu0 0.0
      %2950 = vmatprep.subr.mxu0 0.0
      %2951 = vmatpush1.msra.mxu0 0.0
      %2952 = vmatprep.subr.mxu0 0.0
      %2953 = vmatpush1.msra.mxu0 0.0
      %2954 = vmatprep.mubr.f32.mxu0 0.0
      %2955 = vmatmul.mubr.f32.gmra.mrb[0].mxu0 %v2888
      %v2956 = vpop.f32.mrb[0].mxu0
      %v2957 = vadd.f32 0.0, %v2956
      %v2958 = vpop.f32.mrb[0].mxu0
      %v2959 = vadd.f32 0.0, %v2958
      %2960 = vdwg.mxu0
      %v2961 = vadd.f32 %v2855, %v2957
      %v2962 = vadd.f32 %v2856, %v2959
      %s2963 = scalar_lea.vmem %s5, 24
      %v2964 = vld [vmem:[%s2963] sm:$0xff]
      %2966 = vset.pattern.permute.xlu0 0
      %2967 = vperm.xlu0 %2966, %v2964
      %v2968 = vpop.permute.xlu0 %2967
      %v2970 = vadd.f32 %v2961, %v2968
      %v2971 = vadd.f32 %v2962, %v2968
      %v2972 = vmul.f32 %v2970, %v402
      %v2973 = vmul.f32 %v2971, %v403
      %v2974 = vsel %vm355, %v2973, 0.0
      %v2975 = vadd.f32 %v2972, %v2974
      %2976 = vadd.xlane.f32.xlu0 %v2975
      %v2977 = vpop.xlane.xlu0 %2976
      %v2978 = vmul.f32 %v2977, 0.0078125
      %v2979 = vsub.f32 %v2970, %v2978
      %v2980 = vsub.f32 %v2971, %v2978
      %v2981 = vmul.f32 %v2979, %v2979
      %v2982 = vmul.f32 %v2980, %v2980
      %v2983 = vmul.f32 %v2981, %v402
      %v2984 = vmul.f32 %v2982, %v403
      %v2985 = vsel %vm355, %v2984, 0.0
      %v2986 = vadd.f32 %v2983, %v2985
      %2987 = vadd.xlane.f32.xlu0 %v2986
      %v2988 = vpop.xlane.xlu0 %2987
      %v2989 = vmul.f32 %v2988, 0.0078125
      %s2990 = scalar_lea.vmem %s6, 24
      %v2991 = vld [vmem:[%s2990] sm:$0xff]
      %v2992 = vadd.f32 %v2989, 1e-05
      %v2993 = vrsqrt.pop %v2992
      %v2994 = vmul.f32 %v2979, %v2993
      %v2995 = vmul.f32 %v2980, %v2993
      %2997 = vset.pattern.permute.xlu0 0
      %2998 = vperm.xlu0 %2997, %v2991
      %v2999 = vpop.permute.xlu0 %2998
      %v3001 = vmul.f32 %v2999, %v2994
      %v3002 = vmul.f32 %v2999, %v2995
      %s3003 = scalar_lea.vmem %s7, 24
      %v3004 = vld [vmem:[%s3003] sm:$0xff]
      %3006 = vset.pattern.permute.xlu0 0
      %3007 = vperm.xlu0 %3006, %v3004
      %v3008 = vpop.permute.xlu0 %3007
      %v3010 = vadd.f32 %v3001, %v3008
      %v3011 = vadd.f32 %v3002, %v3008
      %vm3012 = vcmp.gt.f32.partialorder %v3010, 0.0
      %vm3013 = vcmp.gt.f32.partialorder %v3011, 0.0
      %s3014 = scalar_lea.vmem %s8, 24
      %v3015 = vld [vmem:[%s3014] sm:$0xff]
      %3017 = vset.pattern.permute.xlu0 0
      %3018 = vperm.xlu0 %3017, %v3015
      %v3019 = vpop.permute.xlu0 %3018
      %v3021 = vmul.f32 %v3019, %v3010
      %v3022 = vmul.f32 %v3019, %v3011
      %v3023 = vsel %vm3012, %v3010, %v3021
      %v3024 = vsel %vm3013, %v3011, %v3022
      %3025 = vst [vmem:[%s332] sm:$0xff] %v3023
      %3026 = vst.msk [vmem:[%s332 + $0x8] sm:$0xff] %vm355, %v3024
      %p3027 = scmp.lt.s32.totalorder %s20, 1
      %s3028 = scalar_select %p3027, %s20, 1
      %s3029 = smul.addr %s3028, 2
      %s3030 = smul.addr %s3029, 8
      %s3031 = scalar_lea.vmem %s9, %s3030
      // Predicated region
      $region57: #{dense_block_v2.1} parent=55 // pred_check
        %p3032 = pneg %p232
      $region58: #{dense_block_v2.1} parent=55 // pred_check_branch
        %3034 = sbr.rel (%p3032) target = $region60
      $region59: #{dense_block_v2.1} parent=55 // pred_region
        _
      $region60: #{dense_block_v2.1} parent=55 // pred_fallthru
        _
    $region56: #{dense_block_v2.1} parent=5 // pred_fallthru
      _
    %p3035 = scmp.le.s32.totalorder 2, %s15
    // Predicated region
    $region61: #{dense_block_v2.1} parent=5 // pred_check
      %p3036 = pneg %p3035
    $region62: #{dense_block_v2.1} parent=5 // pred_check_branch
      %3038 = sbr.rel (%p3036) target = $region64
    $region63: #{dense_block_v2.1} parent=5 // pred_region
      %s3039 = ssub.s32 %s15, 2
      // Predicated region
      $region65: #{dense_block_v2.1} parent=63 // pred_check
        %p3040 = pneg %p238
      $region66: #{dense_block_v2.1} parent=63 // pred_check_branch
        %3042 = sbr.rel (%p3040) target = $region68
      $region67: #{dense_block_v2.1} parent=63 // pred_region
        %p3043 = scmp.lt.s32.totalorder %s21, 1
        %s3044 = scalar_select %p3043, %s21, 1
        %s3045 = smul.addr %s3044, 2
        %s3046 = smul.addr %s3045, 8
        %s3047 = scalar_lea.vmem %s9, %s3046
      $region68: #{dense_block_v2.1} parent=63 // pred_fallthru
        _
    $region64: #{dense_block_v2.1} parent=5 // pred_fallthru
      _
  $region6: #{dense_block_v2.1} parent=0 // loop_footer
    %s19 = sadd.s32 1, %s15
  $region7: #{dense_block_v2.1} parent=0 // loop_footer_branch
    %14 = sbr.rel target = $region3
  $region8: #{dense_block_v2.1} parent=0 // loop_exit
    _

</llo_original>
